<compile_context>
chip_gen: v7x
topology: tpu7x:2x2x1
jax: 0.10.0
libtpu: 0.0.40
codegen_flags: <defaults>
</compile_context>

<pallas_src>
import functools

import jax
import jax.numpy as jnp
from jax.experimental import pallas as pl
from jax.experimental.pallas import tpu as pltpu

HIDDEN = 256
NEG_SLOPE = 0.01  # PyTorch nn.LeakyReLU default


def _lrelu(x):
    # LeakyReLU(0.01) == max(x, 0.01*x) for 0 < slope < 1 (2 VPU ops, not 3).
    return jnp.maximum(x, NEG_SLOPE * x)


def _round_up(x, m):
    return ((x + m - 1) // m) * m


def critic_head_kernel(
    s_ref, a_ref,                                      # states (TB,256), actions (TB,A)
    w1_ref, b1_ref, w2_ref, b2_ref, w3_ref, b3_ref,    # "first" stack (bf16 W, f32 b)
    wa_ref, ba_ref,                                    # "second" stack (bf16 W, f32 b)
    wo_ref, bo_ref,                                    # "third": wo (1,256) f32 VMEM, bo (1,) f32 SMEM
    o_ref,                                             # (1,TB) f32 lane-dense (or (TB,1))
    *, action_on_vpu: bool, lane_dense_out: bool,
):
    def lin_lrelu(x_bf16, w_ref, b_ref, out_dtype):
        # bf16 x bf16 on the MXU with f32 accumulation; bias + LeakyReLU in f32.
        y = jnp.dot(x_bf16, w_ref[...], preferred_element_type=jnp.float32)
        return _lrelu(y + b_ref[...]).astype(out_dtype)

    # first(states): 3 x (Linear + [BN folded] + LeakyReLU), bf16 intermediates.
    h = lin_lrelu(s_ref[...].astype(jnp.bfloat16), w1_ref, b1_ref, jnp.bfloat16)
    h = lin_lrelu(h, w2_ref, b2_ref, jnp.bfloat16)
    h = lin_lrelu(h, w3_ref, b3_ref, jnp.float32)

    # second(actions): 1 x (Linear + [BN folded] + LeakyReLU).
    if action_on_vpu:
        # K = num_actions is tiny: a padded-K MXU pass costs about as much as a
        # full layer, so accumulate rank-1 outer products on the VPU instead.
        a = a_ref[...].astype(jnp.float32)             # (TB, A)
        wa = wa_ref[...].astype(jnp.float32)           # (A, 256)
        ha = a[:, 0:1] * wa[0:1, :]
        for k in range(1, a.shape[1]):                 # static, unrolled
            ha = ha + a[:, k:k + 1] * wa[k:k + 1, :]
        ha = _lrelu(ha + ba_ref[...])
    else:
        ha = lin_lrelu(a_ref[...].astype(jnp.bfloat16), wa_ref, ba_ref, jnp.float32)

    # third(first + second): Linear(256,1) as a VPU multiply + lane reduction
    # (avoids an N=1 MXU matmul and the awkward (256,1) weight tile).
    z = h + ha
    col = jnp.sum(z * wo_ref[...], axis=-1, keepdims=True)     # (TB, 1) f32
    bo = bo_ref[0]
    if lane_dense_out:
        # Transpose the skinny column to a lane-dense (1, TB) row (XLU has
        # slack): unmasked vst stores + contiguous writeback DMA.
        o_ref[...] = jnp.transpose(col) + bo
    else:
        o_ref[...] = col + bo


def _plan_tiles(batch, tb):
    """Pick (TB, B_pad): TB multiple of 8; when gridded, TB multiple of 128 and
    at least 2 grid steps so v7x can use both TensorCores."""
    b8 = _round_up(batch, 8)
    if b8 <= 1024:                        # small batch: one tile, minimal padding
        return b8, b8
    n_tiles = max(2, pl.cdiv(b8, tb))     # >= 2 tiles for the parallel axis
    tile = _round_up(pl.cdiv(b8, n_tiles), 128)
    return tile, n_tiles * tile


@functools.partial(jax.jit, static_argnames=("tb", "lane_dense_out"))
def critic_head(states, actions, params, *, tb=2048, lane_dense_out=True):
    B, S = states.shape
    A = actions.shape[1]
    assert S == HIDDEN

    TB, B_pad = _plan_tiles(B, tb)
    if B_pad != B:
        # Padded rows see zero inputs (bias-only math, finite); sliced off below.
        states = jnp.pad(states, ((0, B_pad - B), (0, 0)))
        actions = jnp.pad(actions, ((0, B_pad - B), (0, 0)))
    grid = (B_pad // TB,)

    def tile_rows(shape):
        return pl.BlockSpec(shape, lambda i: (i, 0))

    def resident(shape):
        # Same block for every grid step -> weight stays resident in VMEM.
        return pl.BlockSpec(shape, lambda i: (0, 0))

    args = (
        states, actions,
        params["w1"], params["b1"],
        params["w2"], params["b2"],
        params["w3"], params["b3"],
        params["wa"], params["ba"],
        params["wo"], params["bo"],
    )
    in_specs = [
        tile_rows((TB, HIDDEN)),                               # states
        tile_rows((TB, A)),                                    # actions
        resident((HIDDEN, HIDDEN)), resident((1, HIDDEN)),     # w1, b1
        resident((HIDDEN, HIDDEN)), resident((1, HIDDEN)),     # w2, b2
        resident((HIDDEN, HIDDEN)), resident((1, HIDDEN)),     # w3, b3
        resident((A, HIDDEN)),      resident((1, HIDDEN)),     # wa, ba
        resident((1, HIDDEN)),                                 # wo (VPU operand)
        pl.BlockSpec(memory_space=pltpu.MemorySpace.SMEM),     # bo scalar in SMEM
    ]
    if lane_dense_out:
        out_shape = jax.ShapeDtypeStruct((1, B_pad), jnp.float32)
        out_spec = pl.BlockSpec((1, TB), lambda i: (0, i))
    else:
        out_shape = jax.ShapeDtypeStruct((B_pad, 1), jnp.float32)
        out_spec = tile_rows((TB, 1))

    action_on_vpu = A <= 8     # rank-1 VPU accumulation only when K is tiny

    flops = 2 * B_pad * (3 * HIDDEN * HIDDEN + A * HIDDEN + HIDDEN)
    param_bytes = sum(int(v.size) * v.dtype.itemsize for v in params.values())
    bytes_accessed = (param_bytes
                      + B_pad * HIDDEN * states.dtype.itemsize
                      + B_pad * A * actions.dtype.itemsize
                      + B_pad * 4)

    kernel = functools.partial(critic_head_kernel,
                               action_on_vpu=action_on_vpu,
                               lane_dense_out=lane_dense_out)
    out = pl.pallas_call(
        kernel,
        out_shape=out_shape,
        grid=grid,
        in_specs=in_specs,
        out_specs=out_spec,
        compiler_params=pltpu.CompilerParams(
            dimension_semantics=("parallel",),
            vmem_limit_bytes=32 * 1024 * 1024,
        ),
        cost_estimate=pl.CostEstimate(
            flops=flops, transcendentals=0, bytes_accessed=bytes_accessed),
    )(*args)

    if lane_dense_out:
        return out[0, :B].reshape(B, 1)
    return out[:B]


def init_params(key, num_actions):
    """Deterministic synthetic parameters (shapes match the PyTorch module)."""
    ks = jax.random.split(key, 5)

    def linear(k, fan_in, fan_out, w_dtype):
        kw, kb = jax.random.split(k)
        bound = 1.0 / (fan_in ** 0.5)
        w = jax.random.uniform(kw, (fan_in, fan_out), jnp.float32, -bound, bound)
        b = jax.random.uniform(kb, (1, fan_out), jnp.float32, -bound, bound)
        return w.astype(w_dtype), b

    p = {}
    p["w1"], p["b1"] = linear(ks[0], HIDDEN, HIDDEN, jnp.bfloat16)
    p["w2"], p["b2"] = linear(ks[1], HIDDEN, HIDDEN, jnp.bfloat16)
    p["w3"], p["b3"] = linear(ks[2], HIDDEN, HIDDEN, jnp.bfloat16)
    p["wa"], p["ba"] = linear(ks[3], num_actions, HIDDEN, jnp.bfloat16)
    wo, bo = linear(ks[4], HIDDEN, 1, jnp.float32)
    p["wo"] = wo.T                # (1, 256): lane-dense, consumed on the VPU
    p["bo"] = bo.reshape(1)       # (1,) f32 scalar -> SMEM
    return p


def critic_head_ref(states, actions, p):
    """Pure-JAX f32 reference for correctness checking."""
    f32 = lambda x: x.astype(jnp.float32)
    h = _lrelu(f32(states) @ f32(p["w1"]) + p["b1"])
    h = _lrelu(h @ f32(p["w2"]) + p["b2"])
    h = _lrelu(h @ f32(p["w3"]) + p["b3"])
    ha = _lrelu(f32(actions) @ f32(p["wa"]) + p["ba"])
    z = h + ha
    return z @ f32(p["wo"]).T + p["bo"]


if __name__ == "__main__":
    NUM_ACTIONS = 4
    key = jax.random.PRNGKey(0)
    k_p, k_data = jax.random.split(key)
    params = init_params(k_p, NUM_ACTIONS)

    # Two batch sizes: a small single-tile case (not a multiple of 128) and a
    # padded, 2-step gridded case (exercises the lane-dense multi-tile output
    # path and the v7x >=2-tiles rule).
    for B in (200, 1500):
        k_s, k_a = jax.random.split(jax.random.fold_in(k_data, B))
        # bf16 inputs straight from the "producer" (halves HBM input traffic);
        # the wrapper does not insert any cast.
        states = jax.random.normal(k_s, (B, HIDDEN), jnp.bfloat16)
        actions = jax.random.normal(k_a, (B, NUM_ACTIONS), jnp.bfloat16)

        try:
            out = critic_head(states, actions, params)
        except Exception:
            # Safety net: fall back to the (B,1) output layout if this Mosaic
            # version rejects the in-kernel column->row transpose.
            out = critic_head(states, actions, params, lane_dense_out=False)
        out = jax.block_until_ready(out)

        ref = critic_head_ref(states, actions, params)
        assert out.shape == (B, 1)
        # bf16 inputs / bf16 inter-layer activations vs. pure-f32 reference.
        assert jnp.allclose(out, ref, atol=3e-2, rtol=3e-2), f"mismatch at B={B}"

    print("KERNEL_OK")
</pallas_src>

<mosaic_0001>
module attributes {stable_mosaic.version = 11 : i64} {
  func.func @critic_head_kernel(%arg0: i32, %arg1: memref<200x256xbf16, #tpu.memory_space<vmem>>, %arg2: memref<200x4xbf16, #tpu.memory_space<vmem>>, %arg3: memref<256x256xbf16, #tpu.memory_space<vmem>>, %arg4: memref<1x256xf32, #tpu.memory_space<vmem>>, %arg5: memref<256x256xbf16, #tpu.memory_space<vmem>>, %arg6: memref<1x256xf32, #tpu.memory_space<vmem>>, %arg7: memref<256x256xbf16, #tpu.memory_space<vmem>>, %arg8: memref<1x256xf32, #tpu.memory_space<vmem>>, %arg9: memref<4x256xbf16, #tpu.memory_space<vmem>>, %arg10: memref<1x256xf32, #tpu.memory_space<vmem>>, %arg11: memref<1x256xf32, #tpu.memory_space<vmem>>, %arg12: memref<1xf32, #tpu.memory_space<smem>>, %arg13: memref<1x200xf32, #tpu.memory_space<vmem>>) attributes {dimension_semantics = [#tpu.dimension_semantics<parallel>], iteration_bounds = array<i64: 1>, scalar_prefetch = 0 : i64, scratch_operands = 0 : i64, tpu.core_type = #tpu.core_type<tc>, window_params = [{transform_indices = @transform_0, window_bounds = array<i64: 200, 256>}, {transform_indices = @transform_1, window_bounds = array<i64: 200, 4>}, {pipeline_mode = #tpu.pipeline_mode<synchronous>, transform_indices = @transform_2, window_bounds = array<i64: 256, 256>}, {pipeline_mode = #tpu.pipeline_mode<synchronous>, transform_indices = @transform_3, window_bounds = array<i64: 1, 256>}, {pipeline_mode = #tpu.pipeline_mode<synchronous>, transform_indices = @transform_4, window_bounds = array<i64: 256, 256>}, {pipeline_mode = #tpu.pipeline_mode<synchronous>, transform_indices = @transform_5, window_bounds = array<i64: 1, 256>}, {pipeline_mode = #tpu.pipeline_mode<synchronous>, transform_indices = @transform_6, window_bounds = array<i64: 256, 256>}, {pipeline_mode = #tpu.pipeline_mode<synchronous>, transform_indices = @transform_7, window_bounds = array<i64: 1, 256>}, {pipeline_mode = #tpu.pipeline_mode<synchronous>, transform_indices = @transform_8, window_bounds = array<i64: 4, 256>}, {pipeline_mode = #tpu.pipeline_mode<synchronous>, transform_indices = @transform_9, window_bounds = array<i64: 1, 256>}, {pipeline_mode = #tpu.pipeline_mode<synchronous>, transform_indices = @transform_10, window_bounds = array<i64: 1, 256>}, {transform_indices = @transform_11, window_bounds = array<i64: 1>}, {transform_indices = @transform_12, window_bounds = array<i64: 1, 200>}]} {
    %c0 = arith.constant 0 : index
    %c0_0 = arith.constant 0 : index
    %0 = vector.load %arg1[%c0, %c0_0] : memref<200x256xbf16, #tpu.memory_space<vmem>>, vector<200x256xbf16>
    %c0_1 = arith.constant 0 : index
    %c0_2 = arith.constant 0 : index
    %1 = vector.load %arg3[%c0_1, %c0_2] : memref<256x256xbf16, #tpu.memory_space<vmem>>, vector<256x256xbf16>
    %cst = arith.constant dense<0.000000e+00> : vector<200x256xf32>
    %2 = tpu.matmul %0, %1, %cst {dimension_numbers = #tpu.dot_dimension_numbers<[1], [0], [0], [1], [0, 0, 1, 1], [], []>} : vector<200x256xbf16>, vector<256x256xbf16>, vector<200x256xf32> -> vector<200x256xf32>
    %c0_3 = arith.constant 0 : index
    %c0_4 = arith.constant 0 : index
    %3 = vector.load %arg4[%c0_3, %c0_4] : memref<1x256xf32, #tpu.memory_space<vmem>>, vector<1x256xf32>
    %4 = vector.broadcast %3 : vector<1x256xf32> to vector<200x256xf32>
    %5 = arith.addf %2, %4 : vector<200x256xf32>
    %cst_5 = arith.constant 0.00999999977 : f32
    %6 = vector.broadcast %cst_5 : f32 to vector<200x256xf32>
    %7 = arith.mulf %6, %5 : vector<200x256xf32>
    %8 = arith.maximumf %5, %7 : vector<200x256xf32>
    %9 = arith.truncf %8 : vector<200x256xf32> to vector<200x256xbf16>
    %c0_6 = arith.constant 0 : index
    %c0_7 = arith.constant 0 : index
    %10 = vector.load %arg5[%c0_6, %c0_7] : memref<256x256xbf16, #tpu.memory_space<vmem>>, vector<256x256xbf16>
    %cst_8 = arith.constant dense<0.000000e+00> : vector<200x256xf32>
    %11 = tpu.matmul %9, %10, %cst_8 {dimension_numbers = #tpu.dot_dimension_numbers<[1], [0], [0], [1], [0, 0, 1, 1], [], []>} : vector<200x256xbf16>, vector<256x256xbf16>, vector<200x256xf32> -> vector<200x256xf32>
    %c0_9 = arith.constant 0 : index
    %c0_10 = arith.constant 0 : index
    %12 = vector.load %arg6[%c0_9, %c0_10] : memref<1x256xf32, #tpu.memory_space<vmem>>, vector<1x256xf32>
    %13 = vector.broadcast %12 : vector<1x256xf32> to vector<200x256xf32>
    %14 = arith.addf %11, %13 : vector<200x256xf32>
    %cst_11 = arith.constant 0.00999999977 : f32
    %15 = vector.broadcast %cst_11 : f32 to vector<200x256xf32>
    %16 = arith.mulf %15, %14 : vector<200x256xf32>
    %17 = arith.maximumf %14, %16 : vector<200x256xf32>
    %18 = arith.truncf %17 : vector<200x256xf32> to vector<200x256xbf16>
    %c0_12 = arith.constant 0 : index
    %c0_13 = arith.constant 0 : index
    %19 = vector.load %arg7[%c0_12, %c0_13] : memref<256x256xbf16, #tpu.memory_space<vmem>>, vector<256x256xbf16>
    %cst_14 = arith.constant dense<0.000000e+00> : vector<200x256xf32>
    %20 = tpu.matmul %18, %19, %cst_14 {dimension_numbers = #tpu.dot_dimension_numbers<[1], [0], [0], [1], [0, 0, 1, 1], [], []>} : vector<200x256xbf16>, vector<256x256xbf16>, vector<200x256xf32> -> vector<200x256xf32>
    %c0_15 = arith.constant 0 : index
    %c0_16 = arith.constant 0 : index
    %21 = vector.load %arg8[%c0_15, %c0_16] : memref<1x256xf32, #tpu.memory_space<vmem>>, vector<1x256xf32>
    %22 = vector.broadcast %21 : vector<1x256xf32> to vector<200x256xf32>
    %23 = arith.addf %20, %22 : vector<200x256xf32>
    %cst_17 = arith.constant 0.00999999977 : f32
    %24 = vector.broadcast %cst_17 : f32 to vector<200x256xf32>
    %25 = arith.mulf %24, %23 : vector<200x256xf32>
    %26 = arith.maximumf %23, %25 : vector<200x256xf32>
    %c0_18 = arith.constant 0 : index
    %c0_19 = arith.constant 0 : index
    %27 = vector.load %arg2[%c0_18, %c0_19] : memref<200x4xbf16, #tpu.memory_space<vmem>>, vector<200x4xbf16>
    %28 = arith.extf %27 : vector<200x4xbf16> to vector<200x4xf32>
    %c0_20 = arith.constant 0 : index
    %c0_21 = arith.constant 0 : index
    %29 = vector.load %arg9[%c0_20, %c0_21] : memref<4x256xbf16, #tpu.memory_space<vmem>>, vector<4x256xbf16>
    %30 = arith.extf %29 : vector<4x256xbf16> to vector<4x256xf32>
    %31 = vector.extract_strided_slice %28 {offsets = [0, 0], sizes = [200, 1], strides = [1, 1]} : vector<200x4xf32> to vector<200x1xf32>
    %32 = vector.extract_strided_slice %30 {offsets = [0, 0], sizes = [1, 256], strides = [1, 1]} : vector<4x256xf32> to vector<1x256xf32>
    %33 = vector.broadcast %31 : vector<200x1xf32> to vector<200x256xf32>
    %34 = vector.broadcast %32 : vector<1x256xf32> to vector<200x256xf32>
    %35 = arith.mulf %33, %34 : vector<200x256xf32>
    %36 = vector.extract_strided_slice %28 {offsets = [0, 1], sizes = [200, 1], strides = [1, 1]} : vector<200x4xf32> to vector<200x1xf32>
    %37 = vector.extract_strided_slice %30 {offsets = [1, 0], sizes = [1, 256], strides = [1, 1]} : vector<4x256xf32> to vector<1x256xf32>
    %38 = vector.broadcast %36 : vector<200x1xf32> to vector<200x256xf32>
    %39 = vector.broadcast %37 : vector<1x256xf32> to vector<200x256xf32>
    %40 = arith.mulf %38, %39 : vector<200x256xf32>
    %41 = arith.addf %35, %40 : vector<200x256xf32>
    %42 = vector.extract_strided_slice %28 {offsets = [0, 2], sizes = [200, 1], strides = [1, 1]} : vector<200x4xf32> to vector<200x1xf32>
    %43 = vector.extract_strided_slice %30 {offsets = [2, 0], sizes = [1, 256], strides = [1, 1]} : vector<4x256xf32> to vector<1x256xf32>
    %44 = vector.broadcast %42 : vector<200x1xf32> to vector<200x256xf32>
    %45 = vector.broadcast %43 : vector<1x256xf32> to vector<200x256xf32>
    %46 = arith.mulf %44, %45 : vector<200x256xf32>
    %47 = arith.addf %41, %46 : vector<200x256xf32>
    %48 = vector.extract_strided_slice %28 {offsets = [0, 3], sizes = [200, 1], strides = [1, 1]} : vector<200x4xf32> to vector<200x1xf32>
    %49 = vector.extract_strided_slice %30 {offsets = [3, 0], sizes = [1, 256], strides = [1, 1]} : vector<4x256xf32> to vector<1x256xf32>
    %50 = vector.broadcast %48 : vector<200x1xf32> to vector<200x256xf32>
    %51 = vector.broadcast %49 : vector<1x256xf32> to vector<200x256xf32>
    %52 = arith.mulf %50, %51 : vector<200x256xf32>
    %53 = arith.addf %47, %52 : vector<200x256xf32>
    %c0_22 = arith.constant 0 : index
    %c0_23 = arith.constant 0 : index
    %54 = vector.load %arg10[%c0_22, %c0_23] : memref<1x256xf32, #tpu.memory_space<vmem>>, vector<1x256xf32>
    %55 = vector.broadcast %54 : vector<1x256xf32> to vector<200x256xf32>
    %56 = arith.addf %53, %55 : vector<200x256xf32>
    %cst_24 = arith.constant 0.00999999977 : f32
    %57 = vector.broadcast %cst_24 : f32 to vector<200x256xf32>
    %58 = arith.mulf %57, %56 : vector<200x256xf32>
    %59 = arith.maximumf %56, %58 : vector<200x256xf32>
    %60 = arith.addf %26, %59 : vector<200x256xf32>
    %c0_25 = arith.constant 0 : index
    %c0_26 = arith.constant 0 : index
    %61 = vector.load %arg11[%c0_25, %c0_26] : memref<1x256xf32, #tpu.memory_space<vmem>>, vector<1x256xf32>
    %62 = vector.broadcast %61 : vector<1x256xf32> to vector<200x256xf32>
    %63 = arith.mulf %60, %62 : vector<200x256xf32>
    %cst_27 = arith.constant dense<0.000000e+00> : vector<200xf32>
    %64 = vector.multi_reduction <add>, %63, %cst_27 [1] : vector<200x256xf32> to vector<200xf32>
    %65 = vector.shape_cast %64 : vector<200xf32> to vector<200x1xf32>
    %c0_28 = arith.constant 0 : index
    %66 = memref.load %arg12[%c0_28] : memref<1xf32, #tpu.memory_space<smem>>
    %67 = tpu.transpose %65, [1, 0] : vector<200x1xf32> -> vector<1x200xf32>
    %68 = vector.broadcast %66 : f32 to vector<1x200xf32>
    %69 = arith.addf %67, %68 : vector<1x200xf32>
    %c0_29 = arith.constant 0 : index
    %c0_30 = arith.constant 0 : index
    %70 = vector.load %arg13[%c0_29, %c0_30] : memref<1x200xf32, #tpu.memory_space<vmem>>, vector<1x200xf32>
    tpu.vector_store %arg13[%c0_29, %c0_30], %69 {strides = array<i32>} : memref<1x200xf32, #tpu.memory_space<vmem>>, vector<1x200xf32>,
    return
  }
  func.func @transform_0(%arg0: i32) -> (i32, i32) {
    %c0_i32 = arith.constant 0 : i32
    %c0_i32_0 = arith.constant 0 : i32
    return %arg0, %c0_i32 : i32, i32
  }
  func.func @transform_1(%arg0: i32) -> (i32, i32) {
    %c0_i32 = arith.constant 0 : i32
    %c0_i32_0 = arith.constant 0 : i32
    return %arg0, %c0_i32 : i32, i32
  }
  func.func @transform_2(%arg0: i32) -> (i32, i32) {
    %c0_i32 = arith.constant 0 : i32
    %c0_i32_0 = arith.constant 0 : i32
    %c0_i32_1 = arith.constant 0 : i32
    return %c0_i32, %c0_i32_0 : i32, i32
  }
  func.func @transform_3(%arg0: i32) -> (i32, i32) {
    %c0_i32 = arith.constant 0 : i32
    %c0_i32_0 = arith.constant 0 : i32
    %c0_i32_1 = arith.constant 0 : i32
    return %c0_i32, %c0_i32_0 : i32, i32
  }
  func.func @transform_4(%arg0: i32) -> (i32, i32) {
    %c0_i32 = arith.constant 0 : i32
    %c0_i32_0 = arith.constant 0 : i32
    %c0_i32_1 = arith.constant 0 : i32
    return %c0_i32, %c0_i32_0 : i32, i32
  }
  func.func @transform_5(%arg0: i32) -> (i32, i32) {
    %c0_i32 = arith.constant 0 : i32
    %c0_i32_0 = arith.constant 0 : i32
    %c0_i32_1 = arith.constant 0 : i32
    return %c0_i32, %c0_i32_0 : i32, i32
  }
  func.func @transform_6(%arg0: i32) -> (i32, i32) {
    %c0_i32 = arith.constant 0 : i32
    %c0_i32_0 = arith.constant 0 : i32
    %c0_i32_1 = arith.constant 0 : i32
    return %c0_i32, %c0_i32_0 : i32, i32
  }
  func.func @transform_7(%arg0: i32) -> (i32, i32) {
    %c0_i32 = arith.constant 0 : i32
    %c0_i32_0 = arith.constant 0 : i32
    %c0_i32_1 = arith.constant 0 : i32
    return %c0_i32, %c0_i32_0 : i32, i32
  }
  func.func @transform_8(%arg0: i32) -> (i32, i32) {
    %c0_i32 = arith.constant 0 : i32
    %c0_i32_0 = arith.constant 0 : i32
    %c0_i32_1 = arith.constant 0 : i32
    return %c0_i32, %c0_i32_0 : i32, i32
  }
  func.func @transform_9(%arg0: i32) -> (i32, i32) {
    %c0_i32 = arith.constant 0 : i32
    %c0_i32_0 = arith.constant 0 : i32
    %c0_i32_1 = arith.constant 0 : i32
    return %c0_i32, %c0_i32_0 : i32, i32
  }
  func.func @transform_10(%arg0: i32) -> (i32, i32) {
    %c0_i32 = arith.constant 0 : i32
    %c0_i32_0 = arith.constant 0 : i32
    %c0_i32_1 = arith.constant 0 : i32
    return %c0_i32, %c0_i32_0 : i32, i32
  }
  func.func @transform_11(%arg0: i32) -> i32 {
    %c0_i32 = arith.constant 0 : i32
    %c0_i32_0 = arith.constant 0 : i32
    return %c0_i32 : i32
  }
  func.func @transform_12(%arg0: i32) -> (i32, i32) {
    %c0_i32 = arith.constant 0 : i32
    %c0_i32_0 = arith.constant 0 : i32
    return %c0_i32, %arg0 : i32, i32
  }
}

module attributes {stable_mosaic.version = 11 : i64} {
  func.func @critic_head_kernel(%arg0: i32, %arg1: memref<200x256xbf16, #tpu.memory_space<vmem>>, %arg2: memref<200x4xbf16, #tpu.memory_space<vmem>>, %arg3: memref<256x256xbf16, #tpu.memory_space<vmem>>, %arg4: memref<1x256xf32, #tpu.memory_space<vmem>>, %arg5: memref<256x256xbf16, #tpu.memory_space<vmem>>, %arg6: memref<1x256xf32, #tpu.memory_space<vmem>>, %arg7: memref<256x256xbf16, #tpu.memory_space<vmem>>, %arg8: memref<1x256xf32, #tpu.memory_space<vmem>>, %arg9: memref<4x256xbf16, #tpu.memory_space<vmem>>, %arg10: memref<1x256xf32, #tpu.memory_space<vmem>>, %arg11: memref<1x256xf32, #tpu.memory_space<vmem>>, %arg12: memref<1xf32, #tpu.memory_space<smem>>, %arg13: memref<200x1xf32, #tpu.memory_space<vmem>>) attributes {dimension_semantics = [#tpu.dimension_semantics<parallel>], iteration_bounds = array<i64: 1>, scalar_prefetch = 0 : i64, scratch_operands = 0 : i64, tpu.core_type = #tpu.core_type<tc>, window_params = [{transform_indices = @transform_0, window_bounds = array<i64: 200, 256>}, {transform_indices = @transform_1, window_bounds = array<i64: 200, 4>}, {pipeline_mode = #tpu.pipeline_mode<synchronous>, transform_indices = @transform_2, window_bounds = array<i64: 256, 256>}, {pipeline_mode = #tpu.pipeline_mode<synchronous>, transform_indices = @transform_3, window_bounds = array<i64: 1, 256>}, {pipeline_mode = #tpu.pipeline_mode<synchronous>, transform_indices = @transform_4, window_bounds = array<i64: 256, 256>}, {pipeline_mode = #tpu.pipeline_mode<synchronous>, transform_indices = @transform_5, window_bounds = array<i64: 1, 256>}, {pipeline_mode = #tpu.pipeline_mode<synchronous>, transform_indices = @transform_6, window_bounds = array<i64: 256, 256>}, {pipeline_mode = #tpu.pipeline_mode<synchronous>, transform_indices = @transform_7, window_bounds = array<i64: 1, 256>}, {pipeline_mode = #tpu.pipeline_mode<synchronous>, transform_indices = @transform_8, window_bounds = array<i64: 4, 256>}, {pipeline_mode = #tpu.pipeline_mode<synchronous>, transform_indices = @transform_9, window_bounds = array<i64: 1, 256>}, {pipeline_mode = #tpu.pipeline_mode<synchronous>, transform_indices = @transform_10, window_bounds = array<i64: 1, 256>}, {transform_indices = @transform_11, window_bounds = array<i64: 1>}, {transform_indices = @transform_12, window_bounds = array<i64: 200, 1>}]} {
    %c0 = arith.constant 0 : index
    %c0_0 = arith.constant 0 : index
    %0 = vector.load %arg1[%c0, %c0_0] : memref<200x256xbf16, #tpu.memory_space<vmem>>, vector<200x256xbf16>
    %c0_1 = arith.constant 0 : index
    %c0_2 = arith.constant 0 : index
    %1 = vector.load %arg3[%c0_1, %c0_2] : memref<256x256xbf16, #tpu.memory_space<vmem>>, vector<256x256xbf16>
    %cst = arith.constant dense<0.000000e+00> : vector<200x256xf32>
    %2 = tpu.matmul %0, %1, %cst {dimension_numbers = #tpu.dot_dimension_numbers<[1], [0], [0], [1], [0, 0, 1, 1], [], []>} : vector<200x256xbf16>, vector<256x256xbf16>, vector<200x256xf32> -> vector<200x256xf32>
    %c0_3 = arith.constant 0 : index
    %c0_4 = arith.constant 0 : index
    %3 = vector.load %arg4[%c0_3, %c0_4] : memref<1x256xf32, #tpu.memory_space<vmem>>, vector<1x256xf32>
    %4 = vector.broadcast %3 : vector<1x256xf32> to vector<200x256xf32>
    %5 = arith.addf %2, %4 : vector<200x256xf32>
    %cst_5 = arith.constant 0.00999999977 : f32
    %6 = vector.broadcast %cst_5 : f32 to vector<200x256xf32>
    %7 = arith.mulf %6, %5 : vector<200x256xf32>
    %8 = arith.maximumf %5, %7 : vector<200x256xf32>
    %9 = arith.truncf %8 : vector<200x256xf32> to vector<200x256xbf16>
    %c0_6 = arith.constant 0 : index
    %c0_7 = arith.constant 0 : index
    %10 = vector.load %arg5[%c0_6, %c0_7] : memref<256x256xbf16, #tpu.memory_space<vmem>>, vector<256x256xbf16>
    %cst_8 = arith.constant dense<0.000000e+00> : vector<200x256xf32>
    %11 = tpu.matmul %9, %10, %cst_8 {dimension_numbers = #tpu.dot_dimension_numbers<[1], [0], [0], [1], [0, 0, 1, 1], [], []>} : vector<200x256xbf16>, vector<256x256xbf16>, vector<200x256xf32> -> vector<200x256xf32>
    %c0_9 = arith.constant 0 : index
    %c0_10 = arith.constant 0 : index
    %12 = vector.load %arg6[%c0_9, %c0_10] : memref<1x256xf32, #tpu.memory_space<vmem>>, vector<1x256xf32>
    %13 = vector.broadcast %12 : vector<1x256xf32> to vector<200x256xf32>
    %14 = arith.addf %11, %13 : vector<200x256xf32>
    %cst_11 = arith.constant 0.00999999977 : f32
    %15 = vector.broadcast %cst_11 : f32 to vector<200x256xf32>
    %16 = arith.mulf %15, %14 : vector<200x256xf32>
    %17 = arith.maximumf %14, %16 : vector<200x256xf32>
    %18 = arith.truncf %17 : vector<200x256xf32> to vector<200x256xbf16>
    %c0_12 = arith.constant 0 : index
    %c0_13 = arith.constant 0 : index
    %19 = vector.load %arg7[%c0_12, %c0_13] : memref<256x256xbf16, #tpu.memory_space<vmem>>, vector<256x256xbf16>
    %cst_14 = arith.constant dense<0.000000e+00> : vector<200x256xf32>
    %20 = tpu.matmul %18, %19, %cst_14 {dimension_numbers = #tpu.dot_dimension_numbers<[1], [0], [0], [1], [0, 0, 1, 1], [], []>} : vector<200x256xbf16>, vector<256x256xbf16>, vector<200x256xf32> -> vector<200x256xf32>
    %c0_15 = arith.constant 0 : index
    %c0_16 = arith.constant 0 : index
    %21 = vector.load %arg8[%c0_15, %c0_16] : memref<1x256xf32, #tpu.memory_space<vmem>>, vector<1x256xf32>
    %22 = vector.broadcast %21 : vector<1x256xf32> to vector<200x256xf32>
    %23 = arith.addf %20, %22 : vector<200x256xf32>
    %cst_17 = arith.constant 0.00999999977 : f32
    %24 = vector.broadcast %cst_17 : f32 to vector<200x256xf32>
    %25 = arith.mulf %24, %23 : vector<200x256xf32>
    %26 = arith.maximumf %23, %25 : vector<200x256xf32>
    %c0_18 = arith.constant 0 : index
    %c0_19 = arith.constant 0 : index
    %27 = vector.load %arg2[%c0_18, %c0_19] : memref<200x4xbf16, #tpu.memory_space<vmem>>, vector<200x4xbf16>
    %28 = arith.extf %27 : vector<200x4xbf16> to vector<200x4xf32>
    %c0_20 = arith.constant 0 : index
    %c0_21 = arith.constant 0 : index
    %29 = vector.load %arg9[%c0_20, %c0_21] : memref<4x256xbf16, #tpu.memory_space<vmem>>, vector<4x256xbf16>
    %30 = arith.extf %29 : vector<4x256xbf16> to vector<4x256xf32>
    %31 = vector.extract_strided_slice %28 {offsets = [0, 0], sizes = [200, 1], strides = [1, 1]} : vector<200x4xf32> to vector<200x1xf32>
    %32 = vector.extract_strided_slice %30 {offsets = [0, 0], sizes = [1, 256], strides = [1, 1]} : vector<4x256xf32> to vector<1x256xf32>
    %33 = vector.broadcast %31 : vector<200x1xf32> to vector<200x256xf32>
    %34 = vector.broadcast %32 : vector<1x256xf32> to vector<200x256xf32>
    %35 = arith.mulf %33, %34 : vector<200x256xf32>
    %36 = vector.extract_strided_slice %28 {offsets = [0, 1], sizes = [200, 1], strides = [1, 1]} : vector<200x4xf32> to vector<200x1xf32>
    %37 = vector.extract_strided_slice %30 {offsets = [1, 0], sizes = [1, 256], strides = [1, 1]} : vector<4x256xf32> to vector<1x256xf32>
    %38 = vector.broadcast %36 : vector<200x1xf32> to vector<200x256xf32>
    %39 = vector.broadcast %37 : vector<1x256xf32> to vector<200x256xf32>
    %40 = arith.mulf %38, %39 : vector<200x256xf32>
    %41 = arith.addf %35, %40 : vector<200x256xf32>
    %42 = vector.extract_strided_slice %28 {offsets = [0, 2], sizes = [200, 1], strides = [1, 1]} : vector<200x4xf32> to vector<200x1xf32>
    %43 = vector.extract_strided_slice %30 {offsets = [2, 0], sizes = [1, 256], strides = [1, 1]} : vector<4x256xf32> to vector<1x256xf32>
    %44 = vector.broadcast %42 : vector<200x1xf32> to vector<200x256xf32>
    %45 = vector.broadcast %43 : vector<1x256xf32> to vector<200x256xf32>
    %46 = arith.mulf %44, %45 : vector<200x256xf32>
    %47 = arith.addf %41, %46 : vector<200x256xf32>
    %48 = vector.extract_strided_slice %28 {offsets = [0, 3], sizes = [200, 1], strides = [1, 1]} : vector<200x4xf32> to vector<200x1xf32>
    %49 = vector.extract_strided_slice %30 {offsets = [3, 0], sizes = [1, 256], strides = [1, 1]} : vector<4x256xf32> to vector<1x256xf32>
    %50 = vector.broadcast %48 : vector<200x1xf32> to vector<200x256xf32>
    %51 = vector.broadcast %49 : vector<1x256xf32> to vector<200x256xf32>
    %52 = arith.mulf %50, %51 : vector<200x256xf32>
    %53 = arith.addf %47, %52 : vector<200x256xf32>
    %c0_22 = arith.constant 0 : index
    %c0_23 = arith.constant 0 : index
    %54 = vector.load %arg10[%c0_22, %c0_23] : memref<1x256xf32, #tpu.memory_space<vmem>>, vector<1x256xf32>
    %55 = vector.broadcast %54 : vector<1x256xf32> to vector<200x256xf32>
    %56 = arith.addf %53, %55 : vector<200x256xf32>
    %cst_24 = arith.constant 0.00999999977 : f32
    %57 = vector.broadcast %cst_24 : f32 to vector<200x256xf32>
    %58 = arith.mulf %57, %56 : vector<200x256xf32>
    %59 = arith.maximumf %56, %58 : vector<200x256xf32>
    %60 = arith.addf %26, %59 : vector<200x256xf32>
    %c0_25 = arith.constant 0 : index
    %c0_26 = arith.constant 0 : index
    %61 = vector.load %arg11[%c0_25, %c0_26] : memref<1x256xf32, #tpu.memory_space<vmem>>, vector<1x256xf32>
    %62 = vector.broadcast %61 : vector<1x256xf32> to vector<200x256xf32>
    %63 = arith.mulf %60, %62 : vector<200x256xf32>
    %cst_27 = arith.constant dense<0.000000e+00> : vector<200xf32>
    %64 = vector.multi_reduction <add>, %63, %cst_27 [1] : vector<200x256xf32> to vector<200xf32>
    %65 = vector.shape_cast %64 : vector<200xf32> to vector<200x1xf32>
    %c0_28 = arith.constant 0 : index
    %66 = memref.load %arg12[%c0_28] : memref<1xf32, #tpu.memory_space<smem>>
    %67 = vector.broadcast %66 : f32 to vector<200x1xf32>
    %68 = arith.addf %65, %67 : vector<200x1xf32>
    %c0_29 = arith.constant 0 : index
    %c0_30 = arith.constant 0 : index
    %69 = vector.load %arg13[%c0_29, %c0_30] : memref<200x1xf32, #tpu.memory_space<vmem>>, vector<200x1xf32>
    tpu.vector_store %arg13[%c0_29, %c0_30], %68 {strides = array<i32>} : memref<200x1xf32, #tpu.memory_space<vmem>>, vector<200x1xf32>,
    return
  }
  func.func @transform_0(%arg0: i32) -> (i32, i32) {
    %c0_i32 = arith.constant 0 : i32
    %c0_i32_0 = arith.constant 0 : i32
    return %arg0, %c0_i32 : i32, i32
  }
  func.func @transform_1(%arg0: i32) -> (i32, i32) {
    %c0_i32 = arith.constant 0 : i32
    %c0_i32_0 = arith.constant 0 : i32
    return %arg0, %c0_i32 : i32, i32
  }
  func.func @transform_2(%arg0: i32) -> (i32, i32) {
    %c0_i32 = arith.constant 0 : i32
    %c0_i32_0 = arith.constant 0 : i32
    %c0_i32_1 = arith.constant 0 : i32
    return %c0_i32, %c0_i32_0 : i32, i32
  }
  func.func @transform_3(%arg0: i32) -> (i32, i32) {
    %c0_i32 = arith.constant 0 : i32
    %c0_i32_0 = arith.constant 0 : i32
    %c0_i32_1 = arith.constant 0 : i32
    return %c0_i32, %c0_i32_0 : i32, i32
  }
  func.func @transform_4(%arg0: i32) -> (i32, i32) {
    %c0_i32 = arith.constant 0 : i32
    %c0_i32_0 = arith.constant 0 : i32
    %c0_i32_1 = arith.constant 0 : i32
    return %c0_i32, %c0_i32_0 : i32, i32
  }
  func.func @transform_5(%arg0: i32) -> (i32, i32) {
    %c0_i32 = arith.constant 0 : i32
    %c0_i32_0 = arith.constant 0 : i32
    %c0_i32_1 = arith.constant 0 : i32
    return %c0_i32, %c0_i32_0 : i32, i32
  }
  func.func @transform_6(%arg0: i32) -> (i32, i32) {
    %c0_i32 = arith.constant 0 : i32
    %c0_i32_0 = arith.constant 0 : i32
    %c0_i32_1 = arith.constant 0 : i32
    return %c0_i32, %c0_i32_0 : i32, i32
  }
  func.func @transform_7(%arg0: i32) -> (i32, i32) {
    %c0_i32 = arith.constant 0 : i32
    %c0_i32_0 = arith.constant 0 : i32
    %c0_i32_1 = arith.constant 0 : i32
    return %c0_i32, %c0_i32_0 : i32, i32
  }
  func.func @transform_8(%arg0: i32) -> (i32, i32) {
    %c0_i32 = arith.constant 0 : i32
    %c0_i32_0 = arith.constant 0 : i32
    %c0_i32_1 = arith.constant 0 : i32
    return %c0_i32, %c0_i32_0 : i32, i32
  }
  func.func @transform_9(%arg0: i32) -> (i32, i32) {
    %c0_i32 = arith.constant 0 : i32
    %c0_i32_0 = arith.constant 0 : i32
    %c0_i32_1 = arith.constant 0 : i32
    return %c0_i32, %c0_i32_0 : i32, i32
  }
  func.func @transform_10(%arg0: i32) -> (i32, i32) {
    %c0_i32 = arith.constant 0 : i32
    %c0_i32_0 = arith.constant 0 : i32
    %c0_i32_1 = arith.constant 0 : i32
    return %c0_i32, %c0_i32_0 : i32, i32
  }
  func.func @transform_11(%arg0: i32) -> i32 {
    %c0_i32 = arith.constant 0 : i32
    %c0_i32_0 = arith.constant 0 : i32
    return %c0_i32 : i32
  }
  func.func @transform_12(%arg0: i32) -> (i32, i32) {
    %c0_i32 = arith.constant 0 : i32
    %c0_i32_0 = arith.constant 0 : i32
    return %arg0, %c0_i32 : i32, i32
  }
}

</mosaic_0001>

<llo_original>
// kernel: critic_head.1
$region0: #{critic_head.1}
  #allocation0 [shape = 'u32[]', space=smem, size = 0x4, offset = 0x4, fixed_abs, tag = 'smem constant byte address 0x4 - core index']
  #allocation1 [shape = 'u32[144,128]{1,0:T(1,128)}', space=vmem, size = 0x12000, scoped, tag = 'internal scratch']
  #allocation2 [shape = 'f32[1]{0:T(128)S(6)}', space=smem, size = 0x200, scoped, tag = 'scoped memory for critic_head.1']
  %s0 = inlined_call_operand.hbm [shape: bf16[200,256], index: 0, kind: input, shape index: {}]
  %s1 = inlined_call_operand.vmem [shape: bf16[200,4], index: 1, kind: input, shape index: {}]
  %s2 = inlined_call_operand.hbm [shape: bf16[256,256], index: 2, kind: input, shape index: {}]
  %s3 = inlined_call_operand.vmem [shape: f32[1,256], index: 3, kind: input, shape index: {}]
  %s4 = inlined_call_operand.hbm [shape: bf16[256,256], index: 4, kind: input, shape index: {}]
  %s5 = inlined_call_operand.vmem [shape: f32[1,256], index: 5, kind: input, shape index: {}]
  %s6 = inlined_call_operand.hbm [shape: bf16[256,256], index: 6, kind: input, shape index: {}]
  %s7 = inlined_call_operand.vmem [shape: f32[1,256], index: 7, kind: input, shape index: {}]
  %s8 = inlined_call_operand.vmem [shape: bf16[4,256], index: 8, kind: input, shape index: {}]
  %s9 = inlined_call_operand.vmem [shape: f32[1,256], index: 9, kind: input, shape index: {}]
  %s10 = inlined_call_operand.vmem [shape: f32[1,256], index: 10, kind: input, shape index: {}]
  %s11 = inlined_call_operand.<no memory space> [shape: f32[1], index: 11, kind: input, shape index: {}]
  %s12 = inlined_call_operand.hbm [shape: f32[1,200], index: 12, kind: output, shape index: {}]
  %s13 = sld [smem:[#allocation0]]
  $region74: #{critic_head.1} parent=0
    _
  %s15 = ssub.s32 1, %s13
  %s16 = scalar_select 0, %s15, %s13
  %17 = sst [smem:[#allocation2]] %s11
  $region1: #{critic_head.1} parent=0
    #allocation3 [shape = 'u8[102400]{0}', space=vmem, size = 0x19000, scoped, tag = 'input window, operand 0, single buffered']
    #allocation4 [shape = 's32[1]{0}', space=sflag, size = 0x4, scoped, tag = 'scoped memory for critic_head.1']
    #allocation5 [shape = 's32[1]{0}', space=sflag, size = 0x4, scoped, tag = 'scoped memory for critic_head.1']
    #allocation6 [shape = 'u8[131072]{0}', space=vmem, size = 0x20000, scoped, tag = 'input window, operand 2, single buffered']
    #allocation7 [shape = 's32[1]{0}', space=sflag, size = 0x4, scoped, tag = 'scoped memory for critic_head.1']
    #allocation8 [shape = 'u8[131072]{0}', space=vmem, size = 0x20000, scoped, tag = 'input window, operand 4, single buffered']
    #allocation9 [shape = 'u8[131072]{0}', space=vmem, size = 0x20000, scoped, tag = 'input window, operand 6, single buffered']
    #allocation10 [shape = 's32[1]{0}', space=sflag, size = 0x4, scoped, tag = 'scoped memory for critic_head.1']
    #allocation11 [shape = 'u8[1024]{0}', space=vmem, size = 0x400, scoped, tag = 'output window, operand 0, single buffered']
    %18 = vsyncpa [#allocation4], 0
    %19 = vsyncpa [#allocation7], 0
    %20 = vsyncpa [#allocation10], 0
    %21 = vsyncpa [#allocation5], 0
    // Predicated region
    $region2: #{critic_head.1} parent=1 // pred_check
      _
    $region3: #{critic_head.1} parent=1 // pred_check_branch
      %23 = sbr.rel (0) target = $region5
    $region4: #{critic_head.1} parent=1 // pred_region
      %s25 = ssub.s32 3200, 3200
      %26 = vsyncadd [#allocation4], %s25
      %s27 = sshll.u32 [#allocation3], 4
      %s28 = int_to_ptr.vmem [resolvable:$true] %s27
      %33 = dma.hbm_to_vmem [thread:$0]  %s0, 3200, %s28, [#allocation4], 128, 128, 8
    $region5: #{critic_head.1} parent=1 // pred_fallthru
      _
    // Predicated region
    $region6: #{critic_head.1} parent=1 // pred_check
      _
    $region7: #{critic_head.1} parent=1 // pred_check_branch
      %35 = sbr.rel (0) target = $region9
    $region8: #{critic_head.1} parent=1 // pred_region
      _
    $region9: #{critic_head.1} parent=1 // pred_fallthru
      _
    // Predicated region
    $region10: #{critic_head.1} parent=1 // pred_check
      _
    $region11: #{critic_head.1} parent=1 // pred_check_branch
      %37 = sbr.rel (0) target = $region13
    $region12: #{critic_head.1} parent=1 // pred_region
      %s39 = ssub.s32 4096, 4096
      %40 = vsyncadd [#allocation7], %s39
      %s41 = sshll.u32 [#allocation6], 4
      %s42 = int_to_ptr.vmem [resolvable:$true] %s41
      %47 = dma.hbm_to_vmem [thread:$0]  %s2, 4096, %s42, [#allocation7], 128, 128, 8
    $region13: #{critic_head.1} parent=1 // pred_fallthru
      _
    // Predicated region
    $region14: #{critic_head.1} parent=1 // pred_check
      _
    $region15: #{critic_head.1} parent=1 // pred_check_branch
      %49 = sbr.rel (0) target = $region17
    $region16: #{critic_head.1} parent=1 // pred_region
      _
    $region17: #{critic_head.1} parent=1 // pred_fallthru
      _
    // Predicated region
    $region18: #{critic_head.1} parent=1 // pred_check
      _
    $region19: #{critic_head.1} parent=1 // pred_check_branch
      %51 = sbr.rel (0) target = $region21
    $region20: #{critic_head.1} parent=1 // pred_region
      %s53 = ssub.s32 4096, 4096
      %54 = vsyncadd [#allocation7], %s53
      %s55 = sshll.u32 [#allocation8], 4
      %s56 = int_to_ptr.vmem [resolvable:$true] %s55
      %61 = dma.hbm_to_vmem [thread:$0]  %s4, 4096, %s56, [#allocation7], 128, 128, 8
    $region21: #{critic_head.1} parent=1 // pred_fallthru
      _
    // Predicated region
    $region22: #{critic_head.1} parent=1 // pred_check
      _
    $region23: #{critic_head.1} parent=1 // pred_check_branch
      %63 = sbr.rel (0) target = $region25
    $region24: #{critic_head.1} parent=1 // pred_region
      _
    $region25: #{critic_head.1} parent=1 // pred_fallthru
      _
    // Predicated region
    $region26: #{critic_head.1} parent=1 // pred_check
      _
    $region27: #{critic_head.1} parent=1 // pred_check_branch
      %65 = sbr.rel (0) target = $region29
    $region28: #{critic_head.1} parent=1 // pred_region
      %s67 = ssub.s32 4096, 4096
      %68 = vsyncadd [#allocation10], %s67
      %s69 = sshll.u32 [#allocation9], 4
      %s70 = int_to_ptr.vmem [resolvable:$true] %s69
      %75 = dma.hbm_to_vmem [thread:$0]  %s6, 4096, %s70, [#allocation10], 128, 128, 8
    $region29: #{critic_head.1} parent=1 // pred_fallthru
      _
    // Predicated region
    $region30: #{critic_head.1} parent=1 // pred_check
      _
    $region31: #{critic_head.1} parent=1 // pred_check_branch
      %77 = sbr.rel (0) target = $region33
    $region32: #{critic_head.1} parent=1 // pred_region
      _
    $region33: #{critic_head.1} parent=1 // pred_fallthru
      _
    // Predicated region
    $region34: #{critic_head.1} parent=1 // pred_check
      _
    $region35: #{critic_head.1} parent=1 // pred_check_branch
      %79 = sbr.rel (0) target = $region37
    $region36: #{critic_head.1} parent=1 // pred_region
      _
    $region37: #{critic_head.1} parent=1 // pred_fallthru
      _
    // Predicated region
    $region38: #{critic_head.1} parent=1 // pred_check
      _
    $region39: #{critic_head.1} parent=1 // pred_check_branch
      %81 = sbr.rel (0) target = $region41
    $region40: #{critic_head.1} parent=1 // pred_region
      _
    $region41: #{critic_head.1} parent=1 // pred_fallthru
      _
    // Predicated region
    $region42: #{critic_head.1} parent=1 // pred_check
      _
    $region43: #{critic_head.1} parent=1 // pred_check_branch
      %83 = sbr.rel (0) target = $region45
    $region44: #{critic_head.1} parent=1 // pred_region
      _
    $region45: #{critic_head.1} parent=1 // pred_fallthru
      _
    // Predicated region
    $region46: #{critic_head.1} parent=1 // pred_check
      _
    $region47: #{critic_head.1} parent=1 // pred_check_branch
      %85 = sbr.rel (0) target = $region49
    $region48: #{critic_head.1} parent=1 // pred_region
      _
    $region49: #{critic_head.1} parent=1 // pred_fallthru
      _
    // Predicated region
    $region50: #{critic_head.1} parent=1 // pred_check
      _
    $region51: #{critic_head.1} parent=1 // pred_check_branch
      %87 = sbr.rel (0) target = $region53
    $region52: #{critic_head.1} parent=1 // pred_region
      %88 = dma.done [#allocation4], 3200
    $region53: #{critic_head.1} parent=1 // pred_fallthru
      _
    // Predicated region
    $region54: #{critic_head.1} parent=1 // pred_check
      _
    $region55: #{critic_head.1} parent=1 // pred_check_branch
      %90 = sbr.rel (0) target = $region57
    $region56: #{critic_head.1} parent=1 // pred_region
      %91 = dma.done [#allocation7], 4096
    $region57: #{critic_head.1} parent=1 // pred_fallthru
      _
    // Predicated region
    $region58: #{critic_head.1} parent=1 // pred_check
      _
    $region59: #{critic_head.1} parent=1 // pred_check_branch
      %93 = sbr.rel (0) target = $region61
    $region60: #{critic_head.1} parent=1 // pred_region
      %94 = dma.done [#allocation7], 4096
    $region61: #{critic_head.1} parent=1 // pred_fallthru
      _
    // Predicated region
    $region62: #{critic_head.1} parent=1 // pred_check
      _
    $region63: #{critic_head.1} parent=1 // pred_check_branch
      %96 = sbr.rel (0) target = $region65
    $region64: #{critic_head.1} parent=1 // pred_region
      %97 = dma.done [#allocation10], 4096
    $region65: #{critic_head.1} parent=1 // pred_fallthru
      _
    %v98 = vld [vmem:[#allocation3] sm:$0xff]
    %v99 = vld [vmem:[#allocation3 + $0x8] sm:$0xff]
    %v100 = vld [vmem:[#allocation3 + $0x10] sm:$0xff]
    %v101 = vld [vmem:[#allocation3 + $0x18] sm:$0xff]
    %v102 = vld [vmem:[#allocation3 + $0x20] sm:$0xff]
    %v103 = vld [vmem:[#allocation3 + $0x28] sm:$0xff]
    %v104 = vld [vmem:[#allocation3 + $0x30] sm:$0xff]
    %v105 = vld [vmem:[#allocation3 + $0x38] sm:$0xff]
    %v106 = vld [vmem:[#allocation3 + $0x40] sm:$0xff]
    %v107 = vld [vmem:[#allocation3 + $0x48] sm:$0xff]
    %v108 = vld [vmem:[#allocation3 + $0x50] sm:$0xff]
    %v109 = vld [vmem:[#allocation3 + $0x58] sm:$0xff]
    %v110 = vld [vmem:[#allocation3 + $0x60] sm:$0xff]
    %v111 = vld [vmem:[#allocation3 + $0x68] sm:$0xff]
    %v112 = vld [vmem:[#allocation3 + $0x70] sm:$0xff]
    %v113 = vld [vmem:[#allocation3 + $0x78] sm:$0xff]
    %v114 = vld [vmem:[#allocation3 + $0x80] sm:$0xff]
    %v115 = vld [vmem:[#allocation3 + $0x88] sm:$0xff]
    %v116 = vld [vmem:[#allocation3 + $0x90] sm:$0xff]
    %v117 = vld [vmem:[#allocation3 + $0x98] sm:$0xff]
    %v118 = vld [vmem:[#allocation3 + $0xa0] sm:$0xff]
    %v119 = vld [vmem:[#allocation3 + $0xa8] sm:$0xff]
    %v120 = vld [vmem:[#allocation3 + $0xb0] sm:$0xff]
    %v121 = vld [vmem:[#allocation3 + $0xb8] sm:$0xff]
    %v122 = vld [vmem:[#allocation3 + $0xc0] sm:$0xff]
    %v123 = vld [vmem:[#allocation6] sm:$0xff]
    %v124 = vld [vmem:[#allocation6 + $0x8] sm:$0xff]
    %v125 = vld [vmem:[#allocation6 + $0x10] sm:$0xff]
    %v126 = vld [vmem:[#allocation6 + $0x18] sm:$0xff]
    %v127 = vld [vmem:[#allocation6 + $0x20] sm:$0xff]
    %v128 = vld [vmem:[#allocation6 + $0x28] sm:$0xff]
    %v129 = vld [vmem:[#allocation6 + $0x30] sm:$0xff]
    %v130 = vld [vmem:[#allocation6 + $0x38] sm:$0xff]
    %v131 = vld [vmem:[#allocation6 + $0x40] sm:$0xff]
    %v132 = vld [vmem:[#allocation6 + $0x48] sm:$0xff]
    %v133 = vld [vmem:[#allocation6 + $0x50] sm:$0xff]
    %v134 = vld [vmem:[#allocation6 + $0x58] sm:$0xff]
    %v135 = vld [vmem:[#allocation6 + $0x60] sm:$0xff]
    %v136 = vld [vmem:[#allocation6 + $0x68] sm:$0xff]
    %v137 = vld [vmem:[#allocation6 + $0x70] sm:$0xff]
    %v138 = vld [vmem:[#allocation6 + $0x78] sm:$0xff]
    %v139 = vld [vmem:[#allocation6 + $0x80] sm:$0xff]
    %v140 = vld [vmem:[#allocation6 + $0x88] sm:$0xff]
    %v141 = vld [vmem:[#allocation6 + $0x90] sm:$0xff]
    %v142 = vld [vmem:[#allocation6 + $0x98] sm:$0xff]
    %v143 = vld [vmem:[#allocation6 + $0xa0] sm:$0xff]
    %v144 = vld [vmem:[#allocation6 + $0xa8] sm:$0xff]
    %v145 = vld [vmem:[#allocation6 + $0xb0] sm:$0xff]
    %v146 = vld [vmem:[#allocation6 + $0xb8] sm:$0xff]
    %v147 = vld [vmem:[#allocation6 + $0xc0] sm:$0xff]
    %v148 = vld [vmem:[#allocation6 + $0xc8] sm:$0xff]
    %v149 = vld [vmem:[#allocation6 + $0xd0] sm:$0xff]
    %v150 = vld [vmem:[#allocation6 + $0xd8] sm:$0xff]
    %v151 = vld [vmem:[#allocation6 + $0xe0] sm:$0xff]
    %v152 = vld [vmem:[#allocation6 + $0xe8] sm:$0xff]
    %v153 = vld [vmem:[#allocation6 + $0xf0] sm:$0xff]
    %v154 = vld [vmem:[#allocation6 + $0xf8] sm:$0xff]
    %v155 = vld [vmem:[%s3] sm:$0x3]
    %v157 = vlaneseq
    %v158 = vshrl.u32 %v157, 7
    %v159 = vsub.s32 0, %v158
    %v160 = vrot.slane %v155, %v159
    %v161 = vlaneseq
    %v162 = vshrl.u32 %v161, 7
    %v163 = vsub.s32 1, %v162
    %v164 = vrot.slane %v155, %v163
    %v192 = vunpack.c.l.b16 %v98
    %v193 = vunpack.c.h.b16 %v98
    %v194 = vunpack.c.l.b16 %v99
    %v195 = vunpack.c.h.b16 %v99
    %v196 = vunpack.c.l.b16 %v100
    %v197 = vunpack.c.h.b16 %v100
    %v198 = vunpack.c.l.b16 %v101
    %v199 = vunpack.c.h.b16 %v101
    %v200 = vunpack.c.l.b16 %v102
    %v201 = vunpack.c.h.b16 %v102
    %v202 = vunpack.c.l.b16 %v103
    %v203 = vunpack.c.h.b16 %v103
    %v204 = vunpack.c.l.b16 %v104
    %v205 = vunpack.c.h.b16 %v104
    %v206 = vunpack.c.l.b16 %v105
    %v207 = vunpack.c.h.b16 %v105
    %v208 = vunpack.c.l.b16 %v106
    %v209 = vunpack.c.h.b16 %v106
    %v210 = vunpack.c.l.b16 %v107
    %v211 = vunpack.c.h.b16 %v107
    %v212 = vunpack.c.l.b16 %v108
    %v213 = vunpack.c.h.b16 %v108
    %v214 = vunpack.c.l.b16 %v109
    %v215 = vunpack.c.h.b16 %v109
    %v216 = vunpack.c.l.b16 %v110
    %v217 = vunpack.c.h.b16 %v110
    %v218 = vunpack.c.l.b16 %v111
    %v219 = vunpack.c.h.b16 %v111
    %v220 = vunpack.c.l.b16 %v112
    %v221 = vunpack.c.h.b16 %v112
    %v222 = vunpack.c.l.b16 %v113
    %v223 = vunpack.c.h.b16 %v113
    %v224 = vunpack.c.l.b16 %v114
    %v225 = vunpack.c.h.b16 %v114
    %v226 = vunpack.c.l.b16 %v115
    %v227 = vunpack.c.h.b16 %v115
    %v228 = vunpack.c.l.b16 %v116
    %v229 = vunpack.c.h.b16 %v116
    %v230 = vunpack.c.l.b16 %v117
    %v231 = vunpack.c.h.b16 %v117
    %v232 = vunpack.c.l.b16 %v118
    %v233 = vunpack.c.h.b16 %v118
    %v234 = vunpack.c.l.b16 %v119
    %v235 = vunpack.c.h.b16 %v119
    %v236 = vunpack.c.l.b16 %v120
    %v237 = vunpack.c.h.b16 %v120
    %v238 = vunpack.c.l.b16 %v121
    %v239 = vunpack.c.h.b16 %v121
    %v240 = vunpack.c.l.b16 %v122
    %v241 = vunpack.c.h.b16 %v122
    %v242 = vpack.c.b16 %v194, %v192
    %v243 = vpack.c.b16 %v195, %v193
    %v244 = vpack.c.b16 %v198, %v196
    %v245 = vpack.c.b16 %v199, %v197
    %v246 = vpack.c.b16 %v202, %v200
    %v247 = vpack.c.b16 %v203, %v201
    %v248 = vpack.c.b16 %v206, %v204
    %v249 = vpack.c.b16 %v207, %v205
    %v250 = vpack.c.b16 %v210, %v208
    %v251 = vpack.c.b16 %v211, %v209
    %v252 = vpack.c.b16 %v214, %v212
    %v253 = vpack.c.b16 %v215, %v213
    %v254 = vpack.c.b16 %v218, %v216
    %v255 = vpack.c.b16 %v219, %v217
    %v256 = vpack.c.b16 %v222, %v220
    %v257 = vpack.c.b16 %v223, %v221
    %v258 = vpack.c.b16 %v226, %v224
    %v259 = vpack.c.b16 %v227, %v225
    %v260 = vpack.c.b16 %v230, %v228
    %v261 = vpack.c.b16 %v231, %v229
    %v262 = vpack.c.b16 %v234, %v232
    %v263 = vpack.c.b16 %v235, %v233
    %v264 = vpack.c.b16 %v238, %v236
    %v265 = vpack.c.b16 %v239, %v237
    %v266 = vpack.c.b16 %v240, %v240
    %v267 = vpack.c.b16 %v241, %v241
    %v326 = vunpack.c.l.b16 %v123
    %v327 = vunpack.c.h.b16 %v123
    %v328 = vunpack.c.l.b16 %v124
    %v329 = vunpack.c.h.b16 %v124
    %v330 = vunpack.c.l.b16 %v125
    %v331 = vunpack.c.h.b16 %v125
    %v332 = vunpack.c.l.b16 %v126
    %v333 = vunpack.c.h.b16 %v126
    %v334 = vunpack.c.l.b16 %v127
    %v335 = vunpack.c.h.b16 %v127
    %v336 = vunpack.c.l.b16 %v128
    %v337 = vunpack.c.h.b16 %v128
    %v338 = vunpack.c.l.b16 %v129
    %v339 = vunpack.c.h.b16 %v129
    %v340 = vunpack.c.l.b16 %v130
    %v341 = vunpack.c.h.b16 %v130
    %v342 = vunpack.c.l.b16 %v131
    %v343 = vunpack.c.h.b16 %v131
    %v344 = vunpack.c.l.b16 %v132
    %v345 = vunpack.c.h.b16 %v132
    %v346 = vunpack.c.l.b16 %v133
    %v347 = vunpack.c.h.b16 %v133
    %v348 = vunpack.c.l.b16 %v134
    %v349 = vunpack.c.h.b16 %v134
    %v350 = vunpack.c.l.b16 %v135
    %v351 = vunpack.c.h.b16 %v135
    %v352 = vunpack.c.l.b16 %v136
    %v353 = vunpack.c.h.b16 %v136
    %v354 = vunpack.c.l.b16 %v137
    %v355 = vunpack.c.h.b16 %v137
    %v356 = vunpack.c.l.b16 %v138
    %v357 = vunpack.c.h.b16 %v138
    %v358 = vunpack.c.l.b16 %v139
    %v359 = vunpack.c.h.b16 %v139
    %v360 = vunpack.c.l.b16 %v140
    %v361 = vunpack.c.h.b16 %v140
    %v362 = vunpack.c.l.b16 %v141
    %v363 = vunpack.c.h.b16 %v141
    %v364 = vunpack.c.l.b16 %v142
    %v365 = vunpack.c.h.b16 %v142
    %v366 = vunpack.c.l.b16 %v143
    %v367 = vunpack.c.h.b16 %v143
    %v368 = vunpack.c.l.b16 %v144
    %v369 = vunpack.c.h.b16 %v144
    %v370 = vunpack.c.l.b16 %v145
    %v371 = vunpack.c.h.b16 %v145
    %v372 = vunpack.c.l.b16 %v146
    %v373 = vunpack.c.h.b16 %v146
    %v374 = vunpack.c.l.b16 %v147
    %v375 = vunpack.c.h.b16 %v147
    %v376 = vunpack.c.l.b16 %v148
    %v377 = vunpack.c.h.b16 %v148
    %v378 = vunpack.c.l.b16 %v149
    %v379 = vunpack.c.h.b16 %v149
    %v380 = vunpack.c.l.b16 %v150
    %v381 = vunpack.c.h.b16 %v150
    %v382 = vunpack.c.l.b16 %v151
    %v383 = vunpack.c.h.b16 %v151
    %v384 = vunpack.c.l.b16 %v152
    %v385 = vunpack.c.h.b16 %v152
    %v386 = vunpack.c.l.b16 %v153
    %v387 = vunpack.c.h.b16 %v153
    %v388 = vunpack.c.l.b16 %v154
    %v389 = vunpack.c.h.b16 %v154
    %v390 = vpack.c.b16 %v328, %v326
    %v391 = vpack.c.b16 %v329, %v327
    %v392 = vpack.c.b16 %v332, %v330
    %v393 = vpack.c.b16 %v333, %v331
    %v394 = vpack.c.b16 %v336, %v334
    %v395 = vpack.c.b16 %v337, %v335
    %v396 = vpack.c.b16 %v340, %v338
    %v397 = vpack.c.b16 %v341, %v339
    %v398 = vpack.c.b16 %v344, %v342
    %v399 = vpack.c.b16 %v345, %v343
    %v400 = vpack.c.b16 %v348, %v346
    %v401 = vpack.c.b16 %v349, %v347
    %v402 = vpack.c.b16 %v352, %v350
    %v403 = vpack.c.b16 %v353, %v351
    %v404 = vpack.c.b16 %v356, %v354
    %v405 = vpack.c.b16 %v357, %v355
    %v406 = vpack.c.b16 %v360, %v358
    %v407 = vpack.c.b16 %v361, %v359
    %v408 = vpack.c.b16 %v364, %v362
    %v409 = vpack.c.b16 %v365, %v363
    %v410 = vpack.c.b16 %v368, %v366
    %v411 = vpack.c.b16 %v369, %v367
    %v412 = vpack.c.b16 %v372, %v370
    %v413 = vpack.c.b16 %v373, %v371
    %v414 = vpack.c.b16 %v376, %v374
    %v415 = vpack.c.b16 %v377, %v375
    %v416 = vpack.c.b16 %v380, %v378
    %v417 = vpack.c.b16 %v381, %v379
    %v418 = vpack.c.b16 %v384, %v382
    %v419 = vpack.c.b16 %v385, %v383
    %v420 = vpack.c.b16 %v388, %v386
    %v421 = vpack.c.b16 %v389, %v387
    %454 = vmatprep.subr.bf16.mxu0 %v391
    %455 = vmatpush1.bf16.msra.mxu0 %v390
    %456 = vmatprep.subr.bf16.mxu0 %v393
    %457 = vmatpush1.bf16.msra.mxu0 %v392
    %458 = vmatprep.subr.bf16.mxu0 %v395
    %459 = vmatpush1.bf16.msra.mxu0 %v394
    %460 = vmatprep.subr.bf16.mxu0 %v397
    %461 = vmatpush1.bf16.msra.mxu0 %v396
    %462 = vmatprep.subr.bf16.mxu0 %v399
    %463 = vmatpush1.bf16.msra.mxu0 %v398
    %464 = vmatprep.subr.bf16.mxu0 %v401
    %465 = vmatpush1.bf16.msra.mxu0 %v400
    %466 = vmatprep.subr.bf16.mxu0 %v403
    %467 = vmatpush1.bf16.msra.mxu0 %v402
    %468 = vmatprep.subr.bf16.mxu0 %v405
    %469 = vmatpush1.bf16.msra.mxu0 %v404
    %470 = vmatprep.subr.bf16.mxu0 %v407
    %471 = vmatpush1.bf16.msra.mxu0 %v406
    %472 = vmatprep.subr.bf16.mxu0 %v409
    %473 = vmatpush1.bf16.msra.mxu0 %v408
    %474 = vmatprep.subr.bf16.mxu0 %v411
    %475 = vmatpush1.bf16.msra.mxu0 %v410
    %476 = vmatprep.subr.bf16.mxu0 %v413
    %477 = vmatpush1.bf16.msra.mxu0 %v412
    %478 = vmatprep.subr.bf16.mxu0 %v415
    %479 = vmatpush1.bf16.msra.mxu0 %v414
    %480 = vmatprep.subr.bf16.mxu0 %v417
    %481 = vmatpush1.bf16.msra.mxu0 %v416
    %482 = vmatprep.subr.bf16.mxu0 %v419
    %483 = vmatpush1.bf16.msra.mxu0 %v418
    %484 = vmatprep.subr.bf16.mxu0 %v421
    %485 = vmatpush1.bf16.msra.mxu0 %v420
    %486 = vmatprep.mubr.bf16.mxu0 %v243
    %487 = vmatmul.mubr.bf16.gmra.mrb[0].mxu0 %v242
    %v488 = vpop.f32.mrb[0].mxu0
    %v489 = vadd.f32 %v160, %v488
    %v490 = vpop.f32.mrb[0].mxu0
    %v491 = vadd.f32 %v164, %v490
    %v492 = vpop.f32.mrb[0].mxu0
    %v493 = vadd.f32 %v160, %v492
    %v494 = vpop.f32.mrb[0].mxu0
    %v495 = vadd.f32 %v164, %v494
    %496 = vmatprep.mubr.bf16.mxu0 %v245
    %497 = vmatmul.mubr.bf16.gmra.mrb[0].mxu0 %v244
    %v498 = vpop.f32.mrb[0].mxu0
    %v499 = vadd.f32 %v160, %v498
    %v500 = vpop.f32.mrb[0].mxu0
    %v501 = vadd.f32 %v164, %v500
    %v502 = vpop.f32.mrb[0].mxu0
    %v503 = vadd.f32 %v160, %v502
    %v504 = vpop.f32.mrb[0].mxu0
    %v505 = vadd.f32 %v164, %v504
    %506 = vmatprep.mubr.bf16.mxu0 %v247
    %507 = vmatmul.mubr.bf16.gmra.mrb[0].mxu0 %v246
    %v508 = vpop.f32.mrb[0].mxu0
    %v509 = vadd.f32 %v160, %v508
    %v510 = vpop.f32.mrb[0].mxu0
    %v511 = vadd.f32 %v164, %v510
    %v512 = vpop.f32.mrb[0].mxu0
    %v513 = vadd.f32 %v160, %v512
    %v514 = vpop.f32.mrb[0].mxu0
    %v515 = vadd.f32 %v164, %v514
    %516 = vmatprep.mubr.bf16.mxu0 %v249
    %517 = vmatmul.mubr.bf16.gmra.mrb[0].mxu0 %v248
    %v518 = vpop.f32.mrb[0].mxu0
    %v519 = vadd.f32 %v160, %v518
    %v520 = vpop.f32.mrb[0].mxu0
    %v521 = vadd.f32 %v164, %v520
    %v522 = vpop.f32.mrb[0].mxu0
    %v523 = vadd.f32 %v160, %v522
    %v524 = vpop.f32.mrb[0].mxu0
    %v525 = vadd.f32 %v164, %v524
    %526 = vmatprep.mubr.bf16.mxu0 %v251
    %527 = vmatmul.mubr.bf16.gmra.mrb[0].mxu0 %v250
    %v528 = vpop.f32.mrb[0].mxu0
    %v529 = vadd.f32 %v160, %v528
    %v530 = vpop.f32.mrb[0].mxu0
    %v531 = vadd.f32 %v164, %v530
    %v532 = vpop.f32.mrb[0].mxu0
    %v533 = vadd.f32 %v160, %v532
    %v534 = vpop.f32.mrb[0].mxu0
    %v535 = vadd.f32 %v164, %v534
    %536 = vmatprep.mubr.bf16.mxu0 %v253
    %537 = vmatmul.mubr.bf16.gmra.mrb[0].mxu0 %v252
    %v538 = vpop.f32.mrb[0].mxu0
    %v539 = vadd.f32 %v160, %v538
    %v540 = vpop.f32.mrb[0].mxu0
    %v541 = vadd.f32 %v164, %v540
    %v542 = vpop.f32.mrb[0].mxu0
    %v543 = vadd.f32 %v160, %v542
    %v544 = vpop.f32.mrb[0].mxu0
    %v545 = vadd.f32 %v164, %v544
    %546 = vmatprep.mubr.bf16.mxu0 %v255
    %547 = vmatmul.mubr.bf16.gmra.mrb[0].mxu0 %v254
    %v548 = vpop.f32.mrb[0].mxu0
    %v549 = vadd.f32 %v160, %v548
    %v550 = vpop.f32.mrb[0].mxu0
    %v551 = vadd.f32 %v164, %v550
    %v552 = vpop.f32.mrb[0].mxu0
    %v553 = vadd.f32 %v160, %v552
    %v554 = vpop.f32.mrb[0].mxu0
    %v555 = vadd.f32 %v164, %v554
    %556 = vmatprep.mubr.bf16.mxu0 %v257
    %557 = vmatmul.mubr.bf16.gmra.mrb[0].mxu0 %v256
    %v558 = vpop.f32.mrb[0].mxu0
    %v559 = vadd.f32 %v160, %v558
    %v560 = vpop.f32.mrb[0].mxu0
    %v561 = vadd.f32 %v164, %v560
    %v562 = vpop.f32.mrb[0].mxu0
    %v563 = vadd.f32 %v160, %v562
    %v564 = vpop.f32.mrb[0].mxu0
    %v565 = vadd.f32 %v164, %v564
    %566 = vmatprep.mubr.bf16.mxu0 %v259
    %567 = vmatmul.mubr.bf16.gmra.mrb[0].mxu0 %v258
    %v568 = vpop.f32.mrb[0].mxu0
    %v569 = vadd.f32 %v160, %v568
    %v570 = vpop.f32.mrb[0].mxu0
    %v571 = vadd.f32 %v164, %v570
    %v572 = vpop.f32.mrb[0].mxu0
    %v573 = vadd.f32 %v160, %v572
    %v574 = vpop.f32.mrb[0].mxu0
    %v575 = vadd.f32 %v164, %v574
    %576 = vmatprep.mubr.bf16.mxu0 %v261
    %577 = vmatmul.mubr.bf16.gmra.mrb[0].mxu0 %v260
    %v578 = vpop.f32.mrb[0].mxu0
    %v579 = vadd.f32 %v160, %v578
    %v580 = vpop.f32.mrb[0].mxu0
    %v581 = vadd.f32 %v164, %v580
    %v582 = vpop.f32.mrb[0].mxu0
    %v583 = vadd.f32 %v160, %v582
    %v584 = vpop.f32.mrb[0].mxu0
    %v585 = vadd.f32 %v164, %v584
    %586 = vmatprep.mubr.bf16.mxu0 %v263
    %587 = vmatmul.mubr.bf16.gmra.mrb[0].mxu0 %v262
    %v588 = vpop.f32.mrb[0].mxu0
    %v589 = vadd.f32 %v160, %v588
    %v590 = vpop.f32.mrb[0].mxu0
    %v591 = vadd.f32 %v164, %v590
    %v592 = vpop.f32.mrb[0].mxu0
    %v593 = vadd.f32 %v160, %v592
    %v594 = vpop.f32.mrb[0].mxu0
    %v595 = vadd.f32 %v164, %v594
    %596 = vmatprep.mubr.bf16.mxu0 %v265
    %597 = vmatmul.mubr.bf16.gmra.mrb[0].mxu0 %v264
    %v598 = vpop.f32.mrb[0].mxu0
    %v599 = vadd.f32 %v160, %v598
    %v600 = vpop.f32.mrb[0].mxu0
    %v601 = vadd.f32 %v164, %v600
    %v602 = vpop.f32.mrb[0].mxu0
    %v603 = vadd.f32 %v160, %v602
    %v604 = vpop.f32.mrb[0].mxu0
    %v605 = vadd.f32 %v164, %v604
    %606 = vmatprep.mubr.bf16.mxu0 %v267
    %607 = vmatmul.mubr.bf16.gmra.mrb[0].mxu0 %v266
    %v608 = vpop.f32.mrb[0].mxu0
    %v609 = vadd.f32 %v160, %v608
    %v610 = vpop.f32.mrb[0].mxu0
    %v611 = vadd.f32 %v164, %v610
    %v612 = vpop.f32.mrb[0].mxu0
    %v613 = vpop.f32.mrb[0].mxu0
    %614 = vdwg.mxu0
    %v615 = vmul.f32 %v489, 0.01
    %v616 = vmul.f32 %v491, 0.01
    %v617 = vmul.f32 %v493, 0.01
    %v618 = vmul.f32 %v495, 0.01
    %v619 = vmul.f32 %v499, 0.01
    %v620 = vmul.f32 %v501, 0.01
    %v621 = vmul.f32 %v503, 0.01
    %v622 = vmul.f32 %v505, 0.01
    %v623 = vmul.f32 %v509, 0.01
    %v624 = vmul.f32 %v511, 0.01
    %v625 = vmul.f32 %v513, 0.01
    %v626 = vmul.f32 %v515, 0.01
    %v627 = vmul.f32 %v519, 0.01
    %v628 = vmul.f32 %v521, 0.01
    %v629 = vmul.f32 %v523, 0.01
    %v630 = vmul.f32 %v525, 0.01
    %v631 = vmul.f32 %v529, 0.01
    %v632 = vmul.f32 %v531, 0.01
    %v633 = vmul.f32 %v533, 0.01
    %v634 = vmul.f32 %v535, 0.01
    %v635 = vmul.f32 %v539, 0.01
    %v636 = vmul.f32 %v541, 0.01
    %v637 = vmul.f32 %v543, 0.01
    %v638 = vmul.f32 %v545, 0.01
    %v639 = vmul.f32 %v549, 0.01
    %v640 = vmul.f32 %v551, 0.01
    %v641 = vmul.f32 %v553, 0.01
    %v642 = vmul.f32 %v555, 0.01
    %v643 = vmul.f32 %v559, 0.01
    %v644 = vmul.f32 %v561, 0.01
    %v645 = vmul.f32 %v563, 0.01
    %v646 = vmul.f32 %v565, 0.01
    %v647 = vmul.f32 %v569, 0.01
    %v648 = vmul.f32 %v571, 0.01
    %v649 = vmul.f32 %v573, 0.01
    %v650 = vmul.f32 %v575, 0.01
    %v651 = vmul.f32 %v579, 0.01
    %v652 = vmul.f32 %v581, 0.01
    %v653 = vmul.f32 %v583, 0.01
    %v654 = vmul.f32 %v585, 0.01
    %v655 = vmul.f32 %v589, 0.01
    %v656 = vmul.f32 %v591, 0.01
    %v657 = vmul.f32 %v593, 0.01
    %v658 = vmul.f32 %v595, 0.01
    %v659 = vmul.f32 %v599, 0.01
    %v660 = vmul.f32 %v601, 0.01
    %v661 = vmul.f32 %v603, 0.01
    %v662 = vmul.f32 %v605, 0.01
    %v663 = vmul.f32 %v609, 0.01
    %v664 = vmul.f32 %v611, 0.01
    %v665 = vmax.f32 %v489, %v615
    %v666 = vmax.f32 %v491, %v616
    %v667 = vmax.f32 %v493, %v617
    %v668 = vmax.f32 %v495, %v618
    %v669 = vmax.f32 %v499, %v619
    %v670 = vmax.f32 %v501, %v620
    %v671 = vmax.f32 %v503, %v621
    %v672 = vmax.f32 %v505, %v622
    %v673 = vmax.f32 %v509, %v623
    %v674 = vmax.f32 %v511, %v624
    %v675 = vmax.f32 %v513, %v625
    %v676 = vmax.f32 %v515, %v626
    %v677 = vmax.f32 %v519, %v627
    %v678 = vmax.f32 %v521, %v628
    %v679 = vmax.f32 %v523, %v629
    %v680 = vmax.f32 %v525, %v630
    %v681 = vmax.f32 %v529, %v631
    %v682 = vmax.f32 %v531, %v632
    %v683 = vmax.f32 %v533, %v633
    %v684 = vmax.f32 %v535, %v634
    %v685 = vmax.f32 %v539, %v635
    %v686 = vmax.f32 %v541, %v636
    %v687 = vmax.f32 %v543, %v637
    %v688 = vmax.f32 %v545, %v638
    %v689 = vmax.f32 %v549, %v639
    %v690 = vmax.f32 %v551, %v640
    %v691 = vmax.f32 %v553, %v641
    %v692 = vmax.f32 %v555, %v642
    %v693 = vmax.f32 %v559, %v643
    %v694 = vmax.f32 %v561, %v644
    %v695 = vmax.f32 %v563, %v645
    %v696 = vmax.f32 %v565, %v646
    %v697 = vmax.f32 %v569, %v647
    %v698 = vmax.f32 %v571, %v648
    %v699 = vmax.f32 %v573, %v649
    %v700 = vmax.f32 %v575, %v650
    %v701 = vmax.f32 %v579, %v651
    %v702 = vmax.f32 %v581, %v652
    %v703 = vmax.f32 %v583, %v653
    %v704 = vmax.f32 %v585, %v654
    %v705 = vmax.f32 %v589, %v655
    %v706 = vmax.f32 %v591, %v656
    %v707 = vmax.f32 %v593, %v657
    %v708 = vmax.f32 %v595, %v658
    %v709 = vmax.f32 %v599, %v659
    %v710 = vmax.f32 %v601, %v660
    %v711 = vmax.f32 %v603, %v661
    %v712 = vmax.f32 %v605, %v662
    %v713 = vmax.f32 %v609, %v663
    %v714 = vmax.f32 %v611, %v664
    %v715 = vpack.c.bf16 %v667, %v665
    %v716 = vpack.c.bf16 %v668, %v666
    %v717 = vpack.c.bf16 %v671, %v669
    %v718 = vpack.c.bf16 %v672, %v670
    %v719 = vpack.c.bf16 %v675, %v673
    %v720 = vpack.c.bf16 %v676, %v674
    %v721 = vpack.c.bf16 %v679, %v677
    %v722 = vpack.c.bf16 %v680, %v678
    %v723 = vpack.c.bf16 %v683, %v681
    %v724 = vpack.c.bf16 %v684, %v682
    %v725 = vpack.c.bf16 %v687, %v685
    %v726 = vpack.c.bf16 %v688, %v686
    %v727 = vpack.c.bf16 %v691, %v689
    %v728 = vpack.c.bf16 %v692, %v690
    %v729 = vpack.c.bf16 %v695, %v693
    %v730 = vpack.c.bf16 %v696, %v694
    %v731 = vpack.c.bf16 %v699, %v697
    %v732 = vpack.c.bf16 %v700, %v698
    %v733 = vpack.c.bf16 %v703, %v701
    %v734 = vpack.c.bf16 %v704, %v702
    %v735 = vpack.c.bf16 %v707, %v705
    %v736 = vpack.c.bf16 %v708, %v706
    %v737 = vpack.c.bf16 %v711, %v709
    %v738 = vpack.c.bf16 %v712, %v710
    %v739 = vpack.c.bf16 %v713, %v713
    %v740 = vpack.c.bf16 %v714, %v714
    %v741 = vld [vmem:[#allocation8] sm:$0xff]
    %v742 = vld [vmem:[#allocation8 + $0x8] sm:$0xff]
    %v743 = vld [vmem:[#allocation8 + $0x10] sm:$0xff]
    %v744 = vld [vmem:[#allocation8 + $0x18] sm:$0xff]
    %v745 = vld [vmem:[#allocation8 + $0x20] sm:$0xff]
    %v746 = vld [vmem:[#allocation8 + $0x28] sm:$0xff]
    %v747 = vld [vmem:[#allocation8 + $0x30] sm:$0xff]
    %v748 = vld [vmem:[#allocation8 + $0x38] sm:$0xff]
    %v749 = vld [vmem:[#allocation8 + $0x40] sm:$0xff]
    %v750 = vld [vmem:[#allocation8 + $0x48] sm:$0xff]
    %v751 = vld [vmem:[#allocation8 + $0x50] sm:$0xff]
    %v752 = vld [vmem:[#allocation8 + $0x58] sm:$0xff]
    %v753 = vld [vmem:[#allocation8 + $0x60] sm:$0xff]
    %v754 = vld [vmem:[#allocation8 + $0x68] sm:$0xff]
    %v755 = vld [vmem:[#allocation8 + $0x70] sm:$0xff]
    %v756 = vld [vmem:[#allocation8 + $0x78] sm:$0xff]
    %v757 = vld [vmem:[#allocation8 + $0x80] sm:$0xff]
    %v758 = vld [vmem:[#allocation8 + $0x88] sm:$0xff]
    %v759 = vld [vmem:[#allocation8 + $0x90] sm:$0xff]
    %v760 = vld [vmem:[#allocation8 + $0x98] sm:$0xff]
    %v761 = vld [vmem:[#allocation8 + $0xa0] sm:$0xff]
    %v762 = vld [vmem:[#allocation8 + $0xa8] sm:$0xff]
    %v763 = vld [vmem:[#allocation8 + $0xb0] sm:$0xff]
    %v764 = vld [vmem:[#allocation8 + $0xb8] sm:$0xff]
    %v765 = vld [vmem:[#allocation8 + $0xc0] sm:$0xff]
    %v766 = vld [vmem:[#allocation8 + $0xc8] sm:$0xff]
    %v767 = vld [vmem:[#allocation8 + $0xd0] sm:$0xff]
    %v768 = vld [vmem:[#allocation8 + $0xd8] sm:$0xff]
    %v769 = vld [vmem:[#allocation8 + $0xe0] sm:$0xff]
    %v770 = vld [vmem:[#allocation8 + $0xe8] sm:$0xff]
    %v771 = vld [vmem:[#allocation8 + $0xf0] sm:$0xff]
    %v772 = vld [vmem:[#allocation8 + $0xf8] sm:$0xff]
    %v773 = vld [vmem:[%s5] sm:$0x3]
    %v775 = vlaneseq
    %v776 = vshrl.u32 %v775, 7
    %v777 = vsub.s32 0, %v776
    %v778 = vrot.slane %v773, %v777
    %v779 = vlaneseq
    %v780 = vshrl.u32 %v779, 7
    %v781 = vsub.s32 1, %v780
    %v782 = vrot.slane %v773, %v781
    %v817 = vunpack.c.l.b16 %v741
    %v818 = vunpack.c.h.b16 %v741
    %v819 = vunpack.c.l.b16 %v742
    %v820 = vunpack.c.h.b16 %v742
    %v821 = vunpack.c.l.b16 %v743
    %v822 = vunpack.c.h.b16 %v743
    %v823 = vunpack.c.l.b16 %v744
    %v824 = vunpack.c.h.b16 %v744
    %v825 = vunpack.c.l.b16 %v745
    %v826 = vunpack.c.h.b16 %v745
    %v827 = vunpack.c.l.b16 %v746
    %v828 = vunpack.c.h.b16 %v746
    %v829 = vunpack.c.l.b16 %v747
    %v830 = vunpack.c.h.b16 %v747
    %v831 = vunpack.c.l.b16 %v748
    %v832 = vunpack.c.h.b16 %v748
    %v833 = vunpack.c.l.b16 %v749
    %v834 = vunpack.c.h.b16 %v749
    %v835 = vunpack.c.l.b16 %v750
    %v836 = vunpack.c.h.b16 %v750
    %v837 = vunpack.c.l.b16 %v751
    %v838 = vunpack.c.h.b16 %v751
    %v839 = vunpack.c.l.b16 %v752
    %v840 = vunpack.c.h.b16 %v752
    %v841 = vunpack.c.l.b16 %v753
    %v842 = vunpack.c.h.b16 %v753
    %v843 = vunpack.c.l.b16 %v754
    %v844 = vunpack.c.h.b16 %v754
    %v845 = vunpack.c.l.b16 %v755
    %v846 = vunpack.c.h.b16 %v755
    %v847 = vunpack.c.l.b16 %v756
    %v848 = vunpack.c.h.b16 %v756
    %v849 = vunpack.c.l.b16 %v757
    %v850 = vunpack.c.h.b16 %v757
    %v851 = vunpack.c.l.b16 %v758
    %v852 = vunpack.c.h.b16 %v758
    %v853 = vunpack.c.l.b16 %v759
    %v854 = vunpack.c.h.b16 %v759
    %v855 = vunpack.c.l.b16 %v760
    %v856 = vunpack.c.h.b16 %v760
    %v857 = vunpack.c.l.b16 %v761
    %v858 = vunpack.c.h.b16 %v761
    %v859 = vunpack.c.l.b16 %v762
    %v860 = vunpack.c.h.b16 %v762
    %v861 = vunpack.c.l.b16 %v763
    %v862 = vunpack.c.h.b16 %v763
    %v863 = vunpack.c.l.b16 %v764
    %v864 = vunpack.c.h.b16 %v764
    %v865 = vunpack.c.l.b16 %v765
    %v866 = vunpack.c.h.b16 %v765
    %v867 = vunpack.c.l.b16 %v766
    %v868 = vunpack.c.h.b16 %v766
    %v869 = vunpack.c.l.b16 %v767
    %v870 = vunpack.c.h.b16 %v767
    %v871 = vunpack.c.l.b16 %v768
    %v872 = vunpack.c.h.b16 %v768
    %v873 = vunpack.c.l.b16 %v769
    %v874 = vunpack.c.h.b16 %v769
    %v875 = vunpack.c.l.b16 %v770
    %v876 = vunpack.c.h.b16 %v770
    %v877 = vunpack.c.l.b16 %v771
    %v878 = vunpack.c.h.b16 %v771
    %v879 = vunpack.c.l.b16 %v772
    %v880 = vunpack.c.h.b16 %v772
    %v881 = vpack.c.b16 %v819, %v817
    %v882 = vpack.c.b16 %v820, %v818
    %v883 = vpack.c.b16 %v823, %v821
    %v884 = vpack.c.b16 %v824, %v822
    %v885 = vpack.c.b16 %v827, %v825
    %v886 = vpack.c.b16 %v828, %v826
    %v887 = vpack.c.b16 %v831, %v829
    %v888 = vpack.c.b16 %v832, %v830
    %v889 = vpack.c.b16 %v835, %v833
    %v890 = vpack.c.b16 %v836, %v834
    %v891 = vpack.c.b16 %v839, %v837
    %v892 = vpack.c.b16 %v840, %v838
    %v893 = vpack.c.b16 %v843, %v841
    %v894 = vpack.c.b16 %v844, %v842
    %v895 = vpack.c.b16 %v847, %v845
    %v896 = vpack.c.b16 %v848, %v846
    %v897 = vpack.c.b16 %v851, %v849
    %v898 = vpack.c.b16 %v852, %v850
    %v899 = vpack.c.b16 %v855, %v853
    %v900 = vpack.c.b16 %v856, %v854
    %v901 = vpack.c.b16 %v859, %v857
    %v902 = vpack.c.b16 %v860, %v858
    %v903 = vpack.c.b16 %v863, %v861
    %v904 = vpack.c.b16 %v864, %v862
    %v905 = vpack.c.b16 %v867, %v865
    %v906 = vpack.c.b16 %v868, %v866
    %v907 = vpack.c.b16 %v871, %v869
    %v908 = vpack.c.b16 %v872, %v870
    %v909 = vpack.c.b16 %v875, %v873
    %v910 = vpack.c.b16 %v876, %v874
    %v911 = vpack.c.b16 %v879, %v877
    %v912 = vpack.c.b16 %v880, %v878
    %945 = vmatprep.subr.bf16.mxu0 %v882
    %946 = vmatpush1.bf16.msra.mxu0 %v881
    %947 = vmatprep.subr.bf16.mxu0 %v884
    %948 = vmatpush1.bf16.msra.mxu0 %v883
    %949 = vmatprep.subr.bf16.mxu0 %v886
    %950 = vmatpush1.bf16.msra.mxu0 %v885
    %951 = vmatprep.subr.bf16.mxu0 %v888
    %952 = vmatpush1.bf16.msra.mxu0 %v887
    %953 = vmatprep.subr.bf16.mxu0 %v890
    %954 = vmatpush1.bf16.msra.mxu0 %v889
    %955 = vmatprep.subr.bf16.mxu0 %v892
    %956 = vmatpush1.bf16.msra.mxu0 %v891
    %957 = vmatprep.subr.bf16.mxu0 %v894
    %958 = vmatpush1.bf16.msra.mxu0 %v893
    %959 = vmatprep.subr.bf16.mxu0 %v896
    %960 = vmatpush1.bf16.msra.mxu0 %v895
    %961 = vmatprep.subr.bf16.mxu0 %v898
    %962 = vmatpush1.bf16.msra.mxu0 %v897
    %963 = vmatprep.subr.bf16.mxu0 %v900
    %964 = vmatpush1.bf16.msra.mxu0 %v899
    %965 = vmatprep.subr.bf16.mxu0 %v902
    %966 = vmatpush1.bf16.msra.mxu0 %v901
    %967 = vmatprep.subr.bf16.mxu0 %v904
    %968 = vmatpush1.bf16.msra.mxu0 %v903
    %969 = vmatprep.subr.bf16.mxu0 %v906
    %970 = vmatpush1.bf16.msra.mxu0 %v905
    %971 = vmatprep.subr.bf16.mxu0 %v908
    %972 = vmatpush1.bf16.msra.mxu0 %v907
    %973 = vmatprep.subr.bf16.mxu0 %v910
    %974 = vmatpush1.bf16.msra.mxu0 %v909
    %975 = vmatprep.subr.bf16.mxu0 %v912
    %976 = vmatpush1.bf16.msra.mxu0 %v911
    %977 = vmatprep.mubr.bf16.mxu0 %v716
    %978 = vmatmul.mubr.bf16.gmra.mrb[0].mxu0 %v715
    %v979 = vpop.f32.mrb[0].mxu0
    %v980 = vadd.f32 %v778, %v979
    %v981 = vpop.f32.mrb[0].mxu0
    %v982 = vadd.f32 %v782, %v981
    %v983 = vpop.f32.mrb[0].mxu0
    %v984 = vadd.f32 %v778, %v983
    %v985 = vpop.f32.mrb[0].mxu0
    %v986 = vadd.f32 %v782, %v985
    %987 = vmatprep.mubr.bf16.mxu0 %v718
    %988 = vmatmul.mubr.bf16.gmra.mrb[0].mxu0 %v717
    %v989 = vpop.f32.mrb[0].mxu0
    %v990 = vadd.f32 %v778, %v989
    %v991 = vpop.f32.mrb[0].mxu0
    %v992 = vadd.f32 %v782, %v991
    %v993 = vpop.f32.mrb[0].mxu0
    %v994 = vadd.f32 %v778, %v993
    %v995 = vpop.f32.mrb[0].mxu0
    %v996 = vadd.f32 %v782, %v995
    %997 = vmatprep.mubr.bf16.mxu0 %v720
    %998 = vmatmul.mubr.bf16.gmra.mrb[0].mxu0 %v719
    %v999 = vpop.f32.mrb[0].mxu0
    %v1000 = vadd.f32 %v778, %v999
    %v1001 = vpop.f32.mrb[0].mxu0
    %v1002 = vadd.f32 %v782, %v1001
    %v1003 = vpop.f32.mrb[0].mxu0
    %v1004 = vadd.f32 %v778, %v1003
    %v1005 = vpop.f32.mrb[0].mxu0
    %v1006 = vadd.f32 %v782, %v1005
    %1007 = vmatprep.mubr.bf16.mxu0 %v722
    %1008 = vmatmul.mubr.bf16.gmra.mrb[0].mxu0 %v721
    %v1009 = vpop.f32.mrb[0].mxu0
    %v1010 = vadd.f32 %v778, %v1009
    %v1011 = vpop.f32.mrb[0].mxu0
    %v1012 = vadd.f32 %v782, %v1011
    %v1013 = vpop.f32.mrb[0].mxu0
    %v1014 = vadd.f32 %v778, %v1013
    %v1015 = vpop.f32.mrb[0].mxu0
    %v1016 = vadd.f32 %v782, %v1015
    %1017 = vmatprep.mubr.bf16.mxu0 %v724
    %1018 = vmatmul.mubr.bf16.gmra.mrb[0].mxu0 %v723
    %v1019 = vpop.f32.mrb[0].mxu0
    %v1020 = vadd.f32 %v778, %v1019
    %v1021 = vpop.f32.mrb[0].mxu0
    %v1022 = vadd.f32 %v782, %v1021
    %v1023 = vpop.f32.mrb[0].mxu0
    %v1024 = vadd.f32 %v778, %v1023
    %v1025 = vpop.f32.mrb[0].mxu0
    %v1026 = vadd.f32 %v782, %v1025
    %1027 = vmatprep.mubr.bf16.mxu0 %v726
    %1028 = vmatmul.mubr.bf16.gmra.mrb[0].mxu0 %v725
    %v1029 = vpop.f32.mrb[0].mxu0
    %v1030 = vadd.f32 %v778, %v1029
    %v1031 = vpop.f32.mrb[0].mxu0
    %v1032 = vadd.f32 %v782, %v1031
    %v1033 = vpop.f32.mrb[0].mxu0
    %v1034 = vadd.f32 %v778, %v1033
    %v1035 = vpop.f32.mrb[0].mxu0
    %v1036 = vadd.f32 %v782, %v1035
    %1037 = vmatprep.mubr.bf16.mxu0 %v728
    %1038 = vmatmul.mubr.bf16.gmra.mrb[0].mxu0 %v727
    %v1039 = vpop.f32.mrb[0].mxu0
    %v1040 = vadd.f32 %v778, %v1039
    %v1041 = vpop.f32.mrb[0].mxu0
    %v1042 = vadd.f32 %v782, %v1041
    %v1043 = vpop.f32.mrb[0].mxu0
    %v1044 = vadd.f32 %v778, %v1043
    %v1045 = vpop.f32.mrb[0].mxu0
    %v1046 = vadd.f32 %v782, %v1045
    %1047 = vmatprep.mubr.bf16.mxu0 %v730
    %1048 = vmatmul.mubr.bf16.gmra.mrb[0].mxu0 %v729
    %v1049 = vpop.f32.mrb[0].mxu0
    %v1050 = vadd.f32 %v778, %v1049
    %v1051 = vpop.f32.mrb[0].mxu0
    %v1052 = vadd.f32 %v782, %v1051
    %v1053 = vpop.f32.mrb[0].mxu0
    %v1054 = vadd.f32 %v778, %v1053
    %v1055 = vpop.f32.mrb[0].mxu0
    %v1056 = vadd.f32 %v782, %v1055
    %1057 = vmatprep.mubr.bf16.mxu0 %v732
    %1058 = vmatmul.mubr.bf16.gmra.mrb[0].mxu0 %v731
    %v1059 = vpop.f32.mrb[0].mxu0
    %v1060 = vadd.f32 %v778, %v1059
    %v1061 = vpop.f32.mrb[0].mxu0
    %v1062 = vadd.f32 %v782, %v1061
    %v1063 = vpop.f32.mrb[0].mxu0
    %v1064 = vadd.f32 %v778, %v1063
    %v1065 = vpop.f32.mrb[0].mxu0
    %v1066 = vadd.f32 %v782, %v1065
    %1067 = vmatprep.mubr.bf16.mxu0 %v734
    %1068 = vmatmul.mubr.bf16.gmra.mrb[0].mxu0 %v733
    %v1069 = vpop.f32.mrb[0].mxu0
    %v1070 = vadd.f32 %v778, %v1069
    %v1071 = vpop.f32.mrb[0].mxu0
    %v1072 = vadd.f32 %v782, %v1071
    %v1073 = vpop.f32.mrb[0].mxu0
    %v1074 = vadd.f32 %v778, %v1073
    %v1075 = vpop.f32.mrb[0].mxu0
    %v1076 = vadd.f32 %v782, %v1075
    %1077 = vmatprep.mubr.bf16.mxu0 %v736
    %1078 = vmatmul.mubr.bf16.gmra.mrb[0].mxu0 %v735
    %v1079 = vpop.f32.mrb[0].mxu0
    %v1080 = vadd.f32 %v778, %v1079
    %v1081 = vpop.f32.mrb[0].mxu0
    %v1082 = vadd.f32 %v782, %v1081
    %v1083 = vpop.f32.mrb[0].mxu0
    %v1084 = vadd.f32 %v778, %v1083
    %v1085 = vpop.f32.mrb[0].mxu0
    %v1086 = vadd.f32 %v782, %v1085
    %1087 = vmatprep.mubr.bf16.mxu0 %v738
    %1088 = vmatmul.mubr.bf16.gmra.mrb[0].mxu0 %v737
    %v1089 = vpop.f32.mrb[0].mxu0
    %v1090 = vadd.f32 %v778, %v1089
    %v1091 = vpop.f32.mrb[0].mxu0
    %v1092 = vadd.f32 %v782, %v1091
    %v1093 = vpop.f32.mrb[0].mxu0
    %v1094 = vadd.f32 %v778, %v1093
    %v1095 = vpop.f32.mrb[0].mxu0
    %v1096 = vadd.f32 %v782, %v1095
    %1097 = vmatprep.mubr.bf16.mxu0 %v740
    %1098 = vmatmul.mubr.bf16.gmra.mrb[0].mxu0 %v739
    %v1099 = vpop.f32.mrb[0].mxu0
    %v1100 = vadd.f32 %v778, %v1099
    %v1101 = vpop.f32.mrb[0].mxu0
    %v1102 = vadd.f32 %v782, %v1101
    %v1103 = vpop.f32.mrb[0].mxu0
    %v1104 = vpop.f32.mrb[0].mxu0
    %1105 = vdwg.mxu0
    %v1106 = vmul.f32 %v980, 0.01
    %v1107 = vmul.f32 %v982, 0.01
    %v1108 = vmul.f32 %v984, 0.01
    %v1109 = vmul.f32 %v986, 0.01
    %v1110 = vmul.f32 %v990, 0.01
    %v1111 = vmul.f32 %v992, 0.01
    %v1112 = vmul.f32 %v994, 0.01
    %v1113 = vmul.f32 %v996, 0.01
    %v1114 = vmul.f32 %v1000, 0.01
    %v1115 = vmul.f32 %v1002, 0.01
    %v1116 = vmul.f32 %v1004, 0.01
    %v1117 = vmul.f32 %v1006, 0.01
    %v1118 = vmul.f32 %v1010, 0.01
    %v1119 = vmul.f32 %v1012, 0.01
    %v1120 = vmul.f32 %v1014, 0.01
    %v1121 = vmul.f32 %v1016, 0.01
    %v1122 = vmul.f32 %v1020, 0.01
    %v1123 = vmul.f32 %v1022, 0.01
    %v1124 = vmul.f32 %v1024, 0.01
    %v1125 = vmul.f32 %v1026, 0.01
    %v1126 = vmul.f32 %v1030, 0.01
    %v1127 = vmul.f32 %v1032, 0.01
    %v1128 = vmul.f32 %v1034, 0.01
    %v1129 = vmul.f32 %v1036, 0.01
    %v1130 = vmul.f32 %v1040, 0.01
    %v1131 = vmul.f32 %v1042, 0.01
    %v1132 = vmul.f32 %v1044, 0.01
    %v1133 = vmul.f32 %v1046, 0.01
    %v1134 = vmul.f32 %v1050, 0.01
    %v1135 = vmul.f32 %v1052, 0.01
    %v1136 = vmul.f32 %v1054, 0.01
    %v1137 = vmul.f32 %v1056, 0.01
    %v1138 = vmul.f32 %v1060, 0.01
    %v1139 = vmul.f32 %v1062, 0.01
    %v1140 = vmul.f32 %v1064, 0.01
    %v1141 = vmul.f32 %v1066, 0.01
    %v1142 = vmul.f32 %v1070, 0.01
    %v1143 = vmul.f32 %v1072, 0.01
    %v1144 = vmul.f32 %v1074, 0.01
    %v1145 = vmul.f32 %v1076, 0.01
    %v1146 = vmul.f32 %v1080, 0.01
    %v1147 = vmul.f32 %v1082, 0.01
    %v1148 = vmul.f32 %v1084, 0.01
    %v1149 = vmul.f32 %v1086, 0.01
    %v1150 = vmul.f32 %v1090, 0.01
    %v1151 = vmul.f32 %v1092, 0.01
    %v1152 = vmul.f32 %v1094, 0.01
    %v1153 = vmul.f32 %v1096, 0.01
    %v1154 = vmul.f32 %v1100, 0.01
    %v1155 = vmul.f32 %v1102, 0.01
    %v1156 = vmax.f32 %v980, %v1106
    %v1157 = vmax.f32 %v982, %v1107
    %v1158 = vmax.f32 %v984, %v1108
    %v1159 = vmax.f32 %v986, %v1109
    %v1160 = vmax.f32 %v990, %v1110
    %v1161 = vmax.f32 %v992, %v1111
    %v1162 = vmax.f32 %v994, %v1112
    %v1163 = vmax.f32 %v996, %v1113
    %v1164 = vmax.f32 %v1000, %v1114
    %v1165 = vmax.f32 %v1002, %v1115
    %v1166 = vmax.f32 %v1004, %v1116
    %v1167 = vmax.f32 %v1006, %v1117
    %v1168 = vmax.f32 %v1010, %v1118
    %v1169 = vmax.f32 %v1012, %v1119
    %v1170 = vmax.f32 %v1014, %v1120
    %v1171 = vmax.f32 %v1016, %v1121
    %v1172 = vmax.f32 %v1020, %v1122
    %v1173 = vmax.f32 %v1022, %v1123
    %v1174 = vmax.f32 %v1024, %v1124
    %v1175 = vmax.f32 %v1026, %v1125
    %v1176 = vmax.f32 %v1030, %v1126
    %v1177 = vmax.f32 %v1032, %v1127
    %v1178 = vmax.f32 %v1034, %v1128
    %v1179 = vmax.f32 %v1036, %v1129
    %v1180 = vmax.f32 %v1040, %v1130
    %v1181 = vmax.f32 %v1042, %v1131
    %v1182 = vmax.f32 %v1044, %v1132
    %v1183 = vmax.f32 %v1046, %v1133
    %v1184 = vmax.f32 %v1050, %v1134
    %v1185 = vmax.f32 %v1052, %v1135
    %v1186 = vmax.f32 %v1054, %v1136
    %v1187 = vmax.f32 %v1056, %v1137
    %v1188 = vmax.f32 %v1060, %v1138
    %v1189 = vmax.f32 %v1062, %v1139
    %v1190 = vmax.f32 %v1064, %v1140
    %v1191 = vmax.f32 %v1066, %v1141
    %v1192 = vmax.f32 %v1070, %v1142
    %v1193 = vmax.f32 %v1072, %v1143
    %v1194 = vmax.f32 %v1074, %v1144
    %v1195 = vmax.f32 %v1076, %v1145
    %v1196 = vmax.f32 %v1080, %v1146
    %v1197 = vmax.f32 %v1082, %v1147
    %v1198 = vmax.f32 %v1084, %v1148
    %v1199 = vmax.f32 %v1086, %v1149
    %v1200 = vmax.f32 %v1090, %v1150
    %v1201 = vmax.f32 %v1092, %v1151
    %v1202 = vmax.f32 %v1094, %v1152
    %v1203 = vmax.f32 %v1096, %v1153
    %v1204 = vmax.f32 %v1100, %v1154
    %v1205 = vmax.f32 %v1102, %v1155
    %v1206 = vpack.c.bf16 %v1158, %v1156
    %v1207 = vpack.c.bf16 %v1159, %v1157
    %v1208 = vpack.c.bf16 %v1162, %v1160
    %v1209 = vpack.c.bf16 %v1163, %v1161
    %v1210 = vpack.c.bf16 %v1166, %v1164
    %v1211 = vpack.c.bf16 %v1167, %v1165
    %v1212 = vpack.c.bf16 %v1170, %v1168
    %v1213 = vpack.c.bf16 %v1171, %v1169
    %v1214 = vpack.c.bf16 %v1174, %v1172
    %v1215 = vpack.c.bf16 %v1175, %v1173
    %v1216 = vpack.c.bf16 %v1178, %v1176
    %v1217 = vpack.c.bf16 %v1179, %v1177
    %v1218 = vpack.c.bf16 %v1182, %v1180
    %v1219 = vpack.c.bf16 %v1183, %v1181
    %v1220 = vpack.c.bf16 %v1186, %v1184
    %v1221 = vpack.c.bf16 %v1187, %v1185
    %v1222 = vpack.c.bf16 %v1190, %v1188
    %v1223 = vpack.c.bf16 %v1191, %v1189
    %v1224 = vpack.c.bf16 %v1194, %v1192
    %v1225 = vpack.c.bf16 %v1195, %v1193
    %v1226 = vpack.c.bf16 %v1198, %v1196
    %v1227 = vpack.c.bf16 %v1199, %v1197
    %v1228 = vpack.c.bf16 %v1202, %v1200
    %v1229 = vpack.c.bf16 %v1203, %v1201
    %v1230 = vpack.c.bf16 %v1204, %v1204
    %v1231 = vpack.c.bf16 %v1205, %v1205
    %v1232 = vld [vmem:[#allocation9] sm:$0xff]
    %v1233 = vld [vmem:[#allocation9 + $0x8] sm:$0xff]
    %v1234 = vld [vmem:[#allocation9 + $0x10] sm:$0xff]
    %v1235 = vld [vmem:[#allocation9 + $0x18] sm:$0xff]
    %v1236 = vld [vmem:[#allocation9 + $0x20] sm:$0xff]
    %v1237 = vld [vmem:[#allocation9 + $0x28] sm:$0xff]
    %v1238 = vld [vmem:[#allocation9 + $0x30] sm:$0xff]
    %v1239 = vld [vmem:[#allocation9 + $0x38] sm:$0xff]
    %v1240 = vld [vmem:[#allocation9 + $0x40] sm:$0xff]
    %v1241 = vld [vmem:[#allocation9 + $0x48] sm:$0xff]
    %v1242 = vld [vmem:[#allocation9 + $0x50] sm:$0xff]
    %v1243 = vld [vmem:[#allocation9 + $0x58] sm:$0xff]
    %v1244 = vld [vmem:[#allocation9 + $0x60] sm:$0xff]
    %v1245 = vld [vmem:[#allocation9 + $0x68] sm:$0xff]
    %v1246 = vld [vmem:[#allocation9 + $0x70] sm:$0xff]
    %v1247 = vld [vmem:[#allocation9 + $0x78] sm:$0xff]
    %v1248 = vld [vmem:[#allocation9 + $0x80] sm:$0xff]
    %v1249 = vld [vmem:[#allocation9 + $0x88] sm:$0xff]
    %v1250 = vld [vmem:[#allocation9 + $0x90] sm:$0xff]
    %v1251 = vld [vmem:[#allocation9 + $0x98] sm:$0xff]
    %v1252 = vld [vmem:[#allocation9 + $0xa0] sm:$0xff]
    %v1253 = vld [vmem:[#allocation9 + $0xa8] sm:$0xff]
    %v1254 = vld [vmem:[#allocation9 + $0xb0] sm:$0xff]
    %v1255 = vld [vmem:[#allocation9 + $0xb8] sm:$0xff]
    %v1256 = vld [vmem:[#allocation9 + $0xc0] sm:$0xff]
    %v1257 = vld [vmem:[#allocation9 + $0xc8] sm:$0xff]
    %v1258 = vld [vmem:[#allocation9 + $0xd0] sm:$0xff]
    %v1259 = vld [vmem:[#allocation9 + $0xd8] sm:$0xff]
    %v1260 = vld [vmem:[#allocation9 + $0xe0] sm:$0xff]
    %v1261 = vld [vmem:[#allocation9 + $0xe8] sm:$0xff]
    %v1262 = vld [vmem:[#allocation9 + $0xf0] sm:$0xff]
    %v1263 = vld [vmem:[#allocation9 + $0xf8] sm:$0xff]
    %v1264 = vld [vmem:[%s7] sm:$0x3]
    %v1266 = vlaneseq
    %v1267 = vshrl.u32 %v1266, 7
    %v1268 = vsub.s32 0, %v1267
    %v1269 = vrot.slane %v1264, %v1268
    %v1270 = vlaneseq
    %v1271 = vshrl.u32 %v1270, 7
    %v1272 = vsub.s32 1, %v1271
    %v1273 = vrot.slane %v1264, %v1272
    %v1308 = vunpack.c.l.b16 %v1232
    %v1309 = vunpack.c.h.b16 %v1232
    %v1310 = vunpack.c.l.b16 %v1233
    %v1311 = vunpack.c.h.b16 %v1233
    %v1312 = vunpack.c.l.b16 %v1234
    %v1313 = vunpack.c.h.b16 %v1234
    %v1314 = vunpack.c.l.b16 %v1235
    %v1315 = vunpack.c.h.b16 %v1235
    %v1316 = vunpack.c.l.b16 %v1236
    %v1317 = vunpack.c.h.b16 %v1236
    %v1318 = vunpack.c.l.b16 %v1237
    %v1319 = vunpack.c.h.b16 %v1237
    %v1320 = vunpack.c.l.b16 %v1238
    %v1321 = vunpack.c.h.b16 %v1238
    %v1322 = vunpack.c.l.b16 %v1239
    %v1323 = vunpack.c.h.b16 %v1239
    %v1324 = vunpack.c.l.b16 %v1240
    %v1325 = vunpack.c.h.b16 %v1240
    %v1326 = vunpack.c.l.b16 %v1241
    %v1327 = vunpack.c.h.b16 %v1241
    %v1328 = vunpack.c.l.b16 %v1242
    %v1329 = vunpack.c.h.b16 %v1242
    %v1330 = vunpack.c.l.b16 %v1243
    %v1331 = vunpack.c.h.b16 %v1243
    %v1332 = vunpack.c.l.b16 %v1244
    %v1333 = vunpack.c.h.b16 %v1244
    %v1334 = vunpack.c.l.b16 %v1245
    %v1335 = vunpack.c.h.b16 %v1245
    %v1336 = vunpack.c.l.b16 %v1246
    %v1337 = vunpack.c.h.b16 %v1246
    %v1338 = vunpack.c.l.b16 %v1247
    %v1339 = vunpack.c.h.b16 %v1247
    %v1340 = vunpack.c.l.b16 %v1248
    %v1341 = vunpack.c.h.b16 %v1248
    %v1342 = vunpack.c.l.b16 %v1249
    %v1343 = vunpack.c.h.b16 %v1249
    %v1344 = vunpack.c.l.b16 %v1250
    %v1345 = vunpack.c.h.b16 %v1250
    %v1346 = vunpack.c.l.b16 %v1251
    %v1347 = vunpack.c.h.b16 %v1251
    %v1348 = vunpack.c.l.b16 %v1252
    %v1349 = vunpack.c.h.b16 %v1252
    %v1350 = vunpack.c.l.b16 %v1253
    %v1351 = vunpack.c.h.b16 %v1253
    %v1352 = vunpack.c.l.b16 %v1254
    %v1353 = vunpack.c.h.b16 %v1254
    %v1354 = vunpack.c.l.b16 %v1255
    %v1355 = vunpack.c.h.b16 %v1255
    %v1356 = vunpack.c.l.b16 %v1256
    %v1357 = vunpack.c.h.b16 %v1256
    %v1358 = vunpack.c.l.b16 %v1257
    %v1359 = vunpack.c.h.b16 %v1257
    %v1360 = vunpack.c.l.b16 %v1258
    %v1361 = vunpack.c.h.b16 %v1258
    %v1362 = vunpack.c.l.b16 %v1259
    %v1363 = vunpack.c.h.b16 %v1259
    %v1364 = vunpack.c.l.b16 %v1260
    %v1365 = vunpack.c.h.b16 %v1260
    %v1366 = vunpack.c.l.b16 %v1261
    %v1367 = vunpack.c.h.b16 %v1261
    %v1368 = vunpack.c.l.b16 %v1262
    %v1369 = vunpack.c.h.b16 %v1262
    %v1370 = vunpack.c.l.b16 %v1263
    %v1371 = vunpack.c.h.b16 %v1263
    %v1372 = vpack.c.b16 %v1310, %v1308
    %v1373 = vpack.c.b16 %v1311, %v1309
    %v1374 = vpack.c.b16 %v1314, %v1312
    %v1375 = vpack.c.b16 %v1315, %v1313
    %v1376 = vpack.c.b16 %v1318, %v1316
    %v1377 = vpack.c.b16 %v1319, %v1317
    %v1378 = vpack.c.b16 %v1322, %v1320
    %v1379 = vpack.c.b16 %v1323, %v1321
    %v1380 = vpack.c.b16 %v1326, %v1324
    %v1381 = vpack.c.b16 %v1327, %v1325
    %v1382 = vpack.c.b16 %v1330, %v1328
    %v1383 = vpack.c.b16 %v1331, %v1329
    %v1384 = vpack.c.b16 %v1334, %v1332
    %v1385 = vpack.c.b16 %v1335, %v1333
    %v1386 = vpack.c.b16 %v1338, %v1336
    %v1387 = vpack.c.b16 %v1339, %v1337
    %v1388 = vpack.c.b16 %v1342, %v1340
    %v1389 = vpack.c.b16 %v1343, %v1341
    %v1390 = vpack.c.b16 %v1346, %v1344
    %v1391 = vpack.c.b16 %v1347, %v1345
    %v1392 = vpack.c.b16 %v1350, %v1348
    %v1393 = vpack.c.b16 %v1351, %v1349
    %v1394 = vpack.c.b16 %v1354, %v1352
    %v1395 = vpack.c.b16 %v1355, %v1353
    %v1396 = vpack.c.b16 %v1358, %v1356
    %v1397 = vpack.c.b16 %v1359, %v1357
    %v1398 = vpack.c.b16 %v1362, %v1360
    %v1399 = vpack.c.b16 %v1363, %v1361
    %v1400 = vpack.c.b16 %v1366, %v1364
    %v1401 = vpack.c.b16 %v1367, %v1365
    %v1402 = vpack.c.b16 %v1370, %v1368
    %v1403 = vpack.c.b16 %v1371, %v1369
    %1436 = vmatprep.subr.bf16.mxu0 %v1373
    %1437 = vmatpush1.bf16.msra.mxu0 %v1372
    %1438 = vmatprep.subr.bf16.mxu0 %v1375
    %1439 = vmatpush1.bf16.msra.mxu0 %v1374
    %1440 = vmatprep.subr.bf16.mxu0 %v1377
    %1441 = vmatpush1.bf16.msra.mxu0 %v1376
    %1442 = vmatprep.subr.bf16.mxu0 %v1379
    %1443 = vmatpush1.bf16.msra.mxu0 %v1378
    %1444 = vmatprep.subr.bf16.mxu0 %v1381
    %1445 = vmatpush1.bf16.msra.mxu0 %v1380
    %1446 = vmatprep.subr.bf16.mxu0 %v1383
    %1447 = vmatpush1.bf16.msra.mxu0 %v1382
    %1448 = vmatprep.subr.bf16.mxu0 %v1385
    %1449 = vmatpush1.bf16.msra.mxu0 %v1384
    %1450 = vmatprep.subr.bf16.mxu0 %v1387
    %1451 = vmatpush1.bf16.msra.mxu0 %v1386
    %1452 = vmatprep.subr.bf16.mxu0 %v1389
    %1453 = vmatpush1.bf16.msra.mxu0 %v1388
    %1454 = vmatprep.subr.bf16.mxu0 %v1391
    %1455 = vmatpush1.bf16.msra.mxu0 %v1390
    %1456 = vmatprep.subr.bf16.mxu0 %v1393
    %1457 = vmatpush1.bf16.msra.mxu0 %v1392
    %1458 = vmatprep.subr.bf16.mxu0 %v1395
    %1459 = vmatpush1.bf16.msra.mxu0 %v1394
    %1460 = vmatprep.subr.bf16.mxu0 %v1397
    %1461 = vmatpush1.bf16.msra.mxu0 %v1396
    %1462 = vmatprep.subr.bf16.mxu0 %v1399
    %1463 = vmatpush1.bf16.msra.mxu0 %v1398
    %1464 = vmatprep.subr.bf16.mxu0 %v1401
    %1465 = vmatpush1.bf16.msra.mxu0 %v1400
    %1466 = vmatprep.subr.bf16.mxu0 %v1403
    %1467 = vmatpush1.bf16.msra.mxu0 %v1402
    %1468 = vmatprep.mubr.bf16.mxu0 %v1207
    %1469 = vmatmul.mubr.bf16.gmra.mrb[0].mxu0 %v1206
    %v1470 = vpop.f32.mrb[0].mxu0
    %v1471 = vadd.f32 %v1269, %v1470
    %v1472 = vpop.f32.mrb[0].mxu0
    %v1473 = vadd.f32 %v1273, %v1472
    %v1474 = vpop.f32.mrb[0].mxu0
    %v1475 = vadd.f32 %v1269, %v1474
    %v1476 = vpop.f32.mrb[0].mxu0
    %v1477 = vadd.f32 %v1273, %v1476
    %1478 = vmatprep.mubr.bf16.mxu0 %v1209
    %1479 = vmatmul.mubr.bf16.gmra.mrb[0].mxu0 %v1208
    %v1480 = vpop.f32.mrb[0].mxu0
    %v1481 = vadd.f32 %v1269, %v1480
    %v1482 = vpop.f32.mrb[0].mxu0
    %v1483 = vadd.f32 %v1273, %v1482
    %v1484 = vpop.f32.mrb[0].mxu0
    %v1485 = vadd.f32 %v1269, %v1484
    %v1486 = vpop.f32.mrb[0].mxu0
    %v1487 = vadd.f32 %v1273, %v1486
    %1488 = vmatprep.mubr.bf16.mxu0 %v1211
    %1489 = vmatmul.mubr.bf16.gmra.mrb[0].mxu0 %v1210
    %v1490 = vpop.f32.mrb[0].mxu0
    %v1491 = vadd.f32 %v1269, %v1490
    %v1492 = vpop.f32.mrb[0].mxu0
    %v1493 = vadd.f32 %v1273, %v1492
    %v1494 = vpop.f32.mrb[0].mxu0
    %v1495 = vadd.f32 %v1269, %v1494
    %v1496 = vpop.f32.mrb[0].mxu0
    %v1497 = vadd.f32 %v1273, %v1496
    %1498 = vmatprep.mubr.bf16.mxu0 %v1213
    %1499 = vmatmul.mubr.bf16.gmra.mrb[0].mxu0 %v1212
    %v1500 = vpop.f32.mrb[0].mxu0
    %v1501 = vadd.f32 %v1269, %v1500
    %v1502 = vpop.f32.mrb[0].mxu0
    %v1503 = vadd.f32 %v1273, %v1502
    %v1504 = vpop.f32.mrb[0].mxu0
    %v1505 = vadd.f32 %v1269, %v1504
    %v1506 = vpop.f32.mrb[0].mxu0
    %v1507 = vadd.f32 %v1273, %v1506
    %1508 = vmatprep.mubr.bf16.mxu0 %v1215
    %1509 = vmatmul.mubr.bf16.gmra.mrb[0].mxu0 %v1214
    %v1510 = vpop.f32.mrb[0].mxu0
    %v1511 = vadd.f32 %v1269, %v1510
    %v1512 = vpop.f32.mrb[0].mxu0
    %v1513 = vadd.f32 %v1273, %v1512
    %v1514 = vpop.f32.mrb[0].mxu0
    %v1515 = vadd.f32 %v1269, %v1514
    %v1516 = vpop.f32.mrb[0].mxu0
    %v1517 = vadd.f32 %v1273, %v1516
    %1518 = vmatprep.mubr.bf16.mxu0 %v1217
    %1519 = vmatmul.mubr.bf16.gmra.mrb[0].mxu0 %v1216
    %v1520 = vpop.f32.mrb[0].mxu0
    %v1521 = vadd.f32 %v1269, %v1520
    %v1522 = vpop.f32.mrb[0].mxu0
    %v1523 = vadd.f32 %v1273, %v1522
    %v1524 = vpop.f32.mrb[0].mxu0
    %v1525 = vadd.f32 %v1269, %v1524
    %v1526 = vpop.f32.mrb[0].mxu0
    %v1527 = vadd.f32 %v1273, %v1526
    %1528 = vmatprep.mubr.bf16.mxu0 %v1219
    %1529 = vmatmul.mubr.bf16.gmra.mrb[0].mxu0 %v1218
    %v1530 = vpop.f32.mrb[0].mxu0
    %v1531 = vadd.f32 %v1269, %v1530
    %v1532 = vpop.f32.mrb[0].mxu0
    %v1533 = vadd.f32 %v1273, %v1532
    %v1534 = vpop.f32.mrb[0].mxu0
    %v1535 = vadd.f32 %v1269, %v1534
    %v1536 = vpop.f32.mrb[0].mxu0
    %v1537 = vadd.f32 %v1273, %v1536
    %1538 = vmatprep.mubr.bf16.mxu0 %v1221
    %1539 = vmatmul.mubr.bf16.gmra.mrb[0].mxu0 %v1220
    %v1540 = vpop.f32.mrb[0].mxu0
    %v1541 = vadd.f32 %v1269, %v1540
    %v1542 = vpop.f32.mrb[0].mxu0
    %v1543 = vadd.f32 %v1273, %v1542
    %v1544 = vpop.f32.mrb[0].mxu0
    %v1545 = vadd.f32 %v1269, %v1544
    %v1546 = vpop.f32.mrb[0].mxu0
    %v1547 = vadd.f32 %v1273, %v1546
    %1548 = vmatprep.mubr.bf16.mxu0 %v1223
    %1549 = vmatmul.mubr.bf16.gmra.mrb[0].mxu0 %v1222
    %v1550 = vpop.f32.mrb[0].mxu0
    %v1551 = vadd.f32 %v1269, %v1550
    %v1552 = vpop.f32.mrb[0].mxu0
    %v1553 = vadd.f32 %v1273, %v1552
    %v1554 = vpop.f32.mrb[0].mxu0
    %v1555 = vadd.f32 %v1269, %v1554
    %v1556 = vpop.f32.mrb[0].mxu0
    %v1557 = vadd.f32 %v1273, %v1556
    %1558 = vmatprep.mubr.bf16.mxu0 %v1225
    %1559 = vmatmul.mubr.bf16.gmra.mrb[0].mxu0 %v1224
    %v1560 = vpop.f32.mrb[0].mxu0
    %v1561 = vadd.f32 %v1269, %v1560
    %v1562 = vpop.f32.mrb[0].mxu0
    %v1563 = vadd.f32 %v1273, %v1562
    %v1564 = vpop.f32.mrb[0].mxu0
    %v1565 = vadd.f32 %v1269, %v1564
    %v1566 = vpop.f32.mrb[0].mxu0
    %v1567 = vadd.f32 %v1273, %v1566
    %1568 = vmatprep.mubr.bf16.mxu0 %v1227
    %1569 = vmatmul.mubr.bf16.gmra.mrb[0].mxu0 %v1226
    %v1570 = vpop.f32.mrb[0].mxu0
    %v1571 = vadd.f32 %v1269, %v1570
    %v1572 = vpop.f32.mrb[0].mxu0
    %v1573 = vadd.f32 %v1273, %v1572
    %v1574 = vpop.f32.mrb[0].mxu0
    %v1575 = vadd.f32 %v1269, %v1574
    %v1576 = vpop.f32.mrb[0].mxu0
    %v1577 = vadd.f32 %v1273, %v1576
    %1578 = vmatprep.mubr.bf16.mxu0 %v1229
    %1579 = vmatmul.mubr.bf16.gmra.mrb[0].mxu0 %v1228
    %v1580 = vpop.f32.mrb[0].mxu0
    %v1581 = vadd.f32 %v1269, %v1580
    %v1582 = vpop.f32.mrb[0].mxu0
    %v1583 = vadd.f32 %v1273, %v1582
    %v1584 = vpop.f32.mrb[0].mxu0
    %v1585 = vadd.f32 %v1269, %v1584
    %v1586 = vpop.f32.mrb[0].mxu0
    %v1587 = vadd.f32 %v1273, %v1586
    %1588 = vmatprep.mubr.bf16.mxu0 %v1231
    %1589 = vmatmul.mubr.bf16.gmra.mrb[0].mxu0 %v1230
    %v1590 = vpop.f32.mrb[0].mxu0
    %v1591 = vadd.f32 %v1269, %v1590
    %v1592 = vpop.f32.mrb[0].mxu0
    %v1593 = vadd.f32 %v1273, %v1592
    %v1594 = vpop.f32.mrb[0].mxu0
    %v1595 = vpop.f32.mrb[0].mxu0
    %1596 = vdwg.mxu0
    %v1597 = vmul.f32 %v1471, 0.01
    %v1598 = vmul.f32 %v1473, 0.01
    %v1599 = vmul.f32 %v1475, 0.01
    %v1600 = vmul.f32 %v1477, 0.01
    %v1601 = vmul.f32 %v1481, 0.01
    %v1602 = vmul.f32 %v1483, 0.01
    %v1603 = vmul.f32 %v1485, 0.01
    %v1604 = vmul.f32 %v1487, 0.01
    %v1605 = vmul.f32 %v1491, 0.01
    %v1606 = vmul.f32 %v1493, 0.01
    %v1607 = vmul.f32 %v1495, 0.01
    %v1608 = vmul.f32 %v1497, 0.01
    %v1609 = vmul.f32 %v1501, 0.01
    %v1610 = vmul.f32 %v1503, 0.01
    %v1611 = vmul.f32 %v1505, 0.01
    %v1612 = vmul.f32 %v1507, 0.01
    %v1613 = vmul.f32 %v1511, 0.01
    %v1614 = vmul.f32 %v1513, 0.01
    %v1615 = vmul.f32 %v1515, 0.01
    %v1616 = vmul.f32 %v1517, 0.01
    %v1617 = vmul.f32 %v1521, 0.01
    %v1618 = vmul.f32 %v1523, 0.01
    %v1619 = vmul.f32 %v1525, 0.01
    %v1620 = vmul.f32 %v1527, 0.01
    %v1621 = vmul.f32 %v1531, 0.01
    %v1622 = vmul.f32 %v1533, 0.01
    %v1623 = vmul.f32 %v1535, 0.01
    %v1624 = vmul.f32 %v1537, 0.01
    %v1625 = vmul.f32 %v1541, 0.01
    %v1626 = vmul.f32 %v1543, 0.01
    %v1627 = vmul.f32 %v1545, 0.01
    %v1628 = vmul.f32 %v1547, 0.01
    %v1629 = vmul.f32 %v1551, 0.01
    %v1630 = vmul.f32 %v1553, 0.01
    %v1631 = vmul.f32 %v1555, 0.01
    %v1632 = vmul.f32 %v1557, 0.01
    %v1633 = vmul.f32 %v1561, 0.01
    %v1634 = vmul.f32 %v1563, 0.01
    %v1635 = vmul.f32 %v1565, 0.01
    %v1636 = vmul.f32 %v1567, 0.01
    %v1637 = vmul.f32 %v1571, 0.01
    %v1638 = vmul.f32 %v1573, 0.01
    %v1639 = vmul.f32 %v1575, 0.01
    %v1640 = vmul.f32 %v1577, 0.01
    %v1641 = vmul.f32 %v1581, 0.01
    %v1642 = vmul.f32 %v1583, 0.01
    %v1643 = vmul.f32 %v1585, 0.01
    %v1644 = vmul.f32 %v1587, 0.01
    %v1645 = vmul.f32 %v1591, 0.01
    %v1646 = vmul.f32 %v1593, 0.01
    %v1647 = vmax.f32 %v1471, %v1597
    %v1648 = vmax.f32 %v1473, %v1598
    %v1649 = vmax.f32 %v1475, %v1599
    %v1650 = vmax.f32 %v1477, %v1600
    %v1651 = vmax.f32 %v1481, %v1601
    %v1652 = vmax.f32 %v1483, %v1602
    %v1653 = vmax.f32 %v1485, %v1603
    %v1654 = vmax.f32 %v1487, %v1604
    %v1655 = vmax.f32 %v1491, %v1605
    %v1656 = vmax.f32 %v1493, %v1606
    %v1657 = vmax.f32 %v1495, %v1607
    %v1658 = vmax.f32 %v1497, %v1608
    %v1659 = vmax.f32 %v1501, %v1609
    %v1660 = vmax.f32 %v1503, %v1610
    %v1661 = vmax.f32 %v1505, %v1611
    %v1662 = vmax.f32 %v1507, %v1612
    %v1663 = vmax.f32 %v1511, %v1613
    %v1664 = vmax.f32 %v1513, %v1614
    %v1665 = vmax.f32 %v1515, %v1615
    %v1666 = vmax.f32 %v1517, %v1616
    %v1667 = vmax.f32 %v1521, %v1617
    %v1668 = vmax.f32 %v1523, %v1618
    %v1669 = vmax.f32 %v1525, %v1619
    %v1670 = vmax.f32 %v1527, %v1620
    %v1671 = vmax.f32 %v1531, %v1621
    %v1672 = vmax.f32 %v1533, %v1622
    %v1673 = vmax.f32 %v1535, %v1623
    %v1674 = vmax.f32 %v1537, %v1624
    %v1675 = vmax.f32 %v1541, %v1625
    %v1676 = vmax.f32 %v1543, %v1626
    %v1677 = vmax.f32 %v1545, %v1627
    %v1678 = vmax.f32 %v1547, %v1628
    %v1679 = vmax.f32 %v1551, %v1629
    %v1680 = vmax.f32 %v1553, %v1630
    %v1681 = vmax.f32 %v1555, %v1631
    %v1682 = vmax.f32 %v1557, %v1632
    %v1683 = vmax.f32 %v1561, %v1633
    %v1684 = vmax.f32 %v1563, %v1634
    %v1685 = vmax.f32 %v1565, %v1635
    %v1686 = vmax.f32 %v1567, %v1636
    %v1687 = vmax.f32 %v1571, %v1637
    %v1688 = vmax.f32 %v1573, %v1638
    %v1689 = vmax.f32 %v1575, %v1639
    %v1690 = vmax.f32 %v1577, %v1640
    %v1691 = vmax.f32 %v1581, %v1641
    %v1692 = vmax.f32 %v1583, %v1642
    %v1693 = vmax.f32 %v1585, %v1643
    %v1694 = vmax.f32 %v1587, %v1644
    %v1695 = vmax.f32 %v1591, %v1645
    %v1696 = vmax.f32 %v1593, %v1646
    %v1697 = vld [vmem:[%s1] sm:$0xf]
    %v1698 = vld [vmem:[%s1 + $0x4] sm:$0xf]
    %v1699 = vld [vmem:[%s1 + $0x8] sm:$0xf]
    %v1700 = vld [vmem:[%s1 + $0xc] sm:$0xf]
    %v1701 = vld [vmem:[%s1 + $0x10] sm:$0xf]
    %v1702 = vld [vmem:[%s1 + $0x14] sm:$0xf]
    %v1703 = vld [vmem:[%s1 + $0x18] sm:$0xf]
    %v1704 = vld [vmem:[%s1 + $0x1c] sm:$0xf]
    %v1705 = vld [vmem:[%s1 + $0x20] sm:$0xf]
    %v1706 = vld [vmem:[%s1 + $0x24] sm:$0xf]
    %v1707 = vld [vmem:[%s1 + $0x28] sm:$0xf]
    %v1708 = vld [vmem:[%s1 + $0x2c] sm:$0xf]
    %v1709 = vld [vmem:[%s1 + $0x30] sm:$0xf]
    %v1710 = vld [vmem:[%s1 + $0x34] sm:$0xf]
    %v1711 = vld [vmem:[%s1 + $0x38] sm:$0xf]
    %v1712 = vld [vmem:[%s1 + $0x3c] sm:$0xf]
    %v1713 = vld [vmem:[%s1 + $0x40] sm:$0xf]
    %v1714 = vld [vmem:[%s1 + $0x44] sm:$0xf]
    %v1715 = vld [vmem:[%s1 + $0x48] sm:$0xf]
    %v1716 = vld [vmem:[%s1 + $0x4c] sm:$0xf]
    %v1717 = vld [vmem:[%s1 + $0x50] sm:$0xf]
    %v1718 = vld [vmem:[%s1 + $0x54] sm:$0xf]
    %v1719 = vld [vmem:[%s1 + $0x58] sm:$0xf]
    %v1720 = vld [vmem:[%s1 + $0x5c] sm:$0xf]
    %v1721 = vld [vmem:[%s1 + $0x60] sm:$0xf]
    %v1722 = vunpack.c.l.bf16 %v1697
    %v1723 = vunpack.c.l.bf16 %v1698
    %v1724 = vunpack.c.l.bf16 %v1699
    %v1725 = vunpack.c.l.bf16 %v1700
    %v1726 = vunpack.c.l.bf16 %v1701
    %v1727 = vunpack.c.l.bf16 %v1702
    %v1728 = vunpack.c.l.bf16 %v1703
    %v1729 = vunpack.c.l.bf16 %v1704
    %v1730 = vunpack.c.l.bf16 %v1705
    %v1731 = vunpack.c.l.bf16 %v1706
    %v1732 = vunpack.c.l.bf16 %v1707
    %v1733 = vunpack.c.l.bf16 %v1708
    %v1734 = vunpack.c.l.bf16 %v1709
    %v1735 = vunpack.c.l.bf16 %v1710
    %v1736 = vunpack.c.l.bf16 %v1711
    %v1737 = vunpack.c.l.bf16 %v1712
    %v1738 = vunpack.c.l.bf16 %v1713
    %v1739 = vunpack.c.l.bf16 %v1714
    %v1740 = vunpack.c.l.bf16 %v1715
    %v1741 = vunpack.c.l.bf16 %v1716
    %v1742 = vunpack.c.l.bf16 %v1717
    %v1743 = vunpack.c.l.bf16 %v1718
    %v1744 = vunpack.c.l.bf16 %v1719
    %v1745 = vunpack.c.l.bf16 %v1720
    %v1746 = vunpack.c.l.bf16 %v1721
    %v1747 = vld [vmem:[%s8] sm:$0xf]
    %v1748 = vunpack.c.l.bf16 %v1747
    %1750 = vset.pattern.permute.xlu0 0
    %1751 = vperm.xlu0 %1750, %v1722
    %v1752 = vpop.permute.xlu0 %1751
    %1755 = vset.pattern.permute.xlu0 0
    %1756 = vperm.xlu0 %1755, %v1723
    %v1757 = vpop.permute.xlu0 %1756
    %1760 = vset.pattern.permute.xlu0 0
    %1761 = vperm.xlu0 %1760, %v1724
    %v1762 = vpop.permute.xlu0 %1761
    %1765 = vset.pattern.permute.xlu0 0
    %1766 = vperm.xlu0 %1765, %v1725
    %v1767 = vpop.permute.xlu0 %1766
    %1770 = vset.pattern.permute.xlu0 0
    %1771 = vperm.xlu0 %1770, %v1726
    %v1772 = vpop.permute.xlu0 %1771
    %1775 = vset.pattern.permute.xlu0 0
    %1776 = vperm.xlu0 %1775, %v1727
    %v1777 = vpop.permute.xlu0 %1776
    %1780 = vset.pattern.permute.xlu0 0
    %1781 = vperm.xlu0 %1780, %v1728
    %v1782 = vpop.permute.xlu0 %1781
    %1785 = vset.pattern.permute.xlu0 0
    %1786 = vperm.xlu0 %1785, %v1729
    %v1787 = vpop.permute.xlu0 %1786
    %1790 = vset.pattern.permute.xlu0 0
    %1791 = vperm.xlu0 %1790, %v1730
    %v1792 = vpop.permute.xlu0 %1791
    %1795 = vset.pattern.permute.xlu0 0
    %1796 = vperm.xlu0 %1795, %v1731
    %v1797 = vpop.permute.xlu0 %1796
    %1800 = vset.pattern.permute.xlu0 0
    %1801 = vperm.xlu0 %1800, %v1732
    %v1802 = vpop.permute.xlu0 %1801
    %1805 = vset.pattern.permute.xlu0 0
    %1806 = vperm.xlu0 %1805, %v1733
    %v1807 = vpop.permute.xlu0 %1806
    %1810 = vset.pattern.permute.xlu0 0
    %1811 = vperm.xlu0 %1810, %v1734
    %v1812 = vpop.permute.xlu0 %1811
    %1815 = vset.pattern.permute.xlu0 0
    %1816 = vperm.xlu0 %1815, %v1735
    %v1817 = vpop.permute.xlu0 %1816
    %1820 = vset.pattern.permute.xlu0 0
    %1821 = vperm.xlu0 %1820, %v1736
    %v1822 = vpop.permute.xlu0 %1821
    %1825 = vset.pattern.permute.xlu0 0
    %1826 = vperm.xlu0 %1825, %v1737
    %v1827 = vpop.permute.xlu0 %1826
    %1830 = vset.pattern.permute.xlu0 0
    %1831 = vperm.xlu0 %1830, %v1738
    %v1832 = vpop.permute.xlu0 %1831
    %1835 = vset.pattern.permute.xlu0 0
    %1836 = vperm.xlu0 %1835, %v1739
    %v1837 = vpop.permute.xlu0 %1836
    %1840 = vset.pattern.permute.xlu0 0
    %1841 = vperm.xlu0 %1840, %v1740
    %v1842 = vpop.permute.xlu0 %1841
    %1845 = vset.pattern.permute.xlu0 0
    %1846 = vperm.xlu0 %1845, %v1741
    %v1847 = vpop.permute.xlu0 %1846
    %1850 = vset.pattern.permute.xlu0 0
    %1851 = vperm.xlu0 %1850, %v1742
    %v1852 = vpop.permute.xlu0 %1851
    %1855 = vset.pattern.permute.xlu0 0
    %1856 = vperm.xlu0 %1855, %v1743
    %v1857 = vpop.permute.xlu0 %1856
    %1860 = vset.pattern.permute.xlu0 0
    %1861 = vperm.xlu0 %1860, %v1744
    %v1862 = vpop.permute.xlu0 %1861
    %1865 = vset.pattern.permute.xlu0 0
    %1866 = vperm.xlu0 %1865, %v1745
    %v1867 = vpop.permute.xlu0 %1866
    %1870 = vset.pattern.permute.xlu0 0
    %1871 = vperm.xlu0 %1870, %v1746
    %v1872 = vpop.permute.xlu0 %1871
    %v1875 = vlaneseq
    %v1876 = vshrl.u32 %v1875, 7
    %v1877 = vsub.s32 0, %v1876
    %v1878 = vrot.slane %v1748, %v1877
    %v1879 = vlaneseq
    %v1880 = vshrl.u32 %v1879, 7
    %v1881 = vsub.s32 4, %v1880
    %v1882 = vrot.slane %v1748, %v1881
    %v1885 = vlaneseq
    %v1886 = vshrl.u32 %v1885, 7
    %v1887 = vsub.s32 0, %v1886
    %v1888 = vrot.slane %v1878, %v1887
    %v1889 = vlaneseq
    %v1890 = vshrl.u32 %v1889, 7
    %v1891 = vsub.s32 0, %v1890
    %v1892 = vrot.slane %v1882, %v1891
    %v1893 = vmul.f32 %v1752, %v1888
    %v1894 = vmul.f32 %v1752, %v1892
    %v1895 = vmul.f32 %v1757, %v1888
    %v1896 = vmul.f32 %v1757, %v1892
    %v1897 = vmul.f32 %v1762, %v1888
    %v1898 = vmul.f32 %v1762, %v1892
    %v1899 = vmul.f32 %v1767, %v1888
    %v1900 = vmul.f32 %v1767, %v1892
    %v1901 = vmul.f32 %v1772, %v1888
    %v1902 = vmul.f32 %v1772, %v1892
    %v1903 = vmul.f32 %v1777, %v1888
    %v1904 = vmul.f32 %v1777, %v1892
    %v1905 = vmul.f32 %v1782, %v1888
    %v1906 = vmul.f32 %v1782, %v1892
    %v1907 = vmul.f32 %v1787, %v1888
    %v1908 = vmul.f32 %v1787, %v1892
    %v1909 = vmul.f32 %v1792, %v1888
    %v1910 = vmul.f32 %v1792, %v1892
    %v1911 = vmul.f32 %v1797, %v1888
    %v1912 = vmul.f32 %v1797, %v1892
    %v1913 = vmul.f32 %v1802, %v1888
    %v1914 = vmul.f32 %v1802, %v1892
    %v1915 = vmul.f32 %v1807, %v1888
    %v1916 = vmul.f32 %v1807, %v1892
    %v1917 = vmul.f32 %v1812, %v1888
    %v1918 = vmul.f32 %v1812, %v1892
    %v1919 = vmul.f32 %v1817, %v1888
    %v1920 = vmul.f32 %v1817, %v1892
    %v1921 = vmul.f32 %v1822, %v1888
    %v1922 = vmul.f32 %v1822, %v1892
    %v1923 = vmul.f32 %v1827, %v1888
    %v1924 = vmul.f32 %v1827, %v1892
    %v1925 = vmul.f32 %v1832, %v1888
    %v1926 = vmul.f32 %v1832, %v1892
    %v1927 = vmul.f32 %v1837, %v1888
    %v1928 = vmul.f32 %v1837, %v1892
    %v1929 = vmul.f32 %v1842, %v1888
    %v1930 = vmul.f32 %v1842, %v1892
    %v1931 = vmul.f32 %v1847, %v1888
    %v1932 = vmul.f32 %v1847, %v1892
    %v1933 = vmul.f32 %v1852, %v1888
    %v1934 = vmul.f32 %v1852, %v1892
    %v1935 = vmul.f32 %v1857, %v1888
    %v1936 = vmul.f32 %v1857, %v1892
    %v1937 = vmul.f32 %v1862, %v1888
    %v1938 = vmul.f32 %v1862, %v1892
    %v1939 = vmul.f32 %v1867, %v1888
    %v1940 = vmul.f32 %v1867, %v1892
    %v1941 = vmul.f32 %v1872, %v1888
    %v1942 = vmul.f32 %v1872, %v1892
    %1943 = vset.pattern.permute.xlu0 1
    %1944 = vperm.xlu0 %1943, %v1722
    %v1945 = vpop.permute.xlu0 %1944
    %1947 = vset.pattern.permute.xlu0 1
    %1948 = vperm.xlu0 %1947, %v1723
    %v1949 = vpop.permute.xlu0 %1948
    %1951 = vset.pattern.permute.xlu0 1
    %1952 = vperm.xlu0 %1951, %v1724
    %v1953 = vpop.permute.xlu0 %1952
    %1955 = vset.pattern.permute.xlu0 1
    %1956 = vperm.xlu0 %1955, %v1725
    %v1957 = vpop.permute.xlu0 %1956
    %1959 = vset.pattern.permute.xlu0 1
    %1960 = vperm.xlu0 %1959, %v1726
    %v1961 = vpop.permute.xlu0 %1960
    %1963 = vset.pattern.permute.xlu0 1
    %1964 = vperm.xlu0 %1963, %v1727
    %v1965 = vpop.permute.xlu0 %1964
    %1967 = vset.pattern.permute.xlu0 1
    %1968 = vperm.xlu0 %1967, %v1728
    %v1969 = vpop.permute.xlu0 %1968
    %1971 = vset.pattern.permute.xlu0 1
    %1972 = vperm.xlu0 %1971, %v1729
    %v1973 = vpop.permute.xlu0 %1972
    %1975 = vset.pattern.permute.xlu0 1
    %1976 = vperm.xlu0 %1975, %v1730
    %v1977 = vpop.permute.xlu0 %1976
    %1979 = vset.pattern.permute.xlu0 1
    %1980 = vperm.xlu0 %1979, %v1731
    %v1981 = vpop.permute.xlu0 %1980
    %1983 = vset.pattern.permute.xlu0 1
    %1984 = vperm.xlu0 %1983, %v1732
    %v1985 = vpop.permute.xlu0 %1984
    %1987 = vset.pattern.permute.xlu0 1
    %1988 = vperm.xlu0 %1987, %v1733
    %v1989 = vpop.permute.xlu0 %1988
    %1991 = vset.pattern.permute.xlu0 1
    %1992 = vperm.xlu0 %1991, %v1734
    %v1993 = vpop.permute.xlu0 %1992
    %1995 = vset.pattern.permute.xlu0 1
    %1996 = vperm.xlu0 %1995, %v1735
    %v1997 = vpop.permute.xlu0 %1996
    %1999 = vset.pattern.permute.xlu0 1
    %2000 = vperm.xlu0 %1999, %v1736
    %v2001 = vpop.permute.xlu0 %2000
    %2003 = vset.pattern.permute.xlu0 1
    %2004 = vperm.xlu0 %2003, %v1737
    %v2005 = vpop.permute.xlu0 %2004
    %2007 = vset.pattern.permute.xlu0 1
    %2008 = vperm.xlu0 %2007, %v1738
    %v2009 = vpop.permute.xlu0 %2008
    %2011 = vset.pattern.permute.xlu0 1
    %2012 = vperm.xlu0 %2011, %v1739
    %v2013 = vpop.permute.xlu0 %2012
    %2015 = vset.pattern.permute.xlu0 1
    %2016 = vperm.xlu0 %2015, %v1740
    %v2017 = vpop.permute.xlu0 %2016
    %2019 = vset.pattern.permute.xlu0 1
    %2020 = vperm.xlu0 %2019, %v1741
    %v2021 = vpop.permute.xlu0 %2020
    %2023 = vset.pattern.permute.xlu0 1
    %2024 = vperm.xlu0 %2023, %v1742
    %v2025 = vpop.permute.xlu0 %2024
    %2027 = vset.pattern.permute.xlu0 1
    %2028 = vperm.xlu0 %2027, %v1743
    %v2029 = vpop.permute.xlu0 %2028
    %2031 = vset.pattern.permute.xlu0 1
    %2032 = vperm.xlu0 %2031, %v1744
    %v2033 = vpop.permute.xlu0 %2032
    %2035 = vset.pattern.permute.xlu0 1
    %2036 = vperm.xlu0 %2035, %v1745
    %v2037 = vpop.permute.xlu0 %2036
    %2039 = vset.pattern.permute.xlu0 1
    %2040 = vperm.xlu0 %2039, %v1746
    %v2041 = vpop.permute.xlu0 %2040
    %v2043 = vlaneseq
    %v2044 = vshrl.u32 %v2043, 7
    %v2045 = vsub.s32 1, %v2044
    %v2046 = vrot.slane %v1748, %v2045
    %v2047 = vlaneseq
    %v2048 = vshrl.u32 %v2047, 7
    %v2049 = vsub.s32 5, %v2048
    %v2050 = vrot.slane %v1748, %v2049
    %v2053 = vlaneseq
    %v2054 = vshrl.u32 %v2053, 7
    %v2055 = vsub.s32 1, %v2054
    %v2056 = vrot.slane %v2046, %v2055
    %v2057 = vlaneseq
    %v2058 = vshrl.u32 %v2057, 7
    %v2059 = vsub.s32 1, %v2058
    %v2060 = vrot.slane %v2050, %v2059
    %v2061 = vmul.f32 %v1945, %v2056
    %v2062 = vmul.f32 %v1945, %v2060
    %v2063 = vmul.f32 %v1949, %v2056
    %v2064 = vmul.f32 %v1949, %v2060
    %v2065 = vmul.f32 %v1953, %v2056
    %v2066 = vmul.f32 %v1953, %v2060
    %v2067 = vmul.f32 %v1957, %v2056
    %v2068 = vmul.f32 %v1957, %v2060
    %v2069 = vmul.f32 %v1961, %v2056
    %v2070 = vmul.f32 %v1961, %v2060
    %v2071 = vmul.f32 %v1965, %v2056
    %v2072 = vmul.f32 %v1965, %v2060
    %v2073 = vmul.f32 %v1969, %v2056
    %v2074 = vmul.f32 %v1969, %v2060
    %v2075 = vmul.f32 %v1973, %v2056
    %v2076 = vmul.f32 %v1973, %v2060
    %v2077 = vmul.f32 %v1977, %v2056
    %v2078 = vmul.f32 %v1977, %v2060
    %v2079 = vmul.f32 %v1981, %v2056
    %v2080 = vmul.f32 %v1981, %v2060
    %v2081 = vmul.f32 %v1985, %v2056
    %v2082 = vmul.f32 %v1985, %v2060
    %v2083 = vmul.f32 %v1989, %v2056
    %v2084 = vmul.f32 %v1989, %v2060
    %v2085 = vmul.f32 %v1993, %v2056
    %v2086 = vmul.f32 %v1993, %v2060
    %v2087 = vmul.f32 %v1997, %v2056
    %v2088 = vmul.f32 %v1997, %v2060
    %v2089 = vmul.f32 %v2001, %v2056
    %v2090 = vmul.f32 %v2001, %v2060
    %v2091 = vmul.f32 %v2005, %v2056
    %v2092 = vmul.f32 %v2005, %v2060
    %v2093 = vmul.f32 %v2009, %v2056
    %v2094 = vmul.f32 %v2009, %v2060
    %v2095 = vmul.f32 %v2013, %v2056
    %v2096 = vmul.f32 %v2013, %v2060
    %v2097 = vmul.f32 %v2017, %v2056
    %v2098 = vmul.f32 %v2017, %v2060
    %v2099 = vmul.f32 %v2021, %v2056
    %v2100 = vmul.f32 %v2021, %v2060
    %v2101 = vmul.f32 %v2025, %v2056
    %v2102 = vmul.f32 %v2025, %v2060
    %v2103 = vmul.f32 %v2029, %v2056
    %v2104 = vmul.f32 %v2029, %v2060
    %v2105 = vmul.f32 %v2033, %v2056
    %v2106 = vmul.f32 %v2033, %v2060
    %v2107 = vmul.f32 %v2037, %v2056
    %v2108 = vmul.f32 %v2037, %v2060
    %v2109 = vmul.f32 %v2041, %v2056
    %v2110 = vmul.f32 %v2041, %v2060
    %v2111 = vadd.f32 %v1893, %v2061
    %v2112 = vadd.f32 %v1894, %v2062
    %v2113 = vadd.f32 %v1895, %v2063
    %v2114 = vadd.f32 %v1896, %v2064
    %v2115 = vadd.f32 %v1897, %v2065
    %v2116 = vadd.f32 %v1898, %v2066
    %v2117 = vadd.f32 %v1899, %v2067
    %v2118 = vadd.f32 %v1900, %v2068
    %v2119 = vadd.f32 %v1901, %v2069
    %v2120 = vadd.f32 %v1902, %v2070
    %v2121 = vadd.f32 %v1903, %v2071
    %v2122 = vadd.f32 %v1904, %v2072
    %v2123 = vadd.f32 %v1905, %v2073
    %v2124 = vadd.f32 %v1906, %v2074
    %v2125 = vadd.f32 %v1907, %v2075
    %v2126 = vadd.f32 %v1908, %v2076
    %v2127 = vadd.f32 %v1909, %v2077
    %v2128 = vadd.f32 %v1910, %v2078
    %v2129 = vadd.f32 %v1911, %v2079
    %v2130 = vadd.f32 %v1912, %v2080
    %v2131 = vadd.f32 %v1913, %v2081
    %v2132 = vadd.f32 %v1914, %v2082
    %v2133 = vadd.f32 %v1915, %v2083
    %v2134 = vadd.f32 %v1916, %v2084
    %v2135 = vadd.f32 %v1917, %v2085
    %v2136 = vadd.f32 %v1918, %v2086
    %v2137 = vadd.f32 %v1919, %v2087
    %v2138 = vadd.f32 %v1920, %v2088
    %v2139 = vadd.f32 %v1921, %v2089
    %v2140 = vadd.f32 %v1922, %v2090
    %v2141 = vadd.f32 %v1923, %v2091
    %v2142 = vadd.f32 %v1924, %v2092
    %v2143 = vadd.f32 %v1925, %v2093
    %v2144 = vadd.f32 %v1926, %v2094
    %v2145 = vadd.f32 %v1927, %v2095
    %v2146 = vadd.f32 %v1928, %v2096
    %v2147 = vadd.f32 %v1929, %v2097
    %v2148 = vadd.f32 %v1930, %v2098
    %v2149 = vadd.f32 %v1931, %v2099
    %v2150 = vadd.f32 %v1932, %v2100
    %v2151 = vadd.f32 %v1933, %v2101
    %v2152 = vadd.f32 %v1934, %v2102
    %v2153 = vadd.f32 %v1935, %v2103
    %v2154 = vadd.f32 %v1936, %v2104
    %v2155 = vadd.f32 %v1937, %v2105
    %v2156 = vadd.f32 %v1938, %v2106
    %v2157 = vadd.f32 %v1939, %v2107
    %v2158 = vadd.f32 %v1940, %v2108
    %v2159 = vadd.f32 %v1941, %v2109
    %v2160 = vadd.f32 %v1942, %v2110
    %2161 = vset.pattern.permute.xlu0 2
    %2162 = vperm.xlu0 %2161, %v1722
    %v2163 = vpop.permute.xlu0 %2162
    %2165 = vset.pattern.permute.xlu0 2
    %2166 = vperm.xlu0 %2165, %v1723
    %v2167 = vpop.permute.xlu0 %2166
    %2169 = vset.pattern.permute.xlu0 2
    %2170 = vperm.xlu0 %2169, %v1724
    %v2171 = vpop.permute.xlu0 %2170
    %2173 = vset.pattern.permute.xlu0 2
    %2174 = vperm.xlu0 %2173, %v1725
    %v2175 = vpop.permute.xlu0 %2174
    %2177 = vset.pattern.permute.xlu0 2
    %2178 = vperm.xlu0 %2177, %v1726
    %v2179 = vpop.permute.xlu0 %2178
    %2181 = vset.pattern.permute.xlu0 2
    %2182 = vperm.xlu0 %2181, %v1727
    %v2183 = vpop.permute.xlu0 %2182
    %2185 = vset.pattern.permute.xlu0 2
    %2186 = vperm.xlu0 %2185, %v1728
    %v2187 = vpop.permute.xlu0 %2186
    %2189 = vset.pattern.permute.xlu0 2
    %2190 = vperm.xlu0 %2189, %v1729
    %v2191 = vpop.permute.xlu0 %2190
    %2193 = vset.pattern.permute.xlu0 2
    %2194 = vperm.xlu0 %2193, %v1730
    %v2195 = vpop.permute.xlu0 %2194
    %2197 = vset.pattern.permute.xlu0 2
    %2198 = vperm.xlu0 %2197, %v1731
    %v2199 = vpop.permute.xlu0 %2198
    %2201 = vset.pattern.permute.xlu0 2
    %2202 = vperm.xlu0 %2201, %v1732
    %v2203 = vpop.permute.xlu0 %2202
    %2205 = vset.pattern.permute.xlu0 2
    %2206 = vperm.xlu0 %2205, %v1733
    %v2207 = vpop.permute.xlu0 %2206
    %2209 = vset.pattern.permute.xlu0 2
    %2210 = vperm.xlu0 %2209, %v1734
    %v2211 = vpop.permute.xlu0 %2210
    %2213 = vset.pattern.permute.xlu0 2
    %2214 = vperm.xlu0 %2213, %v1735
    %v2215 = vpop.permute.xlu0 %2214
    %2217 = vset.pattern.permute.xlu0 2
    %2218 = vperm.xlu0 %2217, %v1736
    %v2219 = vpop.permute.xlu0 %2218
    %2221 = vset.pattern.permute.xlu0 2
    %2222 = vperm.xlu0 %2221, %v1737
    %v2223 = vpop.permute.xlu0 %2222
    %2225 = vset.pattern.permute.xlu0 2
    %2226 = vperm.xlu0 %2225, %v1738
    %v2227 = vpop.permute.xlu0 %2226
    %2229 = vset.pattern.permute.xlu0 2
    %2230 = vperm.xlu0 %2229, %v1739
    %v2231 = vpop.permute.xlu0 %2230
    %2233 = vset.pattern.permute.xlu0 2
    %2234 = vperm.xlu0 %2233, %v1740
    %v2235 = vpop.permute.xlu0 %2234
    %2237 = vset.pattern.permute.xlu0 2
    %2238 = vperm.xlu0 %2237, %v1741
    %v2239 = vpop.permute.xlu0 %2238
    %2241 = vset.pattern.permute.xlu0 2
    %2242 = vperm.xlu0 %2241, %v1742
    %v2243 = vpop.permute.xlu0 %2242
    %2245 = vset.pattern.permute.xlu0 2
    %2246 = vperm.xlu0 %2245, %v1743
    %v2247 = vpop.permute.xlu0 %2246
    %2249 = vset.pattern.permute.xlu0 2
    %2250 = vperm.xlu0 %2249, %v1744
    %v2251 = vpop.permute.xlu0 %2250
    %2253 = vset.pattern.permute.xlu0 2
    %2254 = vperm.xlu0 %2253, %v1745
    %v2255 = vpop.permute.xlu0 %2254
    %2257 = vset.pattern.permute.xlu0 2
    %2258 = vperm.xlu0 %2257, %v1746
    %v2259 = vpop.permute.xlu0 %2258
    %v2261 = vlaneseq
    %v2262 = vshrl.u32 %v2261, 7
    %v2263 = vsub.s32 2, %v2262
    %v2264 = vrot.slane %v1748, %v2263
    %v2265 = vlaneseq
    %v2266 = vshrl.u32 %v2265, 7
    %v2267 = vsub.s32 6, %v2266
    %v2268 = vrot.slane %v1748, %v2267
    %v2271 = vlaneseq
    %v2272 = vshrl.u32 %v2271, 7
    %v2273 = vsub.s32 2, %v2272
    %v2274 = vrot.slane %v2264, %v2273
    %v2275 = vlaneseq
    %v2276 = vshrl.u32 %v2275, 7
    %v2277 = vsub.s32 2, %v2276
    %v2278 = vrot.slane %v2268, %v2277
    %v2279 = vmul.f32 %v2163, %v2274
    %v2280 = vmul.f32 %v2163, %v2278
    %v2281 = vmul.f32 %v2167, %v2274
    %v2282 = vmul.f32 %v2167, %v2278
    %v2283 = vmul.f32 %v2171, %v2274
    %v2284 = vmul.f32 %v2171, %v2278
    %v2285 = vmul.f32 %v2175, %v2274
    %v2286 = vmul.f32 %v2175, %v2278
    %v2287 = vmul.f32 %v2179, %v2274
    %v2288 = vmul.f32 %v2179, %v2278
    %v2289 = vmul.f32 %v2183, %v2274
    %v2290 = vmul.f32 %v2183, %v2278
    %v2291 = vmul.f32 %v2187, %v2274
    %v2292 = vmul.f32 %v2187, %v2278
    %v2293 = vmul.f32 %v2191, %v2274
    %v2294 = vmul.f32 %v2191, %v2278
    %v2295 = vmul.f32 %v2195, %v2274
    %v2296 = vmul.f32 %v2195, %v2278
    %v2297 = vmul.f32 %v2199, %v2274
    %v2298 = vmul.f32 %v2199, %v2278
    %v2299 = vmul.f32 %v2203, %v2274
    %v2300 = vmul.f32 %v2203, %v2278
    %v2301 = vmul.f32 %v2207, %v2274
    %v2302 = vmul.f32 %v2207, %v2278
    %v2303 = vmul.f32 %v2211, %v2274
    %v2304 = vmul.f32 %v2211, %v2278
    %v2305 = vmul.f32 %v2215, %v2274
    %v2306 = vmul.f32 %v2215, %v2278
    %v2307 = vmul.f32 %v2219, %v2274
    %v2308 = vmul.f32 %v2219, %v2278
    %v2309 = vmul.f32 %v2223, %v2274
    %v2310 = vmul.f32 %v2223, %v2278
    %v2311 = vmul.f32 %v2227, %v2274
    %v2312 = vmul.f32 %v2227, %v2278
    %v2313 = vmul.f32 %v2231, %v2274
    %v2314 = vmul.f32 %v2231, %v2278
    %v2315 = vmul.f32 %v2235, %v2274
    %v2316 = vmul.f32 %v2235, %v2278
    %v2317 = vmul.f32 %v2239, %v2274
    %v2318 = vmul.f32 %v2239, %v2278
    %v2319 = vmul.f32 %v2243, %v2274
    %v2320 = vmul.f32 %v2243, %v2278
    %v2321 = vmul.f32 %v2247, %v2274
    %v2322 = vmul.f32 %v2247, %v2278
    %v2323 = vmul.f32 %v2251, %v2274
    %v2324 = vmul.f32 %v2251, %v2278
    %v2325 = vmul.f32 %v2255, %v2274
    %v2326 = vmul.f32 %v2255, %v2278
    %v2327 = vmul.f32 %v2259, %v2274
    %v2328 = vmul.f32 %v2259, %v2278
    %v2329 = vadd.f32 %v2111, %v2279
    %v2330 = vadd.f32 %v2112, %v2280
    %v2331 = vadd.f32 %v2113, %v2281
    %v2332 = vadd.f32 %v2114, %v2282
    %v2333 = vadd.f32 %v2115, %v2283
    %v2334 = vadd.f32 %v2116, %v2284
    %v2335 = vadd.f32 %v2117, %v2285
    %v2336 = vadd.f32 %v2118, %v2286
    %v2337 = vadd.f32 %v2119, %v2287
    %v2338 = vadd.f32 %v2120, %v2288
    %v2339 = vadd.f32 %v2121, %v2289
    %v2340 = vadd.f32 %v2122, %v2290
    %v2341 = vadd.f32 %v2123, %v2291
    %v2342 = vadd.f32 %v2124, %v2292
    %v2343 = vadd.f32 %v2125, %v2293
    %v2344 = vadd.f32 %v2126, %v2294
    %v2345 = vadd.f32 %v2127, %v2295
    %v2346 = vadd.f32 %v2128, %v2296
    %v2347 = vadd.f32 %v2129, %v2297
    %v2348 = vadd.f32 %v2130, %v2298
    %v2349 = vadd.f32 %v2131, %v2299
    %v2350 = vadd.f32 %v2132, %v2300
    %v2351 = vadd.f32 %v2133, %v2301
    %v2352 = vadd.f32 %v2134, %v2302
    %v2353 = vadd.f32 %v2135, %v2303
    %v2354 = vadd.f32 %v2136, %v2304
    %v2355 = vadd.f32 %v2137, %v2305
    %v2356 = vadd.f32 %v2138, %v2306
    %v2357 = vadd.f32 %v2139, %v2307
    %v2358 = vadd.f32 %v2140, %v2308
    %v2359 = vadd.f32 %v2141, %v2309
    %v2360 = vadd.f32 %v2142, %v2310
    %v2361 = vadd.f32 %v2143, %v2311
    %v2362 = vadd.f32 %v2144, %v2312
    %v2363 = vadd.f32 %v2145, %v2313
    %v2364 = vadd.f32 %v2146, %v2314
    %v2365 = vadd.f32 %v2147, %v2315
    %v2366 = vadd.f32 %v2148, %v2316
    %v2367 = vadd.f32 %v2149, %v2317
    %v2368 = vadd.f32 %v2150, %v2318
    %v2369 = vadd.f32 %v2151, %v2319
    %v2370 = vadd.f32 %v2152, %v2320
    %v2371 = vadd.f32 %v2153, %v2321
    %v2372 = vadd.f32 %v2154, %v2322
    %v2373 = vadd.f32 %v2155, %v2323
    %v2374 = vadd.f32 %v2156, %v2324
    %v2375 = vadd.f32 %v2157, %v2325
    %v2376 = vadd.f32 %v2158, %v2326
    %v2377 = vadd.f32 %v2159, %v2327
    %v2378 = vadd.f32 %v2160, %v2328
    %2379 = vset.pattern.permute.xlu0 3
    %2380 = vperm.xlu0 %2379, %v1722
    %v2381 = vpop.permute.xlu0 %2380
    %2383 = vset.pattern.permute.xlu0 3
    %2384 = vperm.xlu0 %2383, %v1723
    %v2385 = vpop.permute.xlu0 %2384
    %2387 = vset.pattern.permute.xlu0 3
    %2388 = vperm.xlu0 %2387, %v1724
    %v2389 = vpop.permute.xlu0 %2388
    %2391 = vset.pattern.permute.xlu0 3
    %2392 = vperm.xlu0 %2391, %v1725
    %v2393 = vpop.permute.xlu0 %2392
    %2395 = vset.pattern.permute.xlu0 3
    %2396 = vperm.xlu0 %2395, %v1726
    %v2397 = vpop.permute.xlu0 %2396
    %2399 = vset.pattern.permute.xlu0 3
    %2400 = vperm.xlu0 %2399, %v1727
    %v2401 = vpop.permute.xlu0 %2400
    %2403 = vset.pattern.permute.xlu0 3
    %2404 = vperm.xlu0 %2403, %v1728
    %v2405 = vpop.permute.xlu0 %2404
    %2407 = vset.pattern.permute.xlu0 3
    %2408 = vperm.xlu0 %2407, %v1729
    %v2409 = vpop.permute.xlu0 %2408
    %2411 = vset.pattern.permute.xlu0 3
    %2412 = vperm.xlu0 %2411, %v1730
    %v2413 = vpop.permute.xlu0 %2412
    %2415 = vset.pattern.permute.xlu0 3
    %2416 = vperm.xlu0 %2415, %v1731
    %v2417 = vpop.permute.xlu0 %2416
    %2419 = vset.pattern.permute.xlu0 3
    %2420 = vperm.xlu0 %2419, %v1732
    %v2421 = vpop.permute.xlu0 %2420
    %2423 = vset.pattern.permute.xlu0 3
    %2424 = vperm.xlu0 %2423, %v1733
    %v2425 = vpop.permute.xlu0 %2424
    %2427 = vset.pattern.permute.xlu0 3
    %2428 = vperm.xlu0 %2427, %v1734
    %v2429 = vpop.permute.xlu0 %2428
    %2431 = vset.pattern.permute.xlu0 3
    %2432 = vperm.xlu0 %2431, %v1735
    %v2433 = vpop.permute.xlu0 %2432
    %2435 = vset.pattern.permute.xlu0 3
    %2436 = vperm.xlu0 %2435, %v1736
    %v2437 = vpop.permute.xlu0 %2436
    %2439 = vset.pattern.permute.xlu0 3
    %2440 = vperm.xlu0 %2439, %v1737
    %v2441 = vpop.permute.xlu0 %2440
    %2443 = vset.pattern.permute.xlu0 3
    %2444 = vperm.xlu0 %2443, %v1738
    %v2445 = vpop.permute.xlu0 %2444
    %2447 = vset.pattern.permute.xlu0 3
    %2448 = vperm.xlu0 %2447, %v1739
    %v2449 = vpop.permute.xlu0 %2448
    %2451 = vset.pattern.permute.xlu0 3
    %2452 = vperm.xlu0 %2451, %v1740
    %v2453 = vpop.permute.xlu0 %2452
    %2455 = vset.pattern.permute.xlu0 3
    %2456 = vperm.xlu0 %2455, %v1741
    %v2457 = vpop.permute.xlu0 %2456
    %2459 = vset.pattern.permute.xlu0 3
    %2460 = vperm.xlu0 %2459, %v1742
    %v2461 = vpop.permute.xlu0 %2460
    %2463 = vset.pattern.permute.xlu0 3
    %2464 = vperm.xlu0 %2463, %v1743
    %v2465 = vpop.permute.xlu0 %2464
    %2467 = vset.pattern.permute.xlu0 3
    %2468 = vperm.xlu0 %2467, %v1744
    %v2469 = vpop.permute.xlu0 %2468
    %2471 = vset.pattern.permute.xlu0 3
    %2472 = vperm.xlu0 %2471, %v1745
    %v2473 = vpop.permute.xlu0 %2472
    %2475 = vset.pattern.permute.xlu0 3
    %2476 = vperm.xlu0 %2475, %v1746
    %v2477 = vpop.permute.xlu0 %2476
    %v2479 = vlaneseq
    %v2480 = vshrl.u32 %v2479, 7
    %v2481 = vsub.s32 3, %v2480
    %v2482 = vrot.slane %v1748, %v2481
    %v2483 = vlaneseq
    %v2484 = vshrl.u32 %v2483, 7
    %v2485 = vsub.s32 7, %v2484
    %v2486 = vrot.slane %v1748, %v2485
    %v2489 = vlaneseq
    %v2490 = vshrl.u32 %v2489, 7
    %v2491 = vsub.s32 3, %v2490
    %v2492 = vrot.slane %v2482, %v2491
    %v2493 = vlaneseq
    %v2494 = vshrl.u32 %v2493, 7
    %v2495 = vsub.s32 3, %v2494
    %v2496 = vrot.slane %v2486, %v2495
    %v2497 = vmul.f32 %v2381, %v2492
    %v2498 = vmul.f32 %v2381, %v2496
    %v2499 = vmul.f32 %v2385, %v2492
    %v2500 = vmul.f32 %v2385, %v2496
    %v2501 = vmul.f32 %v2389, %v2492
    %v2502 = vmul.f32 %v2389, %v2496
    %v2503 = vmul.f32 %v2393, %v2492
    %v2504 = vmul.f32 %v2393, %v2496
    %v2505 = vmul.f32 %v2397, %v2492
    %v2506 = vmul.f32 %v2397, %v2496
    %v2507 = vmul.f32 %v2401, %v2492
    %v2508 = vmul.f32 %v2401, %v2496
    %v2509 = vmul.f32 %v2405, %v2492
    %v2510 = vmul.f32 %v2405, %v2496
    %v2511 = vmul.f32 %v2409, %v2492
    %v2512 = vmul.f32 %v2409, %v2496
    %v2513 = vmul.f32 %v2413, %v2492
    %v2514 = vmul.f32 %v2413, %v2496
    %v2515 = vmul.f32 %v2417, %v2492
    %v2516 = vmul.f32 %v2417, %v2496
    %v2517 = vmul.f32 %v2421, %v2492
    %v2518 = vmul.f32 %v2421, %v2496
    %v2519 = vmul.f32 %v2425, %v2492
    %v2520 = vmul.f32 %v2425, %v2496
    %v2521 = vmul.f32 %v2429, %v2492
    %v2522 = vmul.f32 %v2429, %v2496
    %v2523 = vmul.f32 %v2433, %v2492
    %v2524 = vmul.f32 %v2433, %v2496
    %v2525 = vmul.f32 %v2437, %v2492
    %v2526 = vmul.f32 %v2437, %v2496
    %v2527 = vmul.f32 %v2441, %v2492
    %v2528 = vmul.f32 %v2441, %v2496
    %v2529 = vmul.f32 %v2445, %v2492
    %v2530 = vmul.f32 %v2445, %v2496
    %v2531 = vmul.f32 %v2449, %v2492
    %v2532 = vmul.f32 %v2449, %v2496
    %v2533 = vmul.f32 %v2453, %v2492
    %v2534 = vmul.f32 %v2453, %v2496
    %v2535 = vmul.f32 %v2457, %v2492
    %v2536 = vmul.f32 %v2457, %v2496
    %v2537 = vmul.f32 %v2461, %v2492
    %v2538 = vmul.f32 %v2461, %v2496
    %v2539 = vmul.f32 %v2465, %v2492
    %v2540 = vmul.f32 %v2465, %v2496
    %v2541 = vmul.f32 %v2469, %v2492
    %v2542 = vmul.f32 %v2469, %v2496
    %v2543 = vmul.f32 %v2473, %v2492
    %v2544 = vmul.f32 %v2473, %v2496
    %v2545 = vmul.f32 %v2477, %v2492
    %v2546 = vmul.f32 %v2477, %v2496
    %v2547 = vadd.f32 %v2329, %v2497
    %v2548 = vadd.f32 %v2330, %v2498
    %v2549 = vadd.f32 %v2331, %v2499
    %v2550 = vadd.f32 %v2332, %v2500
    %v2551 = vadd.f32 %v2333, %v2501
    %v2552 = vadd.f32 %v2334, %v2502
    %v2553 = vadd.f32 %v2335, %v2503
    %v2554 = vadd.f32 %v2336, %v2504
    %v2555 = vadd.f32 %v2337, %v2505
    %v2556 = vadd.f32 %v2338, %v2506
    %v2557 = vadd.f32 %v2339, %v2507
    %v2558 = vadd.f32 %v2340, %v2508
    %v2559 = vadd.f32 %v2341, %v2509
    %v2560 = vadd.f32 %v2342, %v2510
    %v2561 = vadd.f32 %v2343, %v2511
    %v2562 = vadd.f32 %v2344, %v2512
    %v2563 = vadd.f32 %v2345, %v2513
    %v2564 = vadd.f32 %v2346, %v2514
    %v2565 = vadd.f32 %v2347, %v2515
    %v2566 = vadd.f32 %v2348, %v2516
    %v2567 = vadd.f32 %v2349, %v2517
    %v2568 = vadd.f32 %v2350, %v2518
    %v2569 = vadd.f32 %v2351, %v2519
    %v2570 = vadd.f32 %v2352, %v2520
    %v2571 = vadd.f32 %v2353, %v2521
    %v2572 = vadd.f32 %v2354, %v2522
    %v2573 = vadd.f32 %v2355, %v2523
    %v2574 = vadd.f32 %v2356, %v2524
    %v2575 = vadd.f32 %v2357, %v2525
    %v2576 = vadd.f32 %v2358, %v2526
    %v2577 = vadd.f32 %v2359, %v2527
    %v2578 = vadd.f32 %v2360, %v2528
    %v2579 = vadd.f32 %v2361, %v2529
    %v2580 = vadd.f32 %v2362, %v2530
    %v2581 = vadd.f32 %v2363, %v2531
    %v2582 = vadd.f32 %v2364, %v2532
    %v2583 = vadd.f32 %v2365, %v2533
    %v2584 = vadd.f32 %v2366, %v2534
    %v2585 = vadd.f32 %v2367, %v2535
    %v2586 = vadd.f32 %v2368, %v2536
    %v2587 = vadd.f32 %v2369, %v2537
    %v2588 = vadd.f32 %v2370, %v2538
    %v2589 = vadd.f32 %v2371, %v2539
    %v2590 = vadd.f32 %v2372, %v2540
    %v2591 = vadd.f32 %v2373, %v2541
    %v2592 = vadd.f32 %v2374, %v2542
    %v2593 = vadd.f32 %v2375, %v2543
    %v2594 = vadd.f32 %v2376, %v2544
    %v2595 = vadd.f32 %v2377, %v2545
    %v2596 = vadd.f32 %v2378, %v2546
    %v2597 = vld [vmem:[%s9] sm:$0x3]
    %v2599 = vlaneseq
    %v2600 = vshrl.u32 %v2599, 7
    %v2601 = vsub.s32 0, %v2600
    %v2602 = vrot.slane %v2597, %v2601
    %v2603 = vlaneseq
    %v2604 = vshrl.u32 %v2603, 7
    %v2605 = vsub.s32 1, %v2604
    %v2606 = vrot.slane %v2597, %v2605
    %v2609 = vadd.f32 %v2547, %v2602
    %v2610 = vadd.f32 %v2548, %v2606
    %v2611 = vadd.f32 %v2549, %v2602
    %v2612 = vadd.f32 %v2550, %v2606
    %v2613 = vadd.f32 %v2551, %v2602
    %v2614 = vadd.f32 %v2552, %v2606
    %v2615 = vadd.f32 %v2553, %v2602
    %v2616 = vadd.f32 %v2554, %v2606
    %v2617 = vadd.f32 %v2555, %v2602
    %v2618 = vadd.f32 %v2556, %v2606
    %v2619 = vadd.f32 %v2557, %v2602
    %v2620 = vadd.f32 %v2558, %v2606
    %v2621 = vadd.f32 %v2559, %v2602
    %v2622 = vadd.f32 %v2560, %v2606
    %v2623 = vadd.f32 %v2561, %v2602
    %v2624 = vadd.f32 %v2562, %v2606
    %v2625 = vadd.f32 %v2563, %v2602
    %v2626 = vadd.f32 %v2564, %v2606
    %v2627 = vadd.f32 %v2565, %v2602
    %v2628 = vadd.f32 %v2566, %v2606
    %v2629 = vadd.f32 %v2567, %v2602
    %v2630 = vadd.f32 %v2568, %v2606
    %v2631 = vadd.f32 %v2569, %v2602
    %v2632 = vadd.f32 %v2570, %v2606
    %v2633 = vadd.f32 %v2571, %v2602
    %v2634 = vadd.f32 %v2572, %v2606
    %v2635 = vadd.f32 %v2573, %v2602
    %v2636 = vadd.f32 %v2574, %v2606
    %v2637 = vadd.f32 %v2575, %v2602
    %v2638 = vadd.f32 %v2576, %v2606
    %v2639 = vadd.f32 %v2577, %v2602
    %v2640 = vadd.f32 %v2578, %v2606
    %v2641 = vadd.f32 %v2579, %v2602
    %v2642 = vadd.f32 %v2580, %v2606
    %v2643 = vadd.f32 %v2581, %v2602
    %v2644 = vadd.f32 %v2582, %v2606
    %v2645 = vadd.f32 %v2583, %v2602
    %v2646 = vadd.f32 %v2584, %v2606
    %v2647 = vadd.f32 %v2585, %v2602
    %v2648 = vadd.f32 %v2586, %v2606
    %v2649 = vadd.f32 %v2587, %v2602
    %v2650 = vadd.f32 %v2588, %v2606
    %v2651 = vadd.f32 %v2589, %v2602
    %v2652 = vadd.f32 %v2590, %v2606
    %v2653 = vadd.f32 %v2591, %v2602
    %v2654 = vadd.f32 %v2592, %v2606
    %v2655 = vadd.f32 %v2593, %v2602
    %v2656 = vadd.f32 %v2594, %v2606
    %v2657 = vadd.f32 %v2595, %v2602
    %v2658 = vadd.f32 %v2596, %v2606
    %v2659 = vmul.f32 %v2609, 0.01
    %v2660 = vmul.f32 %v2610, 0.01
    %v2661 = vmul.f32 %v2611, 0.01
    %v2662 = vmul.f32 %v2612, 0.01
    %v2663 = vmul.f32 %v2613, 0.01
    %v2664 = vmul.f32 %v2614, 0.01
    %v2665 = vmul.f32 %v2615, 0.01
    %v2666 = vmul.f32 %v2616, 0.01
    %v2667 = vmul.f32 %v2617, 0.01
    %v2668 = vmul.f32 %v2618, 0.01
    %v2669 = vmul.f32 %v2619, 0.01
    %v2670 = vmul.f32 %v2620, 0.01
    %v2671 = vmul.f32 %v2621, 0.01
    %v2672 = vmul.f32 %v2622, 0.01
    %v2673 = vmul.f32 %v2623, 0.01
    %v2674 = vmul.f32 %v2624, 0.01
    %v2675 = vmul.f32 %v2625, 0.01
    %v2676 = vmul.f32 %v2626, 0.01
    %v2677 = vmul.f32 %v2627, 0.01
    %v2678 = vmul.f32 %v2628, 0.01
    %v2679 = vmul.f32 %v2629, 0.01
    %v2680 = vmul.f32 %v2630, 0.01
    %v2681 = vmul.f32 %v2631, 0.01
    %v2682 = vmul.f32 %v2632, 0.01
    %v2683 = vmul.f32 %v2633, 0.01
    %v2684 = vmul.f32 %v2634, 0.01
    %v2685 = vmul.f32 %v2635, 0.01
    %v2686 = vmul.f32 %v2636, 0.01
    %v2687 = vmul.f32 %v2637, 0.01
    %v2688 = vmul.f32 %v2638, 0.01
    %v2689 = vmul.f32 %v2639, 0.01
    %v2690 = vmul.f32 %v2640, 0.01
    %v2691 = vmul.f32 %v2641, 0.01
    %v2692 = vmul.f32 %v2642, 0.01
    %v2693 = vmul.f32 %v2643, 0.01
    %v2694 = vmul.f32 %v2644, 0.01
    %v2695 = vmul.f32 %v2645, 0.01
    %v2696 = vmul.f32 %v2646, 0.01
    %v2697 = vmul.f32 %v2647, 0.01
    %v2698 = vmul.f32 %v2648, 0.01
    %v2699 = vmul.f32 %v2649, 0.01
    %v2700 = vmul.f32 %v2650, 0.01
    %v2701 = vmul.f32 %v2651, 0.01
    %v2702 = vmul.f32 %v2652, 0.01
    %v2703 = vmul.f32 %v2653, 0.01
    %v2704 = vmul.f32 %v2654, 0.01
    %v2705 = vmul.f32 %v2655, 0.01
    %v2706 = vmul.f32 %v2656, 0.01
    %v2707 = vmul.f32 %v2657, 0.01
    %v2708 = vmul.f32 %v2658, 0.01
    %v2709 = vmax.f32 %v2609, %v2659
    %v2710 = vmax.f32 %v2610, %v2660
    %v2711 = vmax.f32 %v2611, %v2661
    %v2712 = vmax.f32 %v2612, %v2662
    %v2713 = vmax.f32 %v2613, %v2663
    %v2714 = vmax.f32 %v2614, %v2664
    %v2715 = vmax.f32 %v2615, %v2665
    %v2716 = vmax.f32 %v2616, %v2666
    %v2717 = vmax.f32 %v2617, %v2667
    %v2718 = vmax.f32 %v2618, %v2668
    %v2719 = vmax.f32 %v2619, %v2669
    %v2720 = vmax.f32 %v2620, %v2670
    %v2721 = vmax.f32 %v2621, %v2671
    %v2722 = vmax.f32 %v2622, %v2672
    %v2723 = vmax.f32 %v2623, %v2673
    %v2724 = vmax.f32 %v2624, %v2674
    %v2725 = vmax.f32 %v2625, %v2675
    %v2726 = vmax.f32 %v2626, %v2676
    %v2727 = vmax.f32 %v2627, %v2677
    %v2728 = vmax.f32 %v2628, %v2678
    %v2729 = vmax.f32 %v2629, %v2679
    %v2730 = vmax.f32 %v2630, %v2680
    %v2731 = vmax.f32 %v2631, %v2681
    %v2732 = vmax.f32 %v2632, %v2682
    %v2733 = vmax.f32 %v2633, %v2683
    %v2734 = vmax.f32 %v2634, %v2684
    %v2735 = vmax.f32 %v2635, %v2685
    %v2736 = vmax.f32 %v2636, %v2686
    %v2737 = vmax.f32 %v2637, %v2687
    %v2738 = vmax.f32 %v2638, %v2688
    %v2739 = vmax.f32 %v2639, %v2689
    %v2740 = vmax.f32 %v2640, %v2690
    %v2741 = vmax.f32 %v2641, %v2691
    %v2742 = vmax.f32 %v2642, %v2692
    %v2743 = vmax.f32 %v2643, %v2693
    %v2744 = vmax.f32 %v2644, %v2694
    %v2745 = vmax.f32 %v2645, %v2695
    %v2746 = vmax.f32 %v2646, %v2696
    %v2747 = vmax.f32 %v2647, %v2697
    %v2748 = vmax.f32 %v2648, %v2698
    %v2749 = vmax.f32 %v2649, %v2699
    %v2750 = vmax.f32 %v2650, %v2700
    %v2751 = vmax.f32 %v2651, %v2701
    %v2752 = vmax.f32 %v2652, %v2702
    %v2753 = vmax.f32 %v2653, %v2703
    %v2754 = vmax.f32 %v2654, %v2704
    %v2755 = vmax.f32 %v2655, %v2705
    %v2756 = vmax.f32 %v2656, %v2706
    %v2757 = vmax.f32 %v2657, %v2707
    %v2758 = vmax.f32 %v2658, %v2708
    %v2759 = vadd.f32 %v1647, %v2709
    %v2760 = vadd.f32 %v1648, %v2710
    %v2761 = vadd.f32 %v1649, %v2711
    %v2762 = vadd.f32 %v1650, %v2712
    %v2763 = vadd.f32 %v1651, %v2713
    %v2764 = vadd.f32 %v1652, %v2714
    %v2765 = vadd.f32 %v1653, %v2715
    %v2766 = vadd.f32 %v1654, %v2716
    %v2767 = vadd.f32 %v1655, %v2717
    %v2768 = vadd.f32 %v1656, %v2718
    %v2769 = vadd.f32 %v1657, %v2719
    %v2770 = vadd.f32 %v1658, %v2720
    %v2771 = vadd.f32 %v1659, %v2721
    %v2772 = vadd.f32 %v1660, %v2722
    %v2773 = vadd.f32 %v1661, %v2723
    %v2774 = vadd.f32 %v1662, %v2724
    %v2775 = vadd.f32 %v1663, %v2725
    %v2776 = vadd.f32 %v1664, %v2726
    %v2777 = vadd.f32 %v1665, %v2727
    %v2778 = vadd.f32 %v1666, %v2728
    %v2779 = vadd.f32 %v1667, %v2729
    %v2780 = vadd.f32 %v1668, %v2730
    %v2781 = vadd.f32 %v1669, %v2731
    %v2782 = vadd.f32 %v1670, %v2732
    %v2783 = vadd.f32 %v1671, %v2733
    %v2784 = vadd.f32 %v1672, %v2734
    %v2785 = vadd.f32 %v1673, %v2735
    %v2786 = vadd.f32 %v1674, %v2736
    %v2787 = vadd.f32 %v1675, %v2737
    %v2788 = vadd.f32 %v1676, %v2738
    %v2789 = vadd.f32 %v1677, %v2739
    %v2790 = vadd.f32 %v1678, %v2740
    %v2791 = vadd.f32 %v1679, %v2741
    %v2792 = vadd.f32 %v1680, %v2742
    %v2793 = vadd.f32 %v1681, %v2743
    %v2794 = vadd.f32 %v1682, %v2744
    %v2795 = vadd.f32 %v1683, %v2745
    %v2796 = vadd.f32 %v1684, %v2746
    %v2797 = vadd.f32 %v1685, %v2747
    %v2798 = vadd.f32 %v1686, %v2748
    %v2799 = vadd.f32 %v1687, %v2749
    %v2800 = vadd.f32 %v1688, %v2750
    %v2801 = vadd.f32 %v1689, %v2751
    %v2802 = vadd.f32 %v1690, %v2752
    %v2803 = vadd.f32 %v1691, %v2753
    %v2804 = vadd.f32 %v1692, %v2754
    %v2805 = vadd.f32 %v1693, %v2755
    %v2806 = vadd.f32 %v1694, %v2756
    %v2807 = vadd.f32 %v1695, %v2757
    %v2808 = vadd.f32 %v1696, %v2758
    %v2809 = vld [vmem:[%s10] sm:$0x3]
    %v2811 = vlaneseq
    %v2812 = vshrl.u32 %v2811, 7
    %v2813 = vsub.s32 0, %v2812
    %v2814 = vrot.slane %v2809, %v2813
    %v2815 = vlaneseq
    %v2816 = vshrl.u32 %v2815, 7
    %v2817 = vsub.s32 1, %v2816
    %v2818 = vrot.slane %v2809, %v2817
    %v2821 = vmul.f32 %v2759, %v2814
    %v2822 = vmul.f32 %v2760, %v2818
    %v2823 = vmul.f32 %v2761, %v2814
    %v2824 = vmul.f32 %v2762, %v2818
    %v2825 = vmul.f32 %v2763, %v2814
    %v2826 = vmul.f32 %v2764, %v2818
    %v2827 = vmul.f32 %v2765, %v2814
    %v2828 = vmul.f32 %v2766, %v2818
    %v2829 = vmul.f32 %v2767, %v2814
    %v2830 = vmul.f32 %v2768, %v2818
    %v2831 = vmul.f32 %v2769, %v2814
    %v2832 = vmul.f32 %v2770, %v2818
    %v2833 = vmul.f32 %v2771, %v2814
    %v2834 = vmul.f32 %v2772, %v2818
    %v2835 = vmul.f32 %v2773, %v2814
    %v2836 = vmul.f32 %v2774, %v2818
    %v2837 = vmul.f32 %v2775, %v2814
    %v2838 = vmul.f32 %v2776, %v2818
    %v2839 = vmul.f32 %v2777, %v2814
    %v2840 = vmul.f32 %v2778, %v2818
    %v2841 = vmul.f32 %v2779, %v2814
    %v2842 = vmul.f32 %v2780, %v2818
    %v2843 = vmul.f32 %v2781, %v2814
    %v2844 = vmul.f32 %v2782, %v2818
    %v2845 = vmul.f32 %v2783, %v2814
    %v2846 = vmul.f32 %v2784, %v2818
    %v2847 = vmul.f32 %v2785, %v2814
    %v2848 = vmul.f32 %v2786, %v2818
    %v2849 = vmul.f32 %v2787, %v2814
    %v2850 = vmul.f32 %v2788, %v2818
    %v2851 = vmul.f32 %v2789, %v2814
    %v2852 = vmul.f32 %v2790, %v2818
    %v2853 = vmul.f32 %v2791, %v2814
    %v2854 = vmul.f32 %v2792, %v2818
    %v2855 = vmul.f32 %v2793, %v2814
    %v2856 = vmul.f32 %v2794, %v2818
    %v2857 = vmul.f32 %v2795, %v2814
    %v2858 = vmul.f32 %v2796, %v2818
    %v2859 = vmul.f32 %v2797, %v2814
    %v2860 = vmul.f32 %v2798, %v2818
    %v2861 = vmul.f32 %v2799, %v2814
    %v2862 = vmul.f32 %v2800, %v2818
    %v2863 = vmul.f32 %v2801, %v2814
    %v2864 = vmul.f32 %v2802, %v2818
    %v2865 = vmul.f32 %v2803, %v2814
    %v2866 = vmul.f32 %v2804, %v2818
    %v2867 = vmul.f32 %v2805, %v2814
    %v2868 = vmul.f32 %v2806, %v2818
    %v2869 = vmul.f32 %v2807, %v2814
    %v2870 = vmul.f32 %v2808, %v2818
    %v2871 = vadd.f32 %v2821, %v2822
    %2872 = vadd.xlane.f32.xlu0 %v2871
    %v2873 = vpop.xlane.xlu0 %2872
    %v2874 = vadd.f32 %v2823, %v2824
    %2875 = vadd.xlane.f32.xlu0 %v2874
    %v2876 = vpop.xlane.xlu0 %2875
    %v2877 = vadd.f32 %v2825, %v2826
    %2878 = vadd.xlane.f32.xlu0 %v2877
    %v2879 = vpop.xlane.xlu0 %2878
    %v2880 = vadd.f32 %v2827, %v2828
    %2881 = vadd.xlane.f32.xlu0 %v2880
    %v2882 = vpop.xlane.xlu0 %2881
    %v2883 = vadd.f32 %v2829, %v2830
    %2884 = vadd.xlane.f32.xlu0 %v2883
    %v2885 = vpop.xlane.xlu0 %2884
    %v2886 = vadd.f32 %v2831, %v2832
    %2887 = vadd.xlane.f32.xlu0 %v2886
    %v2888 = vpop.xlane.xlu0 %2887
    %v2889 = vadd.f32 %v2833, %v2834
    %2890 = vadd.xlane.f32.xlu0 %v2889
    %v2891 = vpop.xlane.xlu0 %2890
    %v2892 = vadd.f32 %v2835, %v2836
    %2893 = vadd.xlane.f32.xlu0 %v2892
    %v2894 = vpop.xlane.xlu0 %2893
    %v2895 = vadd.f32 %v2837, %v2838
    %2896 = vadd.xlane.f32.xlu0 %v2895
    %v2897 = vpop.xlane.xlu0 %2896
    %v2898 = vadd.f32 %v2839, %v2840
    %2899 = vadd.xlane.f32.xlu0 %v2898
    %v2900 = vpop.xlane.xlu0 %2899
    %v2901 = vadd.f32 %v2841, %v2842
    %2902 = vadd.xlane.f32.xlu0 %v2901
    %v2903 = vpop.xlane.xlu0 %2902
    %v2904 = vadd.f32 %v2843, %v2844
    %2905 = vadd.xlane.f32.xlu0 %v2904
    %v2906 = vpop.xlane.xlu0 %2905
    %v2907 = vadd.f32 %v2845, %v2846
    %2908 = vadd.xlane.f32.xlu0 %v2907
    %v2909 = vpop.xlane.xlu0 %2908
    %v2910 = vadd.f32 %v2847, %v2848
    %2911 = vadd.xlane.f32.xlu0 %v2910
    %v2912 = vpop.xlane.xlu0 %2911
    %v2913 = vadd.f32 %v2849, %v2850
    %2914 = vadd.xlane.f32.xlu0 %v2913
    %v2915 = vpop.xlane.xlu0 %2914
    %v2916 = vadd.f32 %v2851, %v2852
    %2917 = vadd.xlane.f32.xlu0 %v2916
    %v2918 = vpop.xlane.xlu0 %2917
    %v2919 = vadd.f32 %v2853, %v2854
    %2920 = vadd.xlane.f32.xlu0 %v2919
    %v2921 = vpop.xlane.xlu0 %2920
    %v2922 = vadd.f32 %v2855, %v2856
    %2923 = vadd.xlane.f32.xlu0 %v2922
    %v2924 = vpop.xlane.xlu0 %2923
    %v2925 = vadd.f32 %v2857, %v2858
    %2926 = vadd.xlane.f32.xlu0 %v2925
    %v2927 = vpop.xlane.xlu0 %2926
    %v2928 = vadd.f32 %v2859, %v2860
    %2929 = vadd.xlane.f32.xlu0 %v2928
    %v2930 = vpop.xlane.xlu0 %2929
    %v2931 = vadd.f32 %v2861, %v2862
    %2932 = vadd.xlane.f32.xlu0 %v2931
    %v2933 = vpop.xlane.xlu0 %2932
    %v2934 = vadd.f32 %v2863, %v2864
    %2935 = vadd.xlane.f32.xlu0 %v2934
    %v2936 = vpop.xlane.xlu0 %2935
    %v2937 = vadd.f32 %v2865, %v2866
    %2938 = vadd.xlane.f32.xlu0 %v2937
    %v2939 = vpop.xlane.xlu0 %2938
    %v2940 = vadd.f32 %v2867, %v2868
    %2941 = vadd.xlane.f32.xlu0 %v2940
    %v2942 = vpop.xlane.xlu0 %2941
    %v2943 = vadd.f32 %v2869, %v2870
    %2944 = vadd.xlane.f32.xlu0 %v2943
    %v2945 = vpop.xlane.xlu0 %2944
    %s2946 = sld [smem:[#allocation2]]
    %2947 = vxpose.xlu0.b32.start [1/16] %v2873, 128
    %2948 = vxpose.xlu0.b32.cont [2/16] %v2876, 128
    %2949 = vxpose.xlu0.b32.cont [3/16] %v2879, 128
    %2950 = vxpose.xlu0.b32.cont [4/16] %v2882, 128
    %2951 = vxpose.xlu0.b32.cont [5/16] %v2885, 128
    %2952 = vxpose.xlu0.b32.cont [6/16] %v2888, 128
    %2953 = vxpose.xlu0.b32.cont [7/16] %v2891, 128
    %2954 = vxpose.xlu0.b32.cont [8/16] %v2894, 128
    %2955 = vxpose.xlu0.b32.cont [9/16] %v2897, 128
    %2956 = vxpose.xlu0.b32.cont [10/16] %v2900, 128
    %2957 = vxpose.xlu0.b32.cont [11/16] %v2903, 128
    %2958 = vxpose.xlu0.b32.cont [12/16] %v2906, 128
    %2959 = vxpose.xlu0.b32.cont [13/16] %v2909, 128
    %2960 = vxpose.xlu0.b32.cont [14/16] %v2912, 128
    %2961 = vxpose.xlu0.b32.cont [15/16] %v2915, 128
    %2962 = vxpose.xlu0.b32.end [16/16] %v2918, 128
    %v2963 = vpop.trf.xlu0
    %v2964 = vpop.trf.xlu0
    %v2965 = vpop.trf.xlu0
    %v2966 = vpop.trf.xlu0
    %v2967 = vpop.trf.xlu0
    %v2968 = vpop.trf.xlu0
    %v2969 = vpop.trf.xlu0
    %v2970 = vpop.trf.xlu0
    %v2971 = vpop.trf.xlu0
    %v2972 = vpop.trf.xlu0
    %v2973 = vpop.trf.xlu0
    %v2974 = vpop.trf.xlu0
    %v2975 = vpop.trf.xlu0
    %v2976 = vpop.trf.xlu0
    %v2977 = vpop.trf.xlu0
    %v2978 = vpop.trf.xlu0
    %2979 = vxpose.xlu0.b32.start [1/16] %v2921, 128
    %2980 = vxpose.xlu0.b32.cont [2/16] %v2924, 128
    %2981 = vxpose.xlu0.b32.cont [3/16] %v2927, 128
    %2982 = vxpose.xlu0.b32.cont [4/16] %v2930, 128
    %2983 = vxpose.xlu0.b32.cont [5/16] %v2933, 128
    %2984 = vxpose.xlu0.b32.cont [6/16] %v2936, 128
    %2985 = vxpose.xlu0.b32.cont [7/16] %v2939, 128
    %2986 = vxpose.xlu0.b32.cont [8/16] %v2942, 128
    %2987 = vxpose.xlu0.b32.cont [9/16] %v2945, 128
    %2988 = vxpose.xlu0.b32.cont [10/16] 0.0, 128
    %2989 = vxpose.xlu0.b32.cont [11/16] 0.0, 128
    %2990 = vxpose.xlu0.b32.cont [12/16] 0.0, 128
    %2991 = vxpose.xlu0.b32.cont [13/16] 0.0, 128
    %2992 = vxpose.xlu0.b32.cont [14/16] 0.0, 128
    %2993 = vxpose.xlu0.b32.cont [15/16] 0.0, 128
    %2994 = vxpose.xlu0.b32.end [16/16] 0.0, 128
    %v2995 = vpop.trf.xlu0
    %v2996 = vpop.trf.xlu0
    %v2997 = vpop.trf.xlu0
    %v2998 = vpop.trf.xlu0
    %v2999 = vpop.trf.xlu0
    %v3000 = vpop.trf.xlu0
    %v3001 = vpop.trf.xlu0
    %v3002 = vpop.trf.xlu0
    %v3003 = vpop.trf.xlu0
    %v3004 = vpop.trf.xlu0
    %v3005 = vpop.trf.xlu0
    %v3006 = vpop.trf.xlu0
    %v3007 = vpop.trf.xlu0
    %v3008 = vpop.trf.xlu0
    %v3009 = vpop.trf.xlu0
    %v3010 = vpop.trf.xlu0
    %v3011 = vstv %s2946
    %v3012 = vadd.f32 %v2963, %v3011
    %v3013 = vadd.f32 %v2995, %v3011
    %v3016 = vcombine.low %v3012, %v3013
    %v3018 = vunpack.c.l.s4 1966171168
    %v3019 = vunpack.c.0.s8 %v3018
    %v3020 = vlaneseq
    %v3021 = vshrl.u32 %v3020, 7
    %v3022 = vsub.s32 %v3019, %v3021
    %v3023 = vrot.slane %v3016, %v3022
    %v3025 = vunpack.c.l.s4 1966171168
    %v3026 = vunpack.c.0.s8 %v3025
    %v3027 = vlaneseq
    %v3028 = vshrl.u32 %v3027, 7
    %v3029 = vsub.s32 %v3026, %v3028
    %v3030 = vrot.slane %v3023, %v3029
    %v3032 = vlaneseq
    %vm3033 = vcmp.ge.s32.totalorder %v3032, 0
    %vm3034 = vcmp.lt.s32.totalorder %v3032, 200
    %vm3035 = vmand %vm3033, %vm3034
    %3036 = vst.msk [vmem:[#allocation11] sm:$0x3] %vm3035, %v3030
    // Predicated region
    $region66: #{critic_head.1} parent=1 // pred_check
      _
    $region67: #{critic_head.1} parent=1 // pred_check_branch
      %3038 = sbr.rel (0) target = $region69
    $region68: #{critic_head.1} parent=1 // pred_region
      %s3040 = ssub.s32 32, 32
      %3041 = vsyncadd [#allocation5], %s3040
      %s3043 = sshll.u32 [#allocation11], 4
      %s3044 = int_to_ptr.vmem [resolvable:$true] %s3043
      %3046 = dma.vmem_to_hbm [thread:$0]  %s3044, 32, %s12, [#allocation5]
    $region69: #{critic_head.1} parent=1 // pred_fallthru
      _
    // Predicated region
    $region70: #{critic_head.1} parent=1 // pred_check
      _
    $region71: #{critic_head.1} parent=1 // pred_check_branch
      %3048 = sbr.rel (0) target = $region73
    $region72: #{critic_head.1} parent=1 // pred_region
      %3049 = dma.done [#allocation5], 32
    $region73: #{critic_head.1} parent=1 // pred_fallthru
      _
    %3050 = vsyncpa [#allocation4], 1
    %3051 = vsyncpa [#allocation7], 1
    %3052 = vsyncpa [#allocation10], 1
    %3053 = vsyncpa [#allocation5], 1

// kernel: critic_head.1
$region0: #{critic_head.1}
  #allocation0 [shape = 'u32[]', space=smem, size = 0x4, offset = 0x4, fixed_abs, tag = 'smem constant byte address 0x4 - core index']
  #allocation1 [shape = 'u32[144,128]{1,0:T(1,128)}', space=vmem, size = 0x12000, scoped, tag = 'internal scratch']
  #allocation2 [shape = 'f32[1]{0:T(128)S(6)}', space=smem, size = 0x200, scoped, tag = 'scoped memory for critic_head.1']
  %s0 = inlined_call_operand.hbm [shape: bf16[200,256], index: 0, kind: input, shape index: {}]
  %s1 = inlined_call_operand.vmem [shape: bf16[200,4], index: 1, kind: input, shape index: {}]
  %s2 = inlined_call_operand.hbm [shape: bf16[256,256], index: 2, kind: input, shape index: {}]
  %s3 = inlined_call_operand.vmem [shape: f32[1,256], index: 3, kind: input, shape index: {}]
  %s4 = inlined_call_operand.hbm [shape: bf16[256,256], index: 4, kind: input, shape index: {}]
  %s5 = inlined_call_operand.vmem [shape: f32[1,256], index: 5, kind: input, shape index: {}]
  %s6 = inlined_call_operand.hbm [shape: bf16[256,256], index: 6, kind: input, shape index: {}]
  %s7 = inlined_call_operand.vmem [shape: f32[1,256], index: 7, kind: input, shape index: {}]
  %s8 = inlined_call_operand.vmem [shape: bf16[4,256], index: 8, kind: input, shape index: {}]
  %s9 = inlined_call_operand.vmem [shape: f32[1,256], index: 9, kind: input, shape index: {}]
  %s10 = inlined_call_operand.vmem [shape: f32[1,256], index: 10, kind: input, shape index: {}]
  %s11 = inlined_call_operand.<no memory space> [shape: f32[1], index: 11, kind: input, shape index: {}]
  %s12 = inlined_call_operand.vmem [shape: f32[200,1], index: 12, kind: output, shape index: {}]
  %s13 = sld [smem:[#allocation0]]
  $region74: #{critic_head.1} parent=0
    _
  %s15 = ssub.s32 1, %s13
  %s16 = scalar_select 0, %s15, %s13
  %17 = sst [smem:[#allocation2]] %s11
  $region1: #{critic_head.1} parent=0
    #allocation3 [shape = 'u8[102400]{0}', space=vmem, size = 0x19000, scoped, tag = 'input window, operand 0, single buffered']
    #allocation4 [shape = 's32[1]{0}', space=sflag, size = 0x4, scoped, tag = 'scoped memory for critic_head.1']
    #allocation5 [shape = 'u8[131072]{0}', space=vmem, size = 0x20000, scoped, tag = 'input window, operand 2, single buffered']
    #allocation6 [shape = 's32[1]{0}', space=sflag, size = 0x4, scoped, tag = 'scoped memory for critic_head.1']
    #allocation7 [shape = 'u8[131072]{0}', space=vmem, size = 0x20000, scoped, tag = 'input window, operand 4, single buffered']
    #allocation8 [shape = 'u8[131072]{0}', space=vmem, size = 0x20000, scoped, tag = 'input window, operand 6, single buffered']
    #allocation9 [shape = 's32[1]{0}', space=sflag, size = 0x4, scoped, tag = 'scoped memory for critic_head.1']
    %18 = vsyncpa [#allocation4], 0
    %19 = vsyncpa [#allocation6], 0
    %20 = vsyncpa [#allocation9], 0
    // Predicated region
    $region2: #{critic_head.1} parent=1 // pred_check
      _
    $region3: #{critic_head.1} parent=1 // pred_check_branch
      %22 = sbr.rel (0) target = $region5
    $region4: #{critic_head.1} parent=1 // pred_region
      %s24 = ssub.s32 3200, 3200
      %25 = vsyncadd [#allocation4], %s24
      %s26 = sshll.u32 [#allocation3], 4
      %s27 = int_to_ptr.vmem [resolvable:$true] %s26
      %32 = dma.hbm_to_vmem [thread:$0]  %s0, 3200, %s27, [#allocation4], 128, 128, 8
    $region5: #{critic_head.1} parent=1 // pred_fallthru
      _
    // Predicated region
    $region6: #{critic_head.1} parent=1 // pred_check
      _
    $region7: #{critic_head.1} parent=1 // pred_check_branch
      %34 = sbr.rel (0) target = $region9
    $region8: #{critic_head.1} parent=1 // pred_region
      _
    $region9: #{critic_head.1} parent=1 // pred_fallthru
      _
    // Predicated region
    $region10: #{critic_head.1} parent=1 // pred_check
      _
    $region11: #{critic_head.1} parent=1 // pred_check_branch
      %36 = sbr.rel (0) target = $region13
    $region12: #{critic_head.1} parent=1 // pred_region
      %s38 = ssub.s32 4096, 4096
      %39 = vsyncadd [#allocation6], %s38
      %s40 = sshll.u32 [#allocation5], 4
      %s41 = int_to_ptr.vmem [resolvable:$true] %s40
      %46 = dma.hbm_to_vmem [thread:$0]  %s2, 4096, %s41, [#allocation6], 128, 128, 8
    $region13: #{critic_head.1} parent=1 // pred_fallthru
      _
    // Predicated region
    $region14: #{critic_head.1} parent=1 // pred_check
      _
    $region15: #{critic_head.1} parent=1 // pred_check_branch
      %48 = sbr.rel (0) target = $region17
    $region16: #{critic_head.1} parent=1 // pred_region
      _
    $region17: #{critic_head.1} parent=1 // pred_fallthru
      _
    // Predicated region
    $region18: #{critic_head.1} parent=1 // pred_check
      _
    $region19: #{critic_head.1} parent=1 // pred_check_branch
      %50 = sbr.rel (0) target = $region21
    $region20: #{critic_head.1} parent=1 // pred_region
      %s52 = ssub.s32 4096, 4096
      %53 = vsyncadd [#allocation6], %s52
      %s54 = sshll.u32 [#allocation7], 4
      %s55 = int_to_ptr.vmem [resolvable:$true] %s54
      %60 = dma.hbm_to_vmem [thread:$0]  %s4, 4096, %s55, [#allocation6], 128, 128, 8
    $region21: #{critic_head.1} parent=1 // pred_fallthru
      _
    // Predicated region
    $region22: #{critic_head.1} parent=1 // pred_check
      _
    $region23: #{critic_head.1} parent=1 // pred_check_branch
      %62 = sbr.rel (0) target = $region25
    $region24: #{critic_head.1} parent=1 // pred_region
      _
    $region25: #{critic_head.1} parent=1 // pred_fallthru
      _
    // Predicated region
    $region26: #{critic_head.1} parent=1 // pred_check
      _
    $region27: #{critic_head.1} parent=1 // pred_check_branch
      %64 = sbr.rel (0) target = $region29
    $region28: #{critic_head.1} parent=1 // pred_region
      %s66 = ssub.s32 4096, 4096
      %67 = vsyncadd [#allocation9], %s66
      %s68 = sshll.u32 [#allocation8], 4
      %s69 = int_to_ptr.vmem [resolvable:$true] %s68
      %74 = dma.hbm_to_vmem [thread:$0]  %s6, 4096, %s69, [#allocation9], 128, 128, 8
    $region29: #{critic_head.1} parent=1 // pred_fallthru
      _
    // Predicated region
    $region30: #{critic_head.1} parent=1 // pred_check
      _
    $region31: #{critic_head.1} parent=1 // pred_check_branch
      %76 = sbr.rel (0) target = $region33
    $region32: #{critic_head.1} parent=1 // pred_region
      _
    $region33: #{critic_head.1} parent=1 // pred_fallthru
      _
    // Predicated region
    $region34: #{critic_head.1} parent=1 // pred_check
      _
    $region35: #{critic_head.1} parent=1 // pred_check_branch
      %78 = sbr.rel (0) target = $region37
    $region36: #{critic_head.1} parent=1 // pred_region
      _
    $region37: #{critic_head.1} parent=1 // pred_fallthru
      _
    // Predicated region
    $region38: #{critic_head.1} parent=1 // pred_check
      _
    $region39: #{critic_head.1} parent=1 // pred_check_branch
      %80 = sbr.rel (0) target = $region41
    $region40: #{critic_head.1} parent=1 // pred_region
      _
    $region41: #{critic_head.1} parent=1 // pred_fallthru
      _
    // Predicated region
    $region42: #{critic_head.1} parent=1 // pred_check
      _
    $region43: #{critic_head.1} parent=1 // pred_check_branch
      %82 = sbr.rel (0) target = $region45
    $region44: #{critic_head.1} parent=1 // pred_region
      _
    $region45: #{critic_head.1} parent=1 // pred_fallthru
      _
    // Predicated region
    $region46: #{critic_head.1} parent=1 // pred_check
      _
    $region47: #{critic_head.1} parent=1 // pred_check_branch
      %84 = sbr.rel (0) target = $region49
    $region48: #{critic_head.1} parent=1 // pred_region
      _
    $region49: #{critic_head.1} parent=1 // pred_fallthru
      _
    // Predicated region
    $region50: #{critic_head.1} parent=1 // pred_check
      _
    $region51: #{critic_head.1} parent=1 // pred_check_branch
      %86 = sbr.rel (0) target = $region53
    $region52: #{critic_head.1} parent=1 // pred_region
      %87 = dma.done [#allocation4], 3200
    $region53: #{critic_head.1} parent=1 // pred_fallthru
      _
    // Predicated region
    $region54: #{critic_head.1} parent=1 // pred_check
      _
    $region55: #{critic_head.1} parent=1 // pred_check_branch
      %89 = sbr.rel (0) target = $region57
    $region56: #{critic_head.1} parent=1 // pred_region
      %90 = dma.done [#allocation6], 4096
    $region57: #{critic_head.1} parent=1 // pred_fallthru
      _
    // Predicated region
    $region58: #{critic_head.1} parent=1 // pred_check
      _
    $region59: #{critic_head.1} parent=1 // pred_check_branch
      %92 = sbr.rel (0) target = $region61
    $region60: #{critic_head.1} parent=1 // pred_region
      %93 = dma.done [#allocation6], 4096
    $region61: #{critic_head.1} parent=1 // pred_fallthru
      _
    // Predicated region
    $region62: #{critic_head.1} parent=1 // pred_check
      _
    $region63: #{critic_head.1} parent=1 // pred_check_branch
      %95 = sbr.rel (0) target = $region65
    $region64: #{critic_head.1} parent=1 // pred_region
      %96 = dma.done [#allocation9], 4096
    $region65: #{critic_head.1} parent=1 // pred_fallthru
      _
    %v97 = vld [vmem:[#allocation3] sm:$0xff]
    %v98 = vld [vmem:[#allocation3 + $0x8] sm:$0xff]
    %v99 = vld [vmem:[#allocation3 + $0x10] sm:$0xff]
    %v100 = vld [vmem:[#allocation3 + $0x18] sm:$0xff]
    %v101 = vld [vmem:[#allocation3 + $0x20] sm:$0xff]
    %v102 = vld [vmem:[#allocation3 + $0x28] sm:$0xff]
    %v103 = vld [vmem:[#allocation3 + $0x30] sm:$0xff]
    %v104 = vld [vmem:[#allocation3 + $0x38] sm:$0xff]
    %v105 = vld [vmem:[#allocation3 + $0x40] sm:$0xff]
    %v106 = vld [vmem:[#allocation3 + $0x48] sm:$0xff]
    %v107 = vld [vmem:[#allocation3 + $0x50] sm:$0xff]
    %v108 = vld [vmem:[#allocation3 + $0x58] sm:$0xff]
    %v109 = vld [vmem:[#allocation3 + $0x60] sm:$0xff]
    %v110 = vld [vmem:[#allocation3 + $0x68] sm:$0xff]
    %v111 = vld [vmem:[#allocation3 + $0x70] sm:$0xff]
    %v112 = vld [vmem:[#allocation3 + $0x78] sm:$0xff]
    %v113 = vld [vmem:[#allocation3 + $0x80] sm:$0xff]
    %v114 = vld [vmem:[#allocation3 + $0x88] sm:$0xff]
    %v115 = vld [vmem:[#allocation3 + $0x90] sm:$0xff]
    %v116 = vld [vmem:[#allocation3 + $0x98] sm:$0xff]
    %v117 = vld [vmem:[#allocation3 + $0xa0] sm:$0xff]
    %v118 = vld [vmem:[#allocation3 + $0xa8] sm:$0xff]
    %v119 = vld [vmem:[#allocation3 + $0xb0] sm:$0xff]
    %v120 = vld [vmem:[#allocation3 + $0xb8] sm:$0xff]
    %v121 = vld [vmem:[#allocation3 + $0xc0] sm:$0xff]
    %v122 = vld [vmem:[#allocation5] sm:$0xff]
    %v123 = vld [vmem:[#allocation5 + $0x8] sm:$0xff]
    %v124 = vld [vmem:[#allocation5 + $0x10] sm:$0xff]
    %v125 = vld [vmem:[#allocation5 + $0x18] sm:$0xff]
    %v126 = vld [vmem:[#allocation5 + $0x20] sm:$0xff]
    %v127 = vld [vmem:[#allocation5 + $0x28] sm:$0xff]
    %v128 = vld [vmem:[#allocation5 + $0x30] sm:$0xff]
    %v129 = vld [vmem:[#allocation5 + $0x38] sm:$0xff]
    %v130 = vld [vmem:[#allocation5 + $0x40] sm:$0xff]
    %v131 = vld [vmem:[#allocation5 + $0x48] sm:$0xff]
    %v132 = vld [vmem:[#allocation5 + $0x50] sm:$0xff]
    %v133 = vld [vmem:[#allocation5 + $0x58] sm:$0xff]
    %v134 = vld [vmem:[#allocation5 + $0x60] sm:$0xff]
    %v135 = vld [vmem:[#allocation5 + $0x68] sm:$0xff]
    %v136 = vld [vmem:[#allocation5 + $0x70] sm:$0xff]
    %v137 = vld [vmem:[#allocation5 + $0x78] sm:$0xff]
    %v138 = vld [vmem:[#allocation5 + $0x80] sm:$0xff]
    %v139 = vld [vmem:[#allocation5 + $0x88] sm:$0xff]
    %v140 = vld [vmem:[#allocation5 + $0x90] sm:$0xff]
    %v141 = vld [vmem:[#allocation5 + $0x98] sm:$0xff]
    %v142 = vld [vmem:[#allocation5 + $0xa0] sm:$0xff]
    %v143 = vld [vmem:[#allocation5 + $0xa8] sm:$0xff]
    %v144 = vld [vmem:[#allocation5 + $0xb0] sm:$0xff]
    %v145 = vld [vmem:[#allocation5 + $0xb8] sm:$0xff]
    %v146 = vld [vmem:[#allocation5 + $0xc0] sm:$0xff]
    %v147 = vld [vmem:[#allocation5 + $0xc8] sm:$0xff]
    %v148 = vld [vmem:[#allocation5 + $0xd0] sm:$0xff]
    %v149 = vld [vmem:[#allocation5 + $0xd8] sm:$0xff]
    %v150 = vld [vmem:[#allocation5 + $0xe0] sm:$0xff]
    %v151 = vld [vmem:[#allocation5 + $0xe8] sm:$0xff]
    %v152 = vld [vmem:[#allocation5 + $0xf0] sm:$0xff]
    %v153 = vld [vmem:[#allocation5 + $0xf8] sm:$0xff]
    %v154 = vld [vmem:[%s3] sm:$0x3]
    %v156 = vlaneseq
    %v157 = vshrl.u32 %v156, 7
    %v158 = vsub.s32 0, %v157
    %v159 = vrot.slane %v154, %v158
    %v160 = vlaneseq
    %v161 = vshrl.u32 %v160, 7
    %v162 = vsub.s32 1, %v161
    %v163 = vrot.slane %v154, %v162
    %v191 = vunpack.c.l.b16 %v97
    %v192 = vunpack.c.h.b16 %v97
    %v193 = vunpack.c.l.b16 %v98
    %v194 = vunpack.c.h.b16 %v98
    %v195 = vunpack.c.l.b16 %v99
    %v196 = vunpack.c.h.b16 %v99
    %v197 = vunpack.c.l.b16 %v100
    %v198 = vunpack.c.h.b16 %v100
    %v199 = vunpack.c.l.b16 %v101
    %v200 = vunpack.c.h.b16 %v101
    %v201 = vunpack.c.l.b16 %v102
    %v202 = vunpack.c.h.b16 %v102
    %v203 = vunpack.c.l.b16 %v103
    %v204 = vunpack.c.h.b16 %v103
    %v205 = vunpack.c.l.b16 %v104
    %v206 = vunpack.c.h.b16 %v104
    %v207 = vunpack.c.l.b16 %v105
    %v208 = vunpack.c.h.b16 %v105
    %v209 = vunpack.c.l.b16 %v106
    %v210 = vunpack.c.h.b16 %v106
    %v211 = vunpack.c.l.b16 %v107
    %v212 = vunpack.c.h.b16 %v107
    %v213 = vunpack.c.l.b16 %v108
    %v214 = vunpack.c.h.b16 %v108
    %v215 = vunpack.c.l.b16 %v109
    %v216 = vunpack.c.h.b16 %v109
    %v217 = vunpack.c.l.b16 %v110
    %v218 = vunpack.c.h.b16 %v110
    %v219 = vunpack.c.l.b16 %v111
    %v220 = vunpack.c.h.b16 %v111
    %v221 = vunpack.c.l.b16 %v112
    %v222 = vunpack.c.h.b16 %v112
    %v223 = vunpack.c.l.b16 %v113
    %v224 = vunpack.c.h.b16 %v113
    %v225 = vunpack.c.l.b16 %v114
    %v226 = vunpack.c.h.b16 %v114
    %v227 = vunpack.c.l.b16 %v115
    %v228 = vunpack.c.h.b16 %v115
    %v229 = vunpack.c.l.b16 %v116
    %v230 = vunpack.c.h.b16 %v116
    %v231 = vunpack.c.l.b16 %v117
    %v232 = vunpack.c.h.b16 %v117
    %v233 = vunpack.c.l.b16 %v118
    %v234 = vunpack.c.h.b16 %v118
    %v235 = vunpack.c.l.b16 %v119
    %v236 = vunpack.c.h.b16 %v119
    %v237 = vunpack.c.l.b16 %v120
    %v238 = vunpack.c.h.b16 %v120
    %v239 = vunpack.c.l.b16 %v121
    %v240 = vunpack.c.h.b16 %v121
    %v241 = vpack.c.b16 %v193, %v191
    %v242 = vpack.c.b16 %v194, %v192
    %v243 = vpack.c.b16 %v197, %v195
    %v244 = vpack.c.b16 %v198, %v196
    %v245 = vpack.c.b16 %v201, %v199
    %v246 = vpack.c.b16 %v202, %v200
    %v247 = vpack.c.b16 %v205, %v203
    %v248 = vpack.c.b16 %v206, %v204
    %v249 = vpack.c.b16 %v209, %v207
    %v250 = vpack.c.b16 %v210, %v208
    %v251 = vpack.c.b16 %v213, %v211
    %v252 = vpack.c.b16 %v214, %v212
    %v253 = vpack.c.b16 %v217, %v215
    %v254 = vpack.c.b16 %v218, %v216
    %v255 = vpack.c.b16 %v221, %v219
    %v256 = vpack.c.b16 %v222, %v220
    %v257 = vpack.c.b16 %v225, %v223
    %v258 = vpack.c.b16 %v226, %v224
    %v259 = vpack.c.b16 %v229, %v227
    %v260 = vpack.c.b16 %v230, %v228
    %v261 = vpack.c.b16 %v233, %v231
    %v262 = vpack.c.b16 %v234, %v232
    %v263 = vpack.c.b16 %v237, %v235
    %v264 = vpack.c.b16 %v238, %v236
    %v265 = vpack.c.b16 %v239, %v239
    %v266 = vpack.c.b16 %v240, %v240
    %v325 = vunpack.c.l.b16 %v122
    %v326 = vunpack.c.h.b16 %v122
    %v327 = vunpack.c.l.b16 %v123
    %v328 = vunpack.c.h.b16 %v123
    %v329 = vunpack.c.l.b16 %v124
    %v330 = vunpack.c.h.b16 %v124
    %v331 = vunpack.c.l.b16 %v125
    %v332 = vunpack.c.h.b16 %v125
    %v333 = vunpack.c.l.b16 %v126
    %v334 = vunpack.c.h.b16 %v126
    %v335 = vunpack.c.l.b16 %v127
    %v336 = vunpack.c.h.b16 %v127
    %v337 = vunpack.c.l.b16 %v128
    %v338 = vunpack.c.h.b16 %v128
    %v339 = vunpack.c.l.b16 %v129
    %v340 = vunpack.c.h.b16 %v129
    %v341 = vunpack.c.l.b16 %v130
    %v342 = vunpack.c.h.b16 %v130
    %v343 = vunpack.c.l.b16 %v131
    %v344 = vunpack.c.h.b16 %v131
    %v345 = vunpack.c.l.b16 %v132
    %v346 = vunpack.c.h.b16 %v132
    %v347 = vunpack.c.l.b16 %v133
    %v348 = vunpack.c.h.b16 %v133
    %v349 = vunpack.c.l.b16 %v134
    %v350 = vunpack.c.h.b16 %v134
    %v351 = vunpack.c.l.b16 %v135
    %v352 = vunpack.c.h.b16 %v135
    %v353 = vunpack.c.l.b16 %v136
    %v354 = vunpack.c.h.b16 %v136
    %v355 = vunpack.c.l.b16 %v137
    %v356 = vunpack.c.h.b16 %v137
    %v357 = vunpack.c.l.b16 %v138
    %v358 = vunpack.c.h.b16 %v138
    %v359 = vunpack.c.l.b16 %v139
    %v360 = vunpack.c.h.b16 %v139
    %v361 = vunpack.c.l.b16 %v140
    %v362 = vunpack.c.h.b16 %v140
    %v363 = vunpack.c.l.b16 %v141
    %v364 = vunpack.c.h.b16 %v141
    %v365 = vunpack.c.l.b16 %v142
    %v366 = vunpack.c.h.b16 %v142
    %v367 = vunpack.c.l.b16 %v143
    %v368 = vunpack.c.h.b16 %v143
    %v369 = vunpack.c.l.b16 %v144
    %v370 = vunpack.c.h.b16 %v144
    %v371 = vunpack.c.l.b16 %v145
    %v372 = vunpack.c.h.b16 %v145
    %v373 = vunpack.c.l.b16 %v146
    %v374 = vunpack.c.h.b16 %v146
    %v375 = vunpack.c.l.b16 %v147
    %v376 = vunpack.c.h.b16 %v147
    %v377 = vunpack.c.l.b16 %v148
    %v378 = vunpack.c.h.b16 %v148
    %v379 = vunpack.c.l.b16 %v149
    %v380 = vunpack.c.h.b16 %v149
    %v381 = vunpack.c.l.b16 %v150
    %v382 = vunpack.c.h.b16 %v150
    %v383 = vunpack.c.l.b16 %v151
    %v384 = vunpack.c.h.b16 %v151
    %v385 = vunpack.c.l.b16 %v152
    %v386 = vunpack.c.h.b16 %v152
    %v387 = vunpack.c.l.b16 %v153
    %v388 = vunpack.c.h.b16 %v153
    %v389 = vpack.c.b16 %v327, %v325
    %v390 = vpack.c.b16 %v328, %v326
    %v391 = vpack.c.b16 %v331, %v329
    %v392 = vpack.c.b16 %v332, %v330
    %v393 = vpack.c.b16 %v335, %v333
    %v394 = vpack.c.b16 %v336, %v334
    %v395 = vpack.c.b16 %v339, %v337
    %v396 = vpack.c.b16 %v340, %v338
    %v397 = vpack.c.b16 %v343, %v341
    %v398 = vpack.c.b16 %v344, %v342
    %v399 = vpack.c.b16 %v347, %v345
    %v400 = vpack.c.b16 %v348, %v346
    %v401 = vpack.c.b16 %v351, %v349
    %v402 = vpack.c.b16 %v352, %v350
    %v403 = vpack.c.b16 %v355, %v353
    %v404 = vpack.c.b16 %v356, %v354
    %v405 = vpack.c.b16 %v359, %v357
    %v406 = vpack.c.b16 %v360, %v358
    %v407 = vpack.c.b16 %v363, %v361
    %v408 = vpack.c.b16 %v364, %v362
    %v409 = vpack.c.b16 %v367, %v365
    %v410 = vpack.c.b16 %v368, %v366
    %v411 = vpack.c.b16 %v371, %v369
    %v412 = vpack.c.b16 %v372, %v370
    %v413 = vpack.c.b16 %v375, %v373
    %v414 = vpack.c.b16 %v376, %v374
    %v415 = vpack.c.b16 %v379, %v377
    %v416 = vpack.c.b16 %v380, %v378
    %v417 = vpack.c.b16 %v383, %v381
    %v418 = vpack.c.b16 %v384, %v382
    %v419 = vpack.c.b16 %v387, %v385
    %v420 = vpack.c.b16 %v388, %v386
    %453 = vmatprep.subr.bf16.mxu0 %v390
    %454 = vmatpush1.bf16.msra.mxu0 %v389
    %455 = vmatprep.subr.bf16.mxu0 %v392
    %456 = vmatpush1.bf16.msra.mxu0 %v391
    %457 = vmatprep.subr.bf16.mxu0 %v394
    %458 = vmatpush1.bf16.msra.mxu0 %v393
    %459 = vmatprep.subr.bf16.mxu0 %v396
    %460 = vmatpush1.bf16.msra.mxu0 %v395
    %461 = vmatprep.subr.bf16.mxu0 %v398
    %462 = vmatpush1.bf16.msra.mxu0 %v397
    %463 = vmatprep.subr.bf16.mxu0 %v400
    %464 = vmatpush1.bf16.msra.mxu0 %v399
    %465 = vmatprep.subr.bf16.mxu0 %v402
    %466 = vmatpush1.bf16.msra.mxu0 %v401
    %467 = vmatprep.subr.bf16.mxu0 %v404
    %468 = vmatpush1.bf16.msra.mxu0 %v403
    %469 = vmatprep.subr.bf16.mxu0 %v406
    %470 = vmatpush1.bf16.msra.mxu0 %v405
    %471 = vmatprep.subr.bf16.mxu0 %v408
    %472 = vmatpush1.bf16.msra.mxu0 %v407
    %473 = vmatprep.subr.bf16.mxu0 %v410
    %474 = vmatpush1.bf16.msra.mxu0 %v409
    %475 = vmatprep.subr.bf16.mxu0 %v412
    %476 = vmatpush1.bf16.msra.mxu0 %v411
    %477 = vmatprep.subr.bf16.mxu0 %v414
    %478 = vmatpush1.bf16.msra.mxu0 %v413
    %479 = vmatprep.subr.bf16.mxu0 %v416
    %480 = vmatpush1.bf16.msra.mxu0 %v415
    %481 = vmatprep.subr.bf16.mxu0 %v418
    %482 = vmatpush1.bf16.msra.mxu0 %v417
    %483 = vmatprep.subr.bf16.mxu0 %v420
    %484 = vmatpush1.bf16.msra.mxu0 %v419
    %485 = vmatprep.mubr.bf16.mxu0 %v242
    %486 = vmatmul.mubr.bf16.gmra.mrb[0].mxu0 %v241
    %v487 = vpop.f32.mrb[0].mxu0
    %v488 = vadd.f32 %v159, %v487
    %v489 = vpop.f32.mrb[0].mxu0
    %v490 = vadd.f32 %v163, %v489
    %v491 = vpop.f32.mrb[0].mxu0
    %v492 = vadd.f32 %v159, %v491
    %v493 = vpop.f32.mrb[0].mxu0
    %v494 = vadd.f32 %v163, %v493
    %495 = vmatprep.mubr.bf16.mxu0 %v244
    %496 = vmatmul.mubr.bf16.gmra.mrb[0].mxu0 %v243
    %v497 = vpop.f32.mrb[0].mxu0
    %v498 = vadd.f32 %v159, %v497
    %v499 = vpop.f32.mrb[0].mxu0
    %v500 = vadd.f32 %v163, %v499
    %v501 = vpop.f32.mrb[0].mxu0
    %v502 = vadd.f32 %v159, %v501
    %v503 = vpop.f32.mrb[0].mxu0
    %v504 = vadd.f32 %v163, %v503
    %505 = vmatprep.mubr.bf16.mxu0 %v246
    %506 = vmatmul.mubr.bf16.gmra.mrb[0].mxu0 %v245
    %v507 = vpop.f32.mrb[0].mxu0
    %v508 = vadd.f32 %v159, %v507
    %v509 = vpop.f32.mrb[0].mxu0
    %v510 = vadd.f32 %v163, %v509
    %v511 = vpop.f32.mrb[0].mxu0
    %v512 = vadd.f32 %v159, %v511
    %v513 = vpop.f32.mrb[0].mxu0
    %v514 = vadd.f32 %v163, %v513
    %515 = vmatprep.mubr.bf16.mxu0 %v248
    %516 = vmatmul.mubr.bf16.gmra.mrb[0].mxu0 %v247
    %v517 = vpop.f32.mrb[0].mxu0
    %v518 = vadd.f32 %v159, %v517
    %v519 = vpop.f32.mrb[0].mxu0
    %v520 = vadd.f32 %v163, %v519
    %v521 = vpop.f32.mrb[0].mxu0
    %v522 = vadd.f32 %v159, %v521
    %v523 = vpop.f32.mrb[0].mxu0
    %v524 = vadd.f32 %v163, %v523
    %525 = vmatprep.mubr.bf16.mxu0 %v250
    %526 = vmatmul.mubr.bf16.gmra.mrb[0].mxu0 %v249
    %v527 = vpop.f32.mrb[0].mxu0
    %v528 = vadd.f32 %v159, %v527
    %v529 = vpop.f32.mrb[0].mxu0
    %v530 = vadd.f32 %v163, %v529
    %v531 = vpop.f32.mrb[0].mxu0
    %v532 = vadd.f32 %v159, %v531
    %v533 = vpop.f32.mrb[0].mxu0
    %v534 = vadd.f32 %v163, %v533
    %535 = vmatprep.mubr.bf16.mxu0 %v252
    %536 = vmatmul.mubr.bf16.gmra.mrb[0].mxu0 %v251
    %v537 = vpop.f32.mrb[0].mxu0
    %v538 = vadd.f32 %v159, %v537
    %v539 = vpop.f32.mrb[0].mxu0
    %v540 = vadd.f32 %v163, %v539
    %v541 = vpop.f32.mrb[0].mxu0
    %v542 = vadd.f32 %v159, %v541
    %v543 = vpop.f32.mrb[0].mxu0
    %v544 = vadd.f32 %v163, %v543
    %545 = vmatprep.mubr.bf16.mxu0 %v254
    %546 = vmatmul.mubr.bf16.gmra.mrb[0].mxu0 %v253
    %v547 = vpop.f32.mrb[0].mxu0
    %v548 = vadd.f32 %v159, %v547
    %v549 = vpop.f32.mrb[0].mxu0
    %v550 = vadd.f32 %v163, %v549
    %v551 = vpop.f32.mrb[0].mxu0
    %v552 = vadd.f32 %v159, %v551
    %v553 = vpop.f32.mrb[0].mxu0
    %v554 = vadd.f32 %v163, %v553
    %555 = vmatprep.mubr.bf16.mxu0 %v256
    %556 = vmatmul.mubr.bf16.gmra.mrb[0].mxu0 %v255
    %v557 = vpop.f32.mrb[0].mxu0
    %v558 = vadd.f32 %v159, %v557
    %v559 = vpop.f32.mrb[0].mxu0
    %v560 = vadd.f32 %v163, %v559
    %v561 = vpop.f32.mrb[0].mxu0
    %v562 = vadd.f32 %v159, %v561
    %v563 = vpop.f32.mrb[0].mxu0
    %v564 = vadd.f32 %v163, %v563
    %565 = vmatprep.mubr.bf16.mxu0 %v258
    %566 = vmatmul.mubr.bf16.gmra.mrb[0].mxu0 %v257
    %v567 = vpop.f32.mrb[0].mxu0
    %v568 = vadd.f32 %v159, %v567
    %v569 = vpop.f32.mrb[0].mxu0
    %v570 = vadd.f32 %v163, %v569
    %v571 = vpop.f32.mrb[0].mxu0
    %v572 = vadd.f32 %v159, %v571
    %v573 = vpop.f32.mrb[0].mxu0
    %v574 = vadd.f32 %v163, %v573
    %575 = vmatprep.mubr.bf16.mxu0 %v260
    %576 = vmatmul.mubr.bf16.gmra.mrb[0].mxu0 %v259
    %v577 = vpop.f32.mrb[0].mxu0
    %v578 = vadd.f32 %v159, %v577
    %v579 = vpop.f32.mrb[0].mxu0
    %v580 = vadd.f32 %v163, %v579
    %v581 = vpop.f32.mrb[0].mxu0
    %v582 = vadd.f32 %v159, %v581
    %v583 = vpop.f32.mrb[0].mxu0
    %v584 = vadd.f32 %v163, %v583
    %585 = vmatprep.mubr.bf16.mxu0 %v262
    %586 = vmatmul.mubr.bf16.gmra.mrb[0].mxu0 %v261
    %v587 = vpop.f32.mrb[0].mxu0
    %v588 = vadd.f32 %v159, %v587
    %v589 = vpop.f32.mrb[0].mxu0
    %v590 = vadd.f32 %v163, %v589
    %v591 = vpop.f32.mrb[0].mxu0
    %v592 = vadd.f32 %v159, %v591
    %v593 = vpop.f32.mrb[0].mxu0
    %v594 = vadd.f32 %v163, %v593
    %595 = vmatprep.mubr.bf16.mxu0 %v264
    %596 = vmatmul.mubr.bf16.gmra.mrb[0].mxu0 %v263
    %v597 = vpop.f32.mrb[0].mxu0
    %v598 = vadd.f32 %v159, %v597
    %v599 = vpop.f32.mrb[0].mxu0
    %v600 = vadd.f32 %v163, %v599
    %v601 = vpop.f32.mrb[0].mxu0
    %v602 = vadd.f32 %v159, %v601
    %v603 = vpop.f32.mrb[0].mxu0
    %v604 = vadd.f32 %v163, %v603
    %605 = vmatprep.mubr.bf16.mxu0 %v266
    %606 = vmatmul.mubr.bf16.gmra.mrb[0].mxu0 %v265
    %v607 = vpop.f32.mrb[0].mxu0
    %v608 = vadd.f32 %v159, %v607
    %v609 = vpop.f32.mrb[0].mxu0
    %v610 = vadd.f32 %v163, %v609
    %v611 = vpop.f32.mrb[0].mxu0
    %v612 = vpop.f32.mrb[0].mxu0
    %613 = vdwg.mxu0
    %v614 = vmul.f32 %v488, 0.01
    %v615 = vmul.f32 %v490, 0.01
    %v616 = vmul.f32 %v492, 0.01
    %v617 = vmul.f32 %v494, 0.01
    %v618 = vmul.f32 %v498, 0.01
    %v619 = vmul.f32 %v500, 0.01
    %v620 = vmul.f32 %v502, 0.01
    %v621 = vmul.f32 %v504, 0.01
    %v622 = vmul.f32 %v508, 0.01
    %v623 = vmul.f32 %v510, 0.01
    %v624 = vmul.f32 %v512, 0.01
    %v625 = vmul.f32 %v514, 0.01
    %v626 = vmul.f32 %v518, 0.01
    %v627 = vmul.f32 %v520, 0.01
    %v628 = vmul.f32 %v522, 0.01
    %v629 = vmul.f32 %v524, 0.01
    %v630 = vmul.f32 %v528, 0.01
    %v631 = vmul.f32 %v530, 0.01
    %v632 = vmul.f32 %v532, 0.01
    %v633 = vmul.f32 %v534, 0.01
    %v634 = vmul.f32 %v538, 0.01
    %v635 = vmul.f32 %v540, 0.01
    %v636 = vmul.f32 %v542, 0.01
    %v637 = vmul.f32 %v544, 0.01
    %v638 = vmul.f32 %v548, 0.01
    %v639 = vmul.f32 %v550, 0.01
    %v640 = vmul.f32 %v552, 0.01
    %v641 = vmul.f32 %v554, 0.01
    %v642 = vmul.f32 %v558, 0.01
    %v643 = vmul.f32 %v560, 0.01
    %v644 = vmul.f32 %v562, 0.01
    %v645 = vmul.f32 %v564, 0.01
    %v646 = vmul.f32 %v568, 0.01
    %v647 = vmul.f32 %v570, 0.01
    %v648 = vmul.f32 %v572, 0.01
    %v649 = vmul.f32 %v574, 0.01
    %v650 = vmul.f32 %v578, 0.01
    %v651 = vmul.f32 %v580, 0.01
    %v652 = vmul.f32 %v582, 0.01
    %v653 = vmul.f32 %v584, 0.01
    %v654 = vmul.f32 %v588, 0.01
    %v655 = vmul.f32 %v590, 0.01
    %v656 = vmul.f32 %v592, 0.01
    %v657 = vmul.f32 %v594, 0.01
    %v658 = vmul.f32 %v598, 0.01
    %v659 = vmul.f32 %v600, 0.01
    %v660 = vmul.f32 %v602, 0.01
    %v661 = vmul.f32 %v604, 0.01
    %v662 = vmul.f32 %v608, 0.01
    %v663 = vmul.f32 %v610, 0.01
    %v664 = vmax.f32 %v488, %v614
    %v665 = vmax.f32 %v490, %v615
    %v666 = vmax.f32 %v492, %v616
    %v667 = vmax.f32 %v494, %v617
    %v668 = vmax.f32 %v498, %v618
    %v669 = vmax.f32 %v500, %v619
    %v670 = vmax.f32 %v502, %v620
    %v671 = vmax.f32 %v504, %v621
    %v672 = vmax.f32 %v508, %v622
    %v673 = vmax.f32 %v510, %v623
    %v674 = vmax.f32 %v512, %v624
    %v675 = vmax.f32 %v514, %v625
    %v676 = vmax.f32 %v518, %v626
    %v677 = vmax.f32 %v520, %v627
    %v678 = vmax.f32 %v522, %v628
    %v679 = vmax.f32 %v524, %v629
    %v680 = vmax.f32 %v528, %v630
    %v681 = vmax.f32 %v530, %v631
    %v682 = vmax.f32 %v532, %v632
    %v683 = vmax.f32 %v534, %v633
    %v684 = vmax.f32 %v538, %v634
    %v685 = vmax.f32 %v540, %v635
    %v686 = vmax.f32 %v542, %v636
    %v687 = vmax.f32 %v544, %v637
    %v688 = vmax.f32 %v548, %v638
    %v689 = vmax.f32 %v550, %v639
    %v690 = vmax.f32 %v552, %v640
    %v691 = vmax.f32 %v554, %v641
    %v692 = vmax.f32 %v558, %v642
    %v693 = vmax.f32 %v560, %v643
    %v694 = vmax.f32 %v562, %v644
    %v695 = vmax.f32 %v564, %v645
    %v696 = vmax.f32 %v568, %v646
    %v697 = vmax.f32 %v570, %v647
    %v698 = vmax.f32 %v572, %v648
    %v699 = vmax.f32 %v574, %v649
    %v700 = vmax.f32 %v578, %v650
    %v701 = vmax.f32 %v580, %v651
    %v702 = vmax.f32 %v582, %v652
    %v703 = vmax.f32 %v584, %v653
    %v704 = vmax.f32 %v588, %v654
    %v705 = vmax.f32 %v590, %v655
    %v706 = vmax.f32 %v592, %v656
    %v707 = vmax.f32 %v594, %v657
    %v708 = vmax.f32 %v598, %v658
    %v709 = vmax.f32 %v600, %v659
    %v710 = vmax.f32 %v602, %v660
    %v711 = vmax.f32 %v604, %v661
    %v712 = vmax.f32 %v608, %v662
    %v713 = vmax.f32 %v610, %v663
    %v714 = vpack.c.bf16 %v666, %v664
    %v715 = vpack.c.bf16 %v667, %v665
    %v716 = vpack.c.bf16 %v670, %v668
    %v717 = vpack.c.bf16 %v671, %v669
    %v718 = vpack.c.bf16 %v674, %v672
    %v719 = vpack.c.bf16 %v675, %v673
    %v720 = vpack.c.bf16 %v678, %v676
    %v721 = vpack.c.bf16 %v679, %v677
    %v722 = vpack.c.bf16 %v682, %v680
    %v723 = vpack.c.bf16 %v683, %v681
    %v724 = vpack.c.bf16 %v686, %v684
    %v725 = vpack.c.bf16 %v687, %v685
    %v726 = vpack.c.bf16 %v690, %v688
    %v727 = vpack.c.bf16 %v691, %v689
    %v728 = vpack.c.bf16 %v694, %v692
    %v729 = vpack.c.bf16 %v695, %v693
    %v730 = vpack.c.bf16 %v698, %v696
    %v731 = vpack.c.bf16 %v699, %v697
    %v732 = vpack.c.bf16 %v702, %v700
    %v733 = vpack.c.bf16 %v703, %v701
    %v734 = vpack.c.bf16 %v706, %v704
    %v735 = vpack.c.bf16 %v707, %v705
    %v736 = vpack.c.bf16 %v710, %v708
    %v737 = vpack.c.bf16 %v711, %v709
    %v738 = vpack.c.bf16 %v712, %v712
    %v739 = vpack.c.bf16 %v713, %v713
    %v740 = vld [vmem:[#allocation7] sm:$0xff]
    %v741 = vld [vmem:[#allocation7 + $0x8] sm:$0xff]
    %v742 = vld [vmem:[#allocation7 + $0x10] sm:$0xff]
    %v743 = vld [vmem:[#allocation7 + $0x18] sm:$0xff]
    %v744 = vld [vmem:[#allocation7 + $0x20] sm:$0xff]
    %v745 = vld [vmem:[#allocation7 + $0x28] sm:$0xff]
    %v746 = vld [vmem:[#allocation7 + $0x30] sm:$0xff]
    %v747 = vld [vmem:[#allocation7 + $0x38] sm:$0xff]
    %v748 = vld [vmem:[#allocation7 + $0x40] sm:$0xff]
    %v749 = vld [vmem:[#allocation7 + $0x48] sm:$0xff]
    %v750 = vld [vmem:[#allocation7 + $0x50] sm:$0xff]
    %v751 = vld [vmem:[#allocation7 + $0x58] sm:$0xff]
    %v752 = vld [vmem:[#allocation7 + $0x60] sm:$0xff]
    %v753 = vld [vmem:[#allocation7 + $0x68] sm:$0xff]
    %v754 = vld [vmem:[#allocation7 + $0x70] sm:$0xff]
    %v755 = vld [vmem:[#allocation7 + $0x78] sm:$0xff]
    %v756 = vld [vmem:[#allocation7 + $0x80] sm:$0xff]
    %v757 = vld [vmem:[#allocation7 + $0x88] sm:$0xff]
    %v758 = vld [vmem:[#allocation7 + $0x90] sm:$0xff]
    %v759 = vld [vmem:[#allocation7 + $0x98] sm:$0xff]
    %v760 = vld [vmem:[#allocation7 + $0xa0] sm:$0xff]
    %v761 = vld [vmem:[#allocation7 + $0xa8] sm:$0xff]
    %v762 = vld [vmem:[#allocation7 + $0xb0] sm:$0xff]
    %v763 = vld [vmem:[#allocation7 + $0xb8] sm:$0xff]
    %v764 = vld [vmem:[#allocation7 + $0xc0] sm:$0xff]
    %v765 = vld [vmem:[#allocation7 + $0xc8] sm:$0xff]
    %v766 = vld [vmem:[#allocation7 + $0xd0] sm:$0xff]
    %v767 = vld [vmem:[#allocation7 + $0xd8] sm:$0xff]
    %v768 = vld [vmem:[#allocation7 + $0xe0] sm:$0xff]
    %v769 = vld [vmem:[#allocation7 + $0xe8] sm:$0xff]
    %v770 = vld [vmem:[#allocation7 + $0xf0] sm:$0xff]
    %v771 = vld [vmem:[#allocation7 + $0xf8] sm:$0xff]
    %v772 = vld [vmem:[%s5] sm:$0x3]
    %v774 = vlaneseq
    %v775 = vshrl.u32 %v774, 7
    %v776 = vsub.s32 0, %v775
    %v777 = vrot.slane %v772, %v776
    %v778 = vlaneseq
    %v779 = vshrl.u32 %v778, 7
    %v780 = vsub.s32 1, %v779
    %v781 = vrot.slane %v772, %v780
    %v816 = vunpack.c.l.b16 %v740
    %v817 = vunpack.c.h.b16 %v740
    %v818 = vunpack.c.l.b16 %v741
    %v819 = vunpack.c.h.b16 %v741
    %v820 = vunpack.c.l.b16 %v742
    %v821 = vunpack.c.h.b16 %v742
    %v822 = vunpack.c.l.b16 %v743
    %v823 = vunpack.c.h.b16 %v743
    %v824 = vunpack.c.l.b16 %v744
    %v825 = vunpack.c.h.b16 %v744
    %v826 = vunpack.c.l.b16 %v745
    %v827 = vunpack.c.h.b16 %v745
    %v828 = vunpack.c.l.b16 %v746
    %v829 = vunpack.c.h.b16 %v746
    %v830 = vunpack.c.l.b16 %v747
    %v831 = vunpack.c.h.b16 %v747
    %v832 = vunpack.c.l.b16 %v748
    %v833 = vunpack.c.h.b16 %v748
    %v834 = vunpack.c.l.b16 %v749
    %v835 = vunpack.c.h.b16 %v749
    %v836 = vunpack.c.l.b16 %v750
    %v837 = vunpack.c.h.b16 %v750
    %v838 = vunpack.c.l.b16 %v751
    %v839 = vunpack.c.h.b16 %v751
    %v840 = vunpack.c.l.b16 %v752
    %v841 = vunpack.c.h.b16 %v752
    %v842 = vunpack.c.l.b16 %v753
    %v843 = vunpack.c.h.b16 %v753
    %v844 = vunpack.c.l.b16 %v754
    %v845 = vunpack.c.h.b16 %v754
    %v846 = vunpack.c.l.b16 %v755
    %v847 = vunpack.c.h.b16 %v755
    %v848 = vunpack.c.l.b16 %v756
    %v849 = vunpack.c.h.b16 %v756
    %v850 = vunpack.c.l.b16 %v757
    %v851 = vunpack.c.h.b16 %v757
    %v852 = vunpack.c.l.b16 %v758
    %v853 = vunpack.c.h.b16 %v758
    %v854 = vunpack.c.l.b16 %v759
    %v855 = vunpack.c.h.b16 %v759
    %v856 = vunpack.c.l.b16 %v760
    %v857 = vunpack.c.h.b16 %v760
    %v858 = vunpack.c.l.b16 %v761
    %v859 = vunpack.c.h.b16 %v761
    %v860 = vunpack.c.l.b16 %v762
    %v861 = vunpack.c.h.b16 %v762
    %v862 = vunpack.c.l.b16 %v763
    %v863 = vunpack.c.h.b16 %v763
    %v864 = vunpack.c.l.b16 %v764
    %v865 = vunpack.c.h.b16 %v764
    %v866 = vunpack.c.l.b16 %v765
    %v867 = vunpack.c.h.b16 %v765
    %v868 = vunpack.c.l.b16 %v766
    %v869 = vunpack.c.h.b16 %v766
    %v870 = vunpack.c.l.b16 %v767
    %v871 = vunpack.c.h.b16 %v767
    %v872 = vunpack.c.l.b16 %v768
    %v873 = vunpack.c.h.b16 %v768
    %v874 = vunpack.c.l.b16 %v769
    %v875 = vunpack.c.h.b16 %v769
    %v876 = vunpack.c.l.b16 %v770
    %v877 = vunpack.c.h.b16 %v770
    %v878 = vunpack.c.l.b16 %v771
    %v879 = vunpack.c.h.b16 %v771
    %v880 = vpack.c.b16 %v818, %v816
    %v881 = vpack.c.b16 %v819, %v817
    %v882 = vpack.c.b16 %v822, %v820
    %v883 = vpack.c.b16 %v823, %v821
    %v884 = vpack.c.b16 %v826, %v824
    %v885 = vpack.c.b16 %v827, %v825
    %v886 = vpack.c.b16 %v830, %v828
    %v887 = vpack.c.b16 %v831, %v829
    %v888 = vpack.c.b16 %v834, %v832
    %v889 = vpack.c.b16 %v835, %v833
    %v890 = vpack.c.b16 %v838, %v836
    %v891 = vpack.c.b16 %v839, %v837
    %v892 = vpack.c.b16 %v842, %v840
    %v893 = vpack.c.b16 %v843, %v841
    %v894 = vpack.c.b16 %v846, %v844
    %v895 = vpack.c.b16 %v847, %v845
    %v896 = vpack.c.b16 %v850, %v848
    %v897 = vpack.c.b16 %v851, %v849
    %v898 = vpack.c.b16 %v854, %v852
    %v899 = vpack.c.b16 %v855, %v853
    %v900 = vpack.c.b16 %v858, %v856
    %v901 = vpack.c.b16 %v859, %v857
    %v902 = vpack.c.b16 %v862, %v860
    %v903 = vpack.c.b16 %v863, %v861
    %v904 = vpack.c.b16 %v866, %v864
    %v905 = vpack.c.b16 %v867, %v865
    %v906 = vpack.c.b16 %v870, %v868
    %v907 = vpack.c.b16 %v871, %v869
    %v908 = vpack.c.b16 %v874, %v872
    %v909 = vpack.c.b16 %v875, %v873
    %v910 = vpack.c.b16 %v878, %v876
    %v911 = vpack.c.b16 %v879, %v877
    %944 = vmatprep.subr.bf16.mxu0 %v881
    %945 = vmatpush1.bf16.msra.mxu0 %v880
    %946 = vmatprep.subr.bf16.mxu0 %v883
    %947 = vmatpush1.bf16.msra.mxu0 %v882
    %948 = vmatprep.subr.bf16.mxu0 %v885
    %949 = vmatpush1.bf16.msra.mxu0 %v884
    %950 = vmatprep.subr.bf16.mxu0 %v887
    %951 = vmatpush1.bf16.msra.mxu0 %v886
    %952 = vmatprep.subr.bf16.mxu0 %v889
    %953 = vmatpush1.bf16.msra.mxu0 %v888
    %954 = vmatprep.subr.bf16.mxu0 %v891
    %955 = vmatpush1.bf16.msra.mxu0 %v890
    %956 = vmatprep.subr.bf16.mxu0 %v893
    %957 = vmatpush1.bf16.msra.mxu0 %v892
    %958 = vmatprep.subr.bf16.mxu0 %v895
    %959 = vmatpush1.bf16.msra.mxu0 %v894
    %960 = vmatprep.subr.bf16.mxu0 %v897
    %961 = vmatpush1.bf16.msra.mxu0 %v896
    %962 = vmatprep.subr.bf16.mxu0 %v899
    %963 = vmatpush1.bf16.msra.mxu0 %v898
    %964 = vmatprep.subr.bf16.mxu0 %v901
    %965 = vmatpush1.bf16.msra.mxu0 %v900
    %966 = vmatprep.subr.bf16.mxu0 %v903
    %967 = vmatpush1.bf16.msra.mxu0 %v902
    %968 = vmatprep.subr.bf16.mxu0 %v905
    %969 = vmatpush1.bf16.msra.mxu0 %v904
    %970 = vmatprep.subr.bf16.mxu0 %v907
    %971 = vmatpush1.bf16.msra.mxu0 %v906
    %972 = vmatprep.subr.bf16.mxu0 %v909
    %973 = vmatpush1.bf16.msra.mxu0 %v908
    %974 = vmatprep.subr.bf16.mxu0 %v911
    %975 = vmatpush1.bf16.msra.mxu0 %v910
    %976 = vmatprep.mubr.bf16.mxu0 %v715
    %977 = vmatmul.mubr.bf16.gmra.mrb[0].mxu0 %v714
    %v978 = vpop.f32.mrb[0].mxu0
    %v979 = vadd.f32 %v777, %v978
    %v980 = vpop.f32.mrb[0].mxu0
    %v981 = vadd.f32 %v781, %v980
    %v982 = vpop.f32.mrb[0].mxu0
    %v983 = vadd.f32 %v777, %v982
    %v984 = vpop.f32.mrb[0].mxu0
    %v985 = vadd.f32 %v781, %v984
    %986 = vmatprep.mubr.bf16.mxu0 %v717
    %987 = vmatmul.mubr.bf16.gmra.mrb[0].mxu0 %v716
    %v988 = vpop.f32.mrb[0].mxu0
    %v989 = vadd.f32 %v777, %v988
    %v990 = vpop.f32.mrb[0].mxu0
    %v991 = vadd.f32 %v781, %v990
    %v992 = vpop.f32.mrb[0].mxu0
    %v993 = vadd.f32 %v777, %v992
    %v994 = vpop.f32.mrb[0].mxu0
    %v995 = vadd.f32 %v781, %v994
    %996 = vmatprep.mubr.bf16.mxu0 %v719
    %997 = vmatmul.mubr.bf16.gmra.mrb[0].mxu0 %v718
    %v998 = vpop.f32.mrb[0].mxu0
    %v999 = vadd.f32 %v777, %v998
    %v1000 = vpop.f32.mrb[0].mxu0
    %v1001 = vadd.f32 %v781, %v1000
    %v1002 = vpop.f32.mrb[0].mxu0
    %v1003 = vadd.f32 %v777, %v1002
    %v1004 = vpop.f32.mrb[0].mxu0
    %v1005 = vadd.f32 %v781, %v1004
    %1006 = vmatprep.mubr.bf16.mxu0 %v721
    %1007 = vmatmul.mubr.bf16.gmra.mrb[0].mxu0 %v720
    %v1008 = vpop.f32.mrb[0].mxu0
    %v1009 = vadd.f32 %v777, %v1008
    %v1010 = vpop.f32.mrb[0].mxu0
    %v1011 = vadd.f32 %v781, %v1010
    %v1012 = vpop.f32.mrb[0].mxu0
    %v1013 = vadd.f32 %v777, %v1012
    %v1014 = vpop.f32.mrb[0].mxu0
    %v1015 = vadd.f32 %v781, %v1014
    %1016 = vmatprep.mubr.bf16.mxu0 %v723
    %1017 = vmatmul.mubr.bf16.gmra.mrb[0].mxu0 %v722
    %v1018 = vpop.f32.mrb[0].mxu0
    %v1019 = vadd.f32 %v777, %v1018
    %v1020 = vpop.f32.mrb[0].mxu0
    %v1021 = vadd.f32 %v781, %v1020
    %v1022 = vpop.f32.mrb[0].mxu0
    %v1023 = vadd.f32 %v777, %v1022
    %v1024 = vpop.f32.mrb[0].mxu0
    %v1025 = vadd.f32 %v781, %v1024
    %1026 = vmatprep.mubr.bf16.mxu0 %v725
    %1027 = vmatmul.mubr.bf16.gmra.mrb[0].mxu0 %v724
    %v1028 = vpop.f32.mrb[0].mxu0
    %v1029 = vadd.f32 %v777, %v1028
    %v1030 = vpop.f32.mrb[0].mxu0
    %v1031 = vadd.f32 %v781, %v1030
    %v1032 = vpop.f32.mrb[0].mxu0
    %v1033 = vadd.f32 %v777, %v1032
    %v1034 = vpop.f32.mrb[0].mxu0
    %v1035 = vadd.f32 %v781, %v1034
    %1036 = vmatprep.mubr.bf16.mxu0 %v727
    %1037 = vmatmul.mubr.bf16.gmra.mrb[0].mxu0 %v726
    %v1038 = vpop.f32.mrb[0].mxu0
    %v1039 = vadd.f32 %v777, %v1038
    %v1040 = vpop.f32.mrb[0].mxu0
    %v1041 = vadd.f32 %v781, %v1040
    %v1042 = vpop.f32.mrb[0].mxu0
    %v1043 = vadd.f32 %v777, %v1042
    %v1044 = vpop.f32.mrb[0].mxu0
    %v1045 = vadd.f32 %v781, %v1044
    %1046 = vmatprep.mubr.bf16.mxu0 %v729
    %1047 = vmatmul.mubr.bf16.gmra.mrb[0].mxu0 %v728
    %v1048 = vpop.f32.mrb[0].mxu0
    %v1049 = vadd.f32 %v777, %v1048
    %v1050 = vpop.f32.mrb[0].mxu0
    %v1051 = vadd.f32 %v781, %v1050
    %v1052 = vpop.f32.mrb[0].mxu0
    %v1053 = vadd.f32 %v777, %v1052
    %v1054 = vpop.f32.mrb[0].mxu0
    %v1055 = vadd.f32 %v781, %v1054
    %1056 = vmatprep.mubr.bf16.mxu0 %v731
    %1057 = vmatmul.mubr.bf16.gmra.mrb[0].mxu0 %v730
    %v1058 = vpop.f32.mrb[0].mxu0
    %v1059 = vadd.f32 %v777, %v1058
    %v1060 = vpop.f32.mrb[0].mxu0
    %v1061 = vadd.f32 %v781, %v1060
    %v1062 = vpop.f32.mrb[0].mxu0
    %v1063 = vadd.f32 %v777, %v1062
    %v1064 = vpop.f32.mrb[0].mxu0
    %v1065 = vadd.f32 %v781, %v1064
    %1066 = vmatprep.mubr.bf16.mxu0 %v733
    %1067 = vmatmul.mubr.bf16.gmra.mrb[0].mxu0 %v732
    %v1068 = vpop.f32.mrb[0].mxu0
    %v1069 = vadd.f32 %v777, %v1068
    %v1070 = vpop.f32.mrb[0].mxu0
    %v1071 = vadd.f32 %v781, %v1070
    %v1072 = vpop.f32.mrb[0].mxu0
    %v1073 = vadd.f32 %v777, %v1072
    %v1074 = vpop.f32.mrb[0].mxu0
    %v1075 = vadd.f32 %v781, %v1074
    %1076 = vmatprep.mubr.bf16.mxu0 %v735
    %1077 = vmatmul.mubr.bf16.gmra.mrb[0].mxu0 %v734
    %v1078 = vpop.f32.mrb[0].mxu0
    %v1079 = vadd.f32 %v777, %v1078
    %v1080 = vpop.f32.mrb[0].mxu0
    %v1081 = vadd.f32 %v781, %v1080
    %v1082 = vpop.f32.mrb[0].mxu0
    %v1083 = vadd.f32 %v777, %v1082
    %v1084 = vpop.f32.mrb[0].mxu0
    %v1085 = vadd.f32 %v781, %v1084
    %1086 = vmatprep.mubr.bf16.mxu0 %v737
    %1087 = vmatmul.mubr.bf16.gmra.mrb[0].mxu0 %v736
    %v1088 = vpop.f32.mrb[0].mxu0
    %v1089 = vadd.f32 %v777, %v1088
    %v1090 = vpop.f32.mrb[0].mxu0
    %v1091 = vadd.f32 %v781, %v1090
    %v1092 = vpop.f32.mrb[0].mxu0
    %v1093 = vadd.f32 %v777, %v1092
    %v1094 = vpop.f32.mrb[0].mxu0
    %v1095 = vadd.f32 %v781, %v1094
    %1096 = vmatprep.mubr.bf16.mxu0 %v739
    %1097 = vmatmul.mubr.bf16.gmra.mrb[0].mxu0 %v738
    %v1098 = vpop.f32.mrb[0].mxu0
    %v1099 = vadd.f32 %v777, %v1098
    %v1100 = vpop.f32.mrb[0].mxu0
    %v1101 = vadd.f32 %v781, %v1100
    %v1102 = vpop.f32.mrb[0].mxu0
    %v1103 = vpop.f32.mrb[0].mxu0
    %1104 = vdwg.mxu0
    %v1105 = vmul.f32 %v979, 0.01
    %v1106 = vmul.f32 %v981, 0.01
    %v1107 = vmul.f32 %v983, 0.01
    %v1108 = vmul.f32 %v985, 0.01
    %v1109 = vmul.f32 %v989, 0.01
    %v1110 = vmul.f32 %v991, 0.01
    %v1111 = vmul.f32 %v993, 0.01
    %v1112 = vmul.f32 %v995, 0.01
    %v1113 = vmul.f32 %v999, 0.01
    %v1114 = vmul.f32 %v1001, 0.01
    %v1115 = vmul.f32 %v1003, 0.01
    %v1116 = vmul.f32 %v1005, 0.01
    %v1117 = vmul.f32 %v1009, 0.01
    %v1118 = vmul.f32 %v1011, 0.01
    %v1119 = vmul.f32 %v1013, 0.01
    %v1120 = vmul.f32 %v1015, 0.01
    %v1121 = vmul.f32 %v1019, 0.01
    %v1122 = vmul.f32 %v1021, 0.01
    %v1123 = vmul.f32 %v1023, 0.01
    %v1124 = vmul.f32 %v1025, 0.01
    %v1125 = vmul.f32 %v1029, 0.01
    %v1126 = vmul.f32 %v1031, 0.01
    %v1127 = vmul.f32 %v1033, 0.01
    %v1128 = vmul.f32 %v1035, 0.01
    %v1129 = vmul.f32 %v1039, 0.01
    %v1130 = vmul.f32 %v1041, 0.01
    %v1131 = vmul.f32 %v1043, 0.01
    %v1132 = vmul.f32 %v1045, 0.01
    %v1133 = vmul.f32 %v1049, 0.01
    %v1134 = vmul.f32 %v1051, 0.01
    %v1135 = vmul.f32 %v1053, 0.01
    %v1136 = vmul.f32 %v1055, 0.01
    %v1137 = vmul.f32 %v1059, 0.01
    %v1138 = vmul.f32 %v1061, 0.01
    %v1139 = vmul.f32 %v1063, 0.01
    %v1140 = vmul.f32 %v1065, 0.01
    %v1141 = vmul.f32 %v1069, 0.01
    %v1142 = vmul.f32 %v1071, 0.01
    %v1143 = vmul.f32 %v1073, 0.01
    %v1144 = vmul.f32 %v1075, 0.01
    %v1145 = vmul.f32 %v1079, 0.01
    %v1146 = vmul.f32 %v1081, 0.01
    %v1147 = vmul.f32 %v1083, 0.01
    %v1148 = vmul.f32 %v1085, 0.01
    %v1149 = vmul.f32 %v1089, 0.01
    %v1150 = vmul.f32 %v1091, 0.01
    %v1151 = vmul.f32 %v1093, 0.01
    %v1152 = vmul.f32 %v1095, 0.01
    %v1153 = vmul.f32 %v1099, 0.01
    %v1154 = vmul.f32 %v1101, 0.01
    %v1155 = vmax.f32 %v979, %v1105
    %v1156 = vmax.f32 %v981, %v1106
    %v1157 = vmax.f32 %v983, %v1107
    %v1158 = vmax.f32 %v985, %v1108
    %v1159 = vmax.f32 %v989, %v1109
    %v1160 = vmax.f32 %v991, %v1110
    %v1161 = vmax.f32 %v993, %v1111
    %v1162 = vmax.f32 %v995, %v1112
    %v1163 = vmax.f32 %v999, %v1113
    %v1164 = vmax.f32 %v1001, %v1114
    %v1165 = vmax.f32 %v1003, %v1115
    %v1166 = vmax.f32 %v1005, %v1116
    %v1167 = vmax.f32 %v1009, %v1117
    %v1168 = vmax.f32 %v1011, %v1118
    %v1169 = vmax.f32 %v1013, %v1119
    %v1170 = vmax.f32 %v1015, %v1120
    %v1171 = vmax.f32 %v1019, %v1121
    %v1172 = vmax.f32 %v1021, %v1122
    %v1173 = vmax.f32 %v1023, %v1123
    %v1174 = vmax.f32 %v1025, %v1124
    %v1175 = vmax.f32 %v1029, %v1125
    %v1176 = vmax.f32 %v1031, %v1126
    %v1177 = vmax.f32 %v1033, %v1127
    %v1178 = vmax.f32 %v1035, %v1128
    %v1179 = vmax.f32 %v1039, %v1129
    %v1180 = vmax.f32 %v1041, %v1130
    %v1181 = vmax.f32 %v1043, %v1131
    %v1182 = vmax.f32 %v1045, %v1132
    %v1183 = vmax.f32 %v1049, %v1133
    %v1184 = vmax.f32 %v1051, %v1134
    %v1185 = vmax.f32 %v1053, %v1135
    %v1186 = vmax.f32 %v1055, %v1136
    %v1187 = vmax.f32 %v1059, %v1137
    %v1188 = vmax.f32 %v1061, %v1138
    %v1189 = vmax.f32 %v1063, %v1139
    %v1190 = vmax.f32 %v1065, %v1140
    %v1191 = vmax.f32 %v1069, %v1141
    %v1192 = vmax.f32 %v1071, %v1142
    %v1193 = vmax.f32 %v1073, %v1143
    %v1194 = vmax.f32 %v1075, %v1144
    %v1195 = vmax.f32 %v1079, %v1145
    %v1196 = vmax.f32 %v1081, %v1146
    %v1197 = vmax.f32 %v1083, %v1147
    %v1198 = vmax.f32 %v1085, %v1148
    %v1199 = vmax.f32 %v1089, %v1149
    %v1200 = vmax.f32 %v1091, %v1150
    %v1201 = vmax.f32 %v1093, %v1151
    %v1202 = vmax.f32 %v1095, %v1152
    %v1203 = vmax.f32 %v1099, %v1153
    %v1204 = vmax.f32 %v1101, %v1154
    %v1205 = vpack.c.bf16 %v1157, %v1155
    %v1206 = vpack.c.bf16 %v1158, %v1156
    %v1207 = vpack.c.bf16 %v1161, %v1159
    %v1208 = vpack.c.bf16 %v1162, %v1160
    %v1209 = vpack.c.bf16 %v1165, %v1163
    %v1210 = vpack.c.bf16 %v1166, %v1164
    %v1211 = vpack.c.bf16 %v1169, %v1167
    %v1212 = vpack.c.bf16 %v1170, %v1168
    %v1213 = vpack.c.bf16 %v1173, %v1171
    %v1214 = vpack.c.bf16 %v1174, %v1172
    %v1215 = vpack.c.bf16 %v1177, %v1175
    %v1216 = vpack.c.bf16 %v1178, %v1176
    %v1217 = vpack.c.bf16 %v1181, %v1179
    %v1218 = vpack.c.bf16 %v1182, %v1180
    %v1219 = vpack.c.bf16 %v1185, %v1183
    %v1220 = vpack.c.bf16 %v1186, %v1184
    %v1221 = vpack.c.bf16 %v1189, %v1187
    %v1222 = vpack.c.bf16 %v1190, %v1188
    %v1223 = vpack.c.bf16 %v1193, %v1191
    %v1224 = vpack.c.bf16 %v1194, %v1192
    %v1225 = vpack.c.bf16 %v1197, %v1195
    %v1226 = vpack.c.bf16 %v1198, %v1196
    %v1227 = vpack.c.bf16 %v1201, %v1199
    %v1228 = vpack.c.bf16 %v1202, %v1200
    %v1229 = vpack.c.bf16 %v1203, %v1203
    %v1230 = vpack.c.bf16 %v1204, %v1204
    %v1231 = vld [vmem:[#allocation8] sm:$0xff]
    %v1232 = vld [vmem:[#allocation8 + $0x8] sm:$0xff]
    %v1233 = vld [vmem:[#allocation8 + $0x10] sm:$0xff]
    %v1234 = vld [vmem:[#allocation8 + $0x18] sm:$0xff]
    %v1235 = vld [vmem:[#allocation8 + $0x20] sm:$0xff]
    %v1236 = vld [vmem:[#allocation8 + $0x28] sm:$0xff]
    %v1237 = vld [vmem:[#allocation8 + $0x30] sm:$0xff]
    %v1238 = vld [vmem:[#allocation8 + $0x38] sm:$0xff]
    %v1239 = vld [vmem:[#allocation8 + $0x40] sm:$0xff]
    %v1240 = vld [vmem:[#allocation8 + $0x48] sm:$0xff]
    %v1241 = vld [vmem:[#allocation8 + $0x50] sm:$0xff]
    %v1242 = vld [vmem:[#allocation8 + $0x58] sm:$0xff]
    %v1243 = vld [vmem:[#allocation8 + $0x60] sm:$0xff]
    %v1244 = vld [vmem:[#allocation8 + $0x68] sm:$0xff]
    %v1245 = vld [vmem:[#allocation8 + $0x70] sm:$0xff]
    %v1246 = vld [vmem:[#allocation8 + $0x78] sm:$0xff]
    %v1247 = vld [vmem:[#allocation8 + $0x80] sm:$0xff]
    %v1248 = vld [vmem:[#allocation8 + $0x88] sm:$0xff]
    %v1249 = vld [vmem:[#allocation8 + $0x90] sm:$0xff]
    %v1250 = vld [vmem:[#allocation8 + $0x98] sm:$0xff]
    %v1251 = vld [vmem:[#allocation8 + $0xa0] sm:$0xff]
    %v1252 = vld [vmem:[#allocation8 + $0xa8] sm:$0xff]
    %v1253 = vld [vmem:[#allocation8 + $0xb0] sm:$0xff]
    %v1254 = vld [vmem:[#allocation8 + $0xb8] sm:$0xff]
    %v1255 = vld [vmem:[#allocation8 + $0xc0] sm:$0xff]
    %v1256 = vld [vmem:[#allocation8 + $0xc8] sm:$0xff]
    %v1257 = vld [vmem:[#allocation8 + $0xd0] sm:$0xff]
    %v1258 = vld [vmem:[#allocation8 + $0xd8] sm:$0xff]
    %v1259 = vld [vmem:[#allocation8 + $0xe0] sm:$0xff]
    %v1260 = vld [vmem:[#allocation8 + $0xe8] sm:$0xff]
    %v1261 = vld [vmem:[#allocation8 + $0xf0] sm:$0xff]
    %v1262 = vld [vmem:[#allocation8 + $0xf8] sm:$0xff]
    %v1263 = vld [vmem:[%s7] sm:$0x3]
    %v1265 = vlaneseq
    %v1266 = vshrl.u32 %v1265, 7
    %v1267 = vsub.s32 0, %v1266
    %v1268 = vrot.slane %v1263, %v1267
    %v1269 = vlaneseq
    %v1270 = vshrl.u32 %v1269, 7
    %v1271 = vsub.s32 1, %v1270
    %v1272 = vrot.slane %v1263, %v1271
    %v1307 = vunpack.c.l.b16 %v1231
    %v1308 = vunpack.c.h.b16 %v1231
    %v1309 = vunpack.c.l.b16 %v1232
    %v1310 = vunpack.c.h.b16 %v1232
    %v1311 = vunpack.c.l.b16 %v1233
    %v1312 = vunpack.c.h.b16 %v1233
    %v1313 = vunpack.c.l.b16 %v1234
    %v1314 = vunpack.c.h.b16 %v1234
    %v1315 = vunpack.c.l.b16 %v1235
    %v1316 = vunpack.c.h.b16 %v1235
    %v1317 = vunpack.c.l.b16 %v1236
    %v1318 = vunpack.c.h.b16 %v1236
    %v1319 = vunpack.c.l.b16 %v1237
    %v1320 = vunpack.c.h.b16 %v1237
    %v1321 = vunpack.c.l.b16 %v1238
    %v1322 = vunpack.c.h.b16 %v1238
    %v1323 = vunpack.c.l.b16 %v1239
    %v1324 = vunpack.c.h.b16 %v1239
    %v1325 = vunpack.c.l.b16 %v1240
    %v1326 = vunpack.c.h.b16 %v1240
    %v1327 = vunpack.c.l.b16 %v1241
    %v1328 = vunpack.c.h.b16 %v1241
    %v1329 = vunpack.c.l.b16 %v1242
    %v1330 = vunpack.c.h.b16 %v1242
    %v1331 = vunpack.c.l.b16 %v1243
    %v1332 = vunpack.c.h.b16 %v1243
    %v1333 = vunpack.c.l.b16 %v1244
    %v1334 = vunpack.c.h.b16 %v1244
    %v1335 = vunpack.c.l.b16 %v1245
    %v1336 = vunpack.c.h.b16 %v1245
    %v1337 = vunpack.c.l.b16 %v1246
    %v1338 = vunpack.c.h.b16 %v1246
    %v1339 = vunpack.c.l.b16 %v1247
    %v1340 = vunpack.c.h.b16 %v1247
    %v1341 = vunpack.c.l.b16 %v1248
    %v1342 = vunpack.c.h.b16 %v1248
    %v1343 = vunpack.c.l.b16 %v1249
    %v1344 = vunpack.c.h.b16 %v1249
    %v1345 = vunpack.c.l.b16 %v1250
    %v1346 = vunpack.c.h.b16 %v1250
    %v1347 = vunpack.c.l.b16 %v1251
    %v1348 = vunpack.c.h.b16 %v1251
    %v1349 = vunpack.c.l.b16 %v1252
    %v1350 = vunpack.c.h.b16 %v1252
    %v1351 = vunpack.c.l.b16 %v1253
    %v1352 = vunpack.c.h.b16 %v1253
    %v1353 = vunpack.c.l.b16 %v1254
    %v1354 = vunpack.c.h.b16 %v1254
    %v1355 = vunpack.c.l.b16 %v1255
    %v1356 = vunpack.c.h.b16 %v1255
    %v1357 = vunpack.c.l.b16 %v1256
    %v1358 = vunpack.c.h.b16 %v1256
    %v1359 = vunpack.c.l.b16 %v1257
    %v1360 = vunpack.c.h.b16 %v1257
    %v1361 = vunpack.c.l.b16 %v1258
    %v1362 = vunpack.c.h.b16 %v1258
    %v1363 = vunpack.c.l.b16 %v1259
    %v1364 = vunpack.c.h.b16 %v1259
    %v1365 = vunpack.c.l.b16 %v1260
    %v1366 = vunpack.c.h.b16 %v1260
    %v1367 = vunpack.c.l.b16 %v1261
    %v1368 = vunpack.c.h.b16 %v1261
    %v1369 = vunpack.c.l.b16 %v1262
    %v1370 = vunpack.c.h.b16 %v1262
    %v1371 = vpack.c.b16 %v1309, %v1307
    %v1372 = vpack.c.b16 %v1310, %v1308
    %v1373 = vpack.c.b16 %v1313, %v1311
    %v1374 = vpack.c.b16 %v1314, %v1312
    %v1375 = vpack.c.b16 %v1317, %v1315
    %v1376 = vpack.c.b16 %v1318, %v1316
    %v1377 = vpack.c.b16 %v1321, %v1319
    %v1378 = vpack.c.b16 %v1322, %v1320
    %v1379 = vpack.c.b16 %v1325, %v1323
    %v1380 = vpack.c.b16 %v1326, %v1324
    %v1381 = vpack.c.b16 %v1329, %v1327
    %v1382 = vpack.c.b16 %v1330, %v1328
    %v1383 = vpack.c.b16 %v1333, %v1331
    %v1384 = vpack.c.b16 %v1334, %v1332
    %v1385 = vpack.c.b16 %v1337, %v1335
    %v1386 = vpack.c.b16 %v1338, %v1336
    %v1387 = vpack.c.b16 %v1341, %v1339
    %v1388 = vpack.c.b16 %v1342, %v1340
    %v1389 = vpack.c.b16 %v1345, %v1343
    %v1390 = vpack.c.b16 %v1346, %v1344
    %v1391 = vpack.c.b16 %v1349, %v1347
    %v1392 = vpack.c.b16 %v1350, %v1348
    %v1393 = vpack.c.b16 %v1353, %v1351
    %v1394 = vpack.c.b16 %v1354, %v1352
    %v1395 = vpack.c.b16 %v1357, %v1355
    %v1396 = vpack.c.b16 %v1358, %v1356
    %v1397 = vpack.c.b16 %v1361, %v1359
    %v1398 = vpack.c.b16 %v1362, %v1360
    %v1399 = vpack.c.b16 %v1365, %v1363
    %v1400 = vpack.c.b16 %v1366, %v1364
    %v1401 = vpack.c.b16 %v1369, %v1367
    %v1402 = vpack.c.b16 %v1370, %v1368
    %1435 = vmatprep.subr.bf16.mxu0 %v1372
    %1436 = vmatpush1.bf16.msra.mxu0 %v1371
    %1437 = vmatprep.subr.bf16.mxu0 %v1374
    %1438 = vmatpush1.bf16.msra.mxu0 %v1373
    %1439 = vmatprep.subr.bf16.mxu0 %v1376
    %1440 = vmatpush1.bf16.msra.mxu0 %v1375
    %1441 = vmatprep.subr.bf16.mxu0 %v1378
    %1442 = vmatpush1.bf16.msra.mxu0 %v1377
    %1443 = vmatprep.subr.bf16.mxu0 %v1380
    %1444 = vmatpush1.bf16.msra.mxu0 %v1379
    %1445 = vmatprep.subr.bf16.mxu0 %v1382
    %1446 = vmatpush1.bf16.msra.mxu0 %v1381
    %1447 = vmatprep.subr.bf16.mxu0 %v1384
    %1448 = vmatpush1.bf16.msra.mxu0 %v1383
    %1449 = vmatprep.subr.bf16.mxu0 %v1386
    %1450 = vmatpush1.bf16.msra.mxu0 %v1385
    %1451 = vmatprep.subr.bf16.mxu0 %v1388
    %1452 = vmatpush1.bf16.msra.mxu0 %v1387
    %1453 = vmatprep.subr.bf16.mxu0 %v1390
    %1454 = vmatpush1.bf16.msra.mxu0 %v1389
    %1455 = vmatprep.subr.bf16.mxu0 %v1392
    %1456 = vmatpush1.bf16.msra.mxu0 %v1391
    %1457 = vmatprep.subr.bf16.mxu0 %v1394
    %1458 = vmatpush1.bf16.msra.mxu0 %v1393
    %1459 = vmatprep.subr.bf16.mxu0 %v1396
    %1460 = vmatpush1.bf16.msra.mxu0 %v1395
    %1461 = vmatprep.subr.bf16.mxu0 %v1398
    %1462 = vmatpush1.bf16.msra.mxu0 %v1397
    %1463 = vmatprep.subr.bf16.mxu0 %v1400
    %1464 = vmatpush1.bf16.msra.mxu0 %v1399
    %1465 = vmatprep.subr.bf16.mxu0 %v1402
    %1466 = vmatpush1.bf16.msra.mxu0 %v1401
    %1467 = vmatprep.mubr.bf16.mxu0 %v1206
    %1468 = vmatmul.mubr.bf16.gmra.mrb[0].mxu0 %v1205
    %v1469 = vpop.f32.mrb[0].mxu0
    %v1470 = vadd.f32 %v1268, %v1469
    %v1471 = vpop.f32.mrb[0].mxu0
    %v1472 = vadd.f32 %v1272, %v1471
    %v1473 = vpop.f32.mrb[0].mxu0
    %v1474 = vadd.f32 %v1268, %v1473
    %v1475 = vpop.f32.mrb[0].mxu0
    %v1476 = vadd.f32 %v1272, %v1475
    %1477 = vmatprep.mubr.bf16.mxu0 %v1208
    %1478 = vmatmul.mubr.bf16.gmra.mrb[0].mxu0 %v1207
    %v1479 = vpop.f32.mrb[0].mxu0
    %v1480 = vadd.f32 %v1268, %v1479
    %v1481 = vpop.f32.mrb[0].mxu0
    %v1482 = vadd.f32 %v1272, %v1481
    %v1483 = vpop.f32.mrb[0].mxu0
    %v1484 = vadd.f32 %v1268, %v1483
    %v1485 = vpop.f32.mrb[0].mxu0
    %v1486 = vadd.f32 %v1272, %v1485
    %1487 = vmatprep.mubr.bf16.mxu0 %v1210
    %1488 = vmatmul.mubr.bf16.gmra.mrb[0].mxu0 %v1209
    %v1489 = vpop.f32.mrb[0].mxu0
    %v1490 = vadd.f32 %v1268, %v1489
    %v1491 = vpop.f32.mrb[0].mxu0
    %v1492 = vadd.f32 %v1272, %v1491
    %v1493 = vpop.f32.mrb[0].mxu0
    %v1494 = vadd.f32 %v1268, %v1493
    %v1495 = vpop.f32.mrb[0].mxu0
    %v1496 = vadd.f32 %v1272, %v1495
    %1497 = vmatprep.mubr.bf16.mxu0 %v1212
    %1498 = vmatmul.mubr.bf16.gmra.mrb[0].mxu0 %v1211
    %v1499 = vpop.f32.mrb[0].mxu0
    %v1500 = vadd.f32 %v1268, %v1499
    %v1501 = vpop.f32.mrb[0].mxu0
    %v1502 = vadd.f32 %v1272, %v1501
    %v1503 = vpop.f32.mrb[0].mxu0
    %v1504 = vadd.f32 %v1268, %v1503
    %v1505 = vpop.f32.mrb[0].mxu0
    %v1506 = vadd.f32 %v1272, %v1505
    %1507 = vmatprep.mubr.bf16.mxu0 %v1214
    %1508 = vmatmul.mubr.bf16.gmra.mrb[0].mxu0 %v1213
    %v1509 = vpop.f32.mrb[0].mxu0
    %v1510 = vadd.f32 %v1268, %v1509
    %v1511 = vpop.f32.mrb[0].mxu0
    %v1512 = vadd.f32 %v1272, %v1511
    %v1513 = vpop.f32.mrb[0].mxu0
    %v1514 = vadd.f32 %v1268, %v1513
    %v1515 = vpop.f32.mrb[0].mxu0
    %v1516 = vadd.f32 %v1272, %v1515
    %1517 = vmatprep.mubr.bf16.mxu0 %v1216
    %1518 = vmatmul.mubr.bf16.gmra.mrb[0].mxu0 %v1215
    %v1519 = vpop.f32.mrb[0].mxu0
    %v1520 = vadd.f32 %v1268, %v1519
    %v1521 = vpop.f32.mrb[0].mxu0
    %v1522 = vadd.f32 %v1272, %v1521
    %v1523 = vpop.f32.mrb[0].mxu0
    %v1524 = vadd.f32 %v1268, %v1523
    %v1525 = vpop.f32.mrb[0].mxu0
    %v1526 = vadd.f32 %v1272, %v1525
    %1527 = vmatprep.mubr.bf16.mxu0 %v1218
    %1528 = vmatmul.mubr.bf16.gmra.mrb[0].mxu0 %v1217
    %v1529 = vpop.f32.mrb[0].mxu0
    %v1530 = vadd.f32 %v1268, %v1529
    %v1531 = vpop.f32.mrb[0].mxu0
    %v1532 = vadd.f32 %v1272, %v1531
    %v1533 = vpop.f32.mrb[0].mxu0
    %v1534 = vadd.f32 %v1268, %v1533
    %v1535 = vpop.f32.mrb[0].mxu0
    %v1536 = vadd.f32 %v1272, %v1535
    %1537 = vmatprep.mubr.bf16.mxu0 %v1220
    %1538 = vmatmul.mubr.bf16.gmra.mrb[0].mxu0 %v1219
    %v1539 = vpop.f32.mrb[0].mxu0
    %v1540 = vadd.f32 %v1268, %v1539
    %v1541 = vpop.f32.mrb[0].mxu0
    %v1542 = vadd.f32 %v1272, %v1541
    %v1543 = vpop.f32.mrb[0].mxu0
    %v1544 = vadd.f32 %v1268, %v1543
    %v1545 = vpop.f32.mrb[0].mxu0
    %v1546 = vadd.f32 %v1272, %v1545
    %1547 = vmatprep.mubr.bf16.mxu0 %v1222
    %1548 = vmatmul.mubr.bf16.gmra.mrb[0].mxu0 %v1221
    %v1549 = vpop.f32.mrb[0].mxu0
    %v1550 = vadd.f32 %v1268, %v1549
    %v1551 = vpop.f32.mrb[0].mxu0
    %v1552 = vadd.f32 %v1272, %v1551
    %v1553 = vpop.f32.mrb[0].mxu0
    %v1554 = vadd.f32 %v1268, %v1553
    %v1555 = vpop.f32.mrb[0].mxu0
    %v1556 = vadd.f32 %v1272, %v1555
    %1557 = vmatprep.mubr.bf16.mxu0 %v1224
    %1558 = vmatmul.mubr.bf16.gmra.mrb[0].mxu0 %v1223
    %v1559 = vpop.f32.mrb[0].mxu0
    %v1560 = vadd.f32 %v1268, %v1559
    %v1561 = vpop.f32.mrb[0].mxu0
    %v1562 = vadd.f32 %v1272, %v1561
    %v1563 = vpop.f32.mrb[0].mxu0
    %v1564 = vadd.f32 %v1268, %v1563
    %v1565 = vpop.f32.mrb[0].mxu0
    %v1566 = vadd.f32 %v1272, %v1565
    %1567 = vmatprep.mubr.bf16.mxu0 %v1226
    %1568 = vmatmul.mubr.bf16.gmra.mrb[0].mxu0 %v1225
    %v1569 = vpop.f32.mrb[0].mxu0
    %v1570 = vadd.f32 %v1268, %v1569
    %v1571 = vpop.f32.mrb[0].mxu0
    %v1572 = vadd.f32 %v1272, %v1571
    %v1573 = vpop.f32.mrb[0].mxu0
    %v1574 = vadd.f32 %v1268, %v1573
    %v1575 = vpop.f32.mrb[0].mxu0
    %v1576 = vadd.f32 %v1272, %v1575
    %1577 = vmatprep.mubr.bf16.mxu0 %v1228
    %1578 = vmatmul.mubr.bf16.gmra.mrb[0].mxu0 %v1227
    %v1579 = vpop.f32.mrb[0].mxu0
    %v1580 = vadd.f32 %v1268, %v1579
    %v1581 = vpop.f32.mrb[0].mxu0
    %v1582 = vadd.f32 %v1272, %v1581
    %v1583 = vpop.f32.mrb[0].mxu0
    %v1584 = vadd.f32 %v1268, %v1583
    %v1585 = vpop.f32.mrb[0].mxu0
    %v1586 = vadd.f32 %v1272, %v1585
    %1587 = vmatprep.mubr.bf16.mxu0 %v1230
    %1588 = vmatmul.mubr.bf16.gmra.mrb[0].mxu0 %v1229
    %v1589 = vpop.f32.mrb[0].mxu0
    %v1590 = vadd.f32 %v1268, %v1589
    %v1591 = vpop.f32.mrb[0].mxu0
    %v1592 = vadd.f32 %v1272, %v1591
    %v1593 = vpop.f32.mrb[0].mxu0
    %v1594 = vpop.f32.mrb[0].mxu0
    %1595 = vdwg.mxu0
    %v1596 = vmul.f32 %v1470, 0.01
    %v1597 = vmul.f32 %v1472, 0.01
    %v1598 = vmul.f32 %v1474, 0.01
    %v1599 = vmul.f32 %v1476, 0.01
    %v1600 = vmul.f32 %v1480, 0.01
    %v1601 = vmul.f32 %v1482, 0.01
    %v1602 = vmul.f32 %v1484, 0.01
    %v1603 = vmul.f32 %v1486, 0.01
    %v1604 = vmul.f32 %v1490, 0.01
    %v1605 = vmul.f32 %v1492, 0.01
    %v1606 = vmul.f32 %v1494, 0.01
    %v1607 = vmul.f32 %v1496, 0.01
    %v1608 = vmul.f32 %v1500, 0.01
    %v1609 = vmul.f32 %v1502, 0.01
    %v1610 = vmul.f32 %v1504, 0.01
    %v1611 = vmul.f32 %v1506, 0.01
    %v1612 = vmul.f32 %v1510, 0.01
    %v1613 = vmul.f32 %v1512, 0.01
    %v1614 = vmul.f32 %v1514, 0.01
    %v1615 = vmul.f32 %v1516, 0.01
    %v1616 = vmul.f32 %v1520, 0.01
    %v1617 = vmul.f32 %v1522, 0.01
    %v1618 = vmul.f32 %v1524, 0.01
    %v1619 = vmul.f32 %v1526, 0.01
    %v1620 = vmul.f32 %v1530, 0.01
    %v1621 = vmul.f32 %v1532, 0.01
    %v1622 = vmul.f32 %v1534, 0.01
    %v1623 = vmul.f32 %v1536, 0.01
    %v1624 = vmul.f32 %v1540, 0.01
    %v1625 = vmul.f32 %v1542, 0.01
    %v1626 = vmul.f32 %v1544, 0.01
    %v1627 = vmul.f32 %v1546, 0.01
    %v1628 = vmul.f32 %v1550, 0.01
    %v1629 = vmul.f32 %v1552, 0.01
    %v1630 = vmul.f32 %v1554, 0.01
    %v1631 = vmul.f32 %v1556, 0.01
    %v1632 = vmul.f32 %v1560, 0.01
    %v1633 = vmul.f32 %v1562, 0.01
    %v1634 = vmul.f32 %v1564, 0.01
    %v1635 = vmul.f32 %v1566, 0.01
    %v1636 = vmul.f32 %v1570, 0.01
    %v1637 = vmul.f32 %v1572, 0.01
    %v1638 = vmul.f32 %v1574, 0.01
    %v1639 = vmul.f32 %v1576, 0.01
    %v1640 = vmul.f32 %v1580, 0.01
    %v1641 = vmul.f32 %v1582, 0.01
    %v1642 = vmul.f32 %v1584, 0.01
    %v1643 = vmul.f32 %v1586, 0.01
    %v1644 = vmul.f32 %v1590, 0.01
    %v1645 = vmul.f32 %v1592, 0.01
    %v1646 = vmax.f32 %v1470, %v1596
    %v1647 = vmax.f32 %v1472, %v1597
    %v1648 = vmax.f32 %v1474, %v1598
    %v1649 = vmax.f32 %v1476, %v1599
    %v1650 = vmax.f32 %v1480, %v1600
    %v1651 = vmax.f32 %v1482, %v1601
    %v1652 = vmax.f32 %v1484, %v1602
    %v1653 = vmax.f32 %v1486, %v1603
    %v1654 = vmax.f32 %v1490, %v1604
    %v1655 = vmax.f32 %v1492, %v1605
    %v1656 = vmax.f32 %v1494, %v1606
    %v1657 = vmax.f32 %v1496, %v1607
    %v1658 = vmax.f32 %v1500, %v1608
    %v1659 = vmax.f32 %v1502, %v1609
    %v1660 = vmax.f32 %v1504, %v1610
    %v1661 = vmax.f32 %v1506, %v1611
    %v1662 = vmax.f32 %v1510, %v1612
    %v1663 = vmax.f32 %v1512, %v1613
    %v1664 = vmax.f32 %v1514, %v1614
    %v1665 = vmax.f32 %v1516, %v1615
    %v1666 = vmax.f32 %v1520, %v1616
    %v1667 = vmax.f32 %v1522, %v1617
    %v1668 = vmax.f32 %v1524, %v1618
    %v1669 = vmax.f32 %v1526, %v1619
    %v1670 = vmax.f32 %v1530, %v1620
    %v1671 = vmax.f32 %v1532, %v1621
    %v1672 = vmax.f32 %v1534, %v1622
    %v1673 = vmax.f32 %v1536, %v1623
    %v1674 = vmax.f32 %v1540, %v1624
    %v1675 = vmax.f32 %v1542, %v1625
    %v1676 = vmax.f32 %v1544, %v1626
    %v1677 = vmax.f32 %v1546, %v1627
    %v1678 = vmax.f32 %v1550, %v1628
    %v1679 = vmax.f32 %v1552, %v1629
    %v1680 = vmax.f32 %v1554, %v1630
    %v1681 = vmax.f32 %v1556, %v1631
    %v1682 = vmax.f32 %v1560, %v1632
    %v1683 = vmax.f32 %v1562, %v1633
    %v1684 = vmax.f32 %v1564, %v1634
    %v1685 = vmax.f32 %v1566, %v1635
    %v1686 = vmax.f32 %v1570, %v1636
    %v1687 = vmax.f32 %v1572, %v1637
    %v1688 = vmax.f32 %v1574, %v1638
    %v1689 = vmax.f32 %v1576, %v1639
    %v1690 = vmax.f32 %v1580, %v1640
    %v1691 = vmax.f32 %v1582, %v1641
    %v1692 = vmax.f32 %v1584, %v1642
    %v1693 = vmax.f32 %v1586, %v1643
    %v1694 = vmax.f32 %v1590, %v1644
    %v1695 = vmax.f32 %v1592, %v1645
    %v1696 = vld [vmem:[%s1] sm:$0xf]
    %v1697 = vld [vmem:[%s1 + $0x4] sm:$0xf]
    %v1698 = vld [vmem:[%s1 + $0x8] sm:$0xf]
    %v1699 = vld [vmem:[%s1 + $0xc] sm:$0xf]
    %v1700 = vld [vmem:[%s1 + $0x10] sm:$0xf]
    %v1701 = vld [vmem:[%s1 + $0x14] sm:$0xf]
    %v1702 = vld [vmem:[%s1 + $0x18] sm:$0xf]
    %v1703 = vld [vmem:[%s1 + $0x1c] sm:$0xf]
    %v1704 = vld [vmem:[%s1 + $0x20] sm:$0xf]
    %v1705 = vld [vmem:[%s1 + $0x24] sm:$0xf]
    %v1706 = vld [vmem:[%s1 + $0x28] sm:$0xf]
    %v1707 = vld [vmem:[%s1 + $0x2c] sm:$0xf]
    %v1708 = vld [vmem:[%s1 + $0x30] sm:$0xf]
    %v1709 = vld [vmem:[%s1 + $0x34] sm:$0xf]
    %v1710 = vld [vmem:[%s1 + $0x38] sm:$0xf]
    %v1711 = vld [vmem:[%s1 + $0x3c] sm:$0xf]
    %v1712 = vld [vmem:[%s1 + $0x40] sm:$0xf]
    %v1713 = vld [vmem:[%s1 + $0x44] sm:$0xf]
    %v1714 = vld [vmem:[%s1 + $0x48] sm:$0xf]
    %v1715 = vld [vmem:[%s1 + $0x4c] sm:$0xf]
    %v1716 = vld [vmem:[%s1 + $0x50] sm:$0xf]
    %v1717 = vld [vmem:[%s1 + $0x54] sm:$0xf]
    %v1718 = vld [vmem:[%s1 + $0x58] sm:$0xf]
    %v1719 = vld [vmem:[%s1 + $0x5c] sm:$0xf]
    %v1720 = vld [vmem:[%s1 + $0x60] sm:$0xf]
    %v1721 = vunpack.c.l.bf16 %v1696
    %v1722 = vunpack.c.l.bf16 %v1697
    %v1723 = vunpack.c.l.bf16 %v1698
    %v1724 = vunpack.c.l.bf16 %v1699
    %v1725 = vunpack.c.l.bf16 %v1700
    %v1726 = vunpack.c.l.bf16 %v1701
    %v1727 = vunpack.c.l.bf16 %v1702
    %v1728 = vunpack.c.l.bf16 %v1703
    %v1729 = vunpack.c.l.bf16 %v1704
    %v1730 = vunpack.c.l.bf16 %v1705
    %v1731 = vunpack.c.l.bf16 %v1706
    %v1732 = vunpack.c.l.bf16 %v1707
    %v1733 = vunpack.c.l.bf16 %v1708
    %v1734 = vunpack.c.l.bf16 %v1709
    %v1735 = vunpack.c.l.bf16 %v1710
    %v1736 = vunpack.c.l.bf16 %v1711
    %v1737 = vunpack.c.l.bf16 %v1712
    %v1738 = vunpack.c.l.bf16 %v1713
    %v1739 = vunpack.c.l.bf16 %v1714
    %v1740 = vunpack.c.l.bf16 %v1715
    %v1741 = vunpack.c.l.bf16 %v1716
    %v1742 = vunpack.c.l.bf16 %v1717
    %v1743 = vunpack.c.l.bf16 %v1718
    %v1744 = vunpack.c.l.bf16 %v1719
    %v1745 = vunpack.c.l.bf16 %v1720
    %v1746 = vld [vmem:[%s8] sm:$0xf]
    %v1747 = vunpack.c.l.bf16 %v1746
    %1749 = vset.pattern.permute.xlu0 0
    %1750 = vperm.xlu0 %1749, %v1721
    %v1751 = vpop.permute.xlu0 %1750
    %1754 = vset.pattern.permute.xlu0 0
    %1755 = vperm.xlu0 %1754, %v1722
    %v1756 = vpop.permute.xlu0 %1755
    %1759 = vset.pattern.permute.xlu0 0
    %1760 = vperm.xlu0 %1759, %v1723
    %v1761 = vpop.permute.xlu0 %1760
    %1764 = vset.pattern.permute.xlu0 0
    %1765 = vperm.xlu0 %1764, %v1724
    %v1766 = vpop.permute.xlu0 %1765
    %1769 = vset.pattern.permute.xlu0 0
    %1770 = vperm.xlu0 %1769, %v1725
    %v1771 = vpop.permute.xlu0 %1770
    %1774 = vset.pattern.permute.xlu0 0
    %1775 = vperm.xlu0 %1774, %v1726
    %v1776 = vpop.permute.xlu0 %1775
    %1779 = vset.pattern.permute.xlu0 0
    %1780 = vperm.xlu0 %1779, %v1727
    %v1781 = vpop.permute.xlu0 %1780
    %1784 = vset.pattern.permute.xlu0 0
    %1785 = vperm.xlu0 %1784, %v1728
    %v1786 = vpop.permute.xlu0 %1785
    %1789 = vset.pattern.permute.xlu0 0
    %1790 = vperm.xlu0 %1789, %v1729
    %v1791 = vpop.permute.xlu0 %1790
    %1794 = vset.pattern.permute.xlu0 0
    %1795 = vperm.xlu0 %1794, %v1730
    %v1796 = vpop.permute.xlu0 %1795
    %1799 = vset.pattern.permute.xlu0 0
    %1800 = vperm.xlu0 %1799, %v1731
    %v1801 = vpop.permute.xlu0 %1800
    %1804 = vset.pattern.permute.xlu0 0
    %1805 = vperm.xlu0 %1804, %v1732
    %v1806 = vpop.permute.xlu0 %1805
    %1809 = vset.pattern.permute.xlu0 0
    %1810 = vperm.xlu0 %1809, %v1733
    %v1811 = vpop.permute.xlu0 %1810
    %1814 = vset.pattern.permute.xlu0 0
    %1815 = vperm.xlu0 %1814, %v1734
    %v1816 = vpop.permute.xlu0 %1815
    %1819 = vset.pattern.permute.xlu0 0
    %1820 = vperm.xlu0 %1819, %v1735
    %v1821 = vpop.permute.xlu0 %1820
    %1824 = vset.pattern.permute.xlu0 0
    %1825 = vperm.xlu0 %1824, %v1736
    %v1826 = vpop.permute.xlu0 %1825
    %1829 = vset.pattern.permute.xlu0 0
    %1830 = vperm.xlu0 %1829, %v1737
    %v1831 = vpop.permute.xlu0 %1830
    %1834 = vset.pattern.permute.xlu0 0
    %1835 = vperm.xlu0 %1834, %v1738
    %v1836 = vpop.permute.xlu0 %1835
    %1839 = vset.pattern.permute.xlu0 0
    %1840 = vperm.xlu0 %1839, %v1739
    %v1841 = vpop.permute.xlu0 %1840
    %1844 = vset.pattern.permute.xlu0 0
    %1845 = vperm.xlu0 %1844, %v1740
    %v1846 = vpop.permute.xlu0 %1845
    %1849 = vset.pattern.permute.xlu0 0
    %1850 = vperm.xlu0 %1849, %v1741
    %v1851 = vpop.permute.xlu0 %1850
    %1854 = vset.pattern.permute.xlu0 0
    %1855 = vperm.xlu0 %1854, %v1742
    %v1856 = vpop.permute.xlu0 %1855
    %1859 = vset.pattern.permute.xlu0 0
    %1860 = vperm.xlu0 %1859, %v1743
    %v1861 = vpop.permute.xlu0 %1860
    %1864 = vset.pattern.permute.xlu0 0
    %1865 = vperm.xlu0 %1864, %v1744
    %v1866 = vpop.permute.xlu0 %1865
    %1869 = vset.pattern.permute.xlu0 0
    %1870 = vperm.xlu0 %1869, %v1745
    %v1871 = vpop.permute.xlu0 %1870
    %v1874 = vlaneseq
    %v1875 = vshrl.u32 %v1874, 7
    %v1876 = vsub.s32 0, %v1875
    %v1877 = vrot.slane %v1747, %v1876
    %v1878 = vlaneseq
    %v1879 = vshrl.u32 %v1878, 7
    %v1880 = vsub.s32 4, %v1879
    %v1881 = vrot.slane %v1747, %v1880
    %v1884 = vlaneseq
    %v1885 = vshrl.u32 %v1884, 7
    %v1886 = vsub.s32 0, %v1885
    %v1887 = vrot.slane %v1877, %v1886
    %v1888 = vlaneseq
    %v1889 = vshrl.u32 %v1888, 7
    %v1890 = vsub.s32 0, %v1889
    %v1891 = vrot.slane %v1881, %v1890
    %v1892 = vmul.f32 %v1751, %v1887
    %v1893 = vmul.f32 %v1751, %v1891
    %v1894 = vmul.f32 %v1756, %v1887
    %v1895 = vmul.f32 %v1756, %v1891
    %v1896 = vmul.f32 %v1761, %v1887
    %v1897 = vmul.f32 %v1761, %v1891
    %v1898 = vmul.f32 %v1766, %v1887
    %v1899 = vmul.f32 %v1766, %v1891
    %v1900 = vmul.f32 %v1771, %v1887
    %v1901 = vmul.f32 %v1771, %v1891
    %v1902 = vmul.f32 %v1776, %v1887
    %v1903 = vmul.f32 %v1776, %v1891
    %v1904 = vmul.f32 %v1781, %v1887
    %v1905 = vmul.f32 %v1781, %v1891
    %v1906 = vmul.f32 %v1786, %v1887
    %v1907 = vmul.f32 %v1786, %v1891
    %v1908 = vmul.f32 %v1791, %v1887
    %v1909 = vmul.f32 %v1791, %v1891
    %v1910 = vmul.f32 %v1796, %v1887
    %v1911 = vmul.f32 %v1796, %v1891
    %v1912 = vmul.f32 %v1801, %v1887
    %v1913 = vmul.f32 %v1801, %v1891
    %v1914 = vmul.f32 %v1806, %v1887
    %v1915 = vmul.f32 %v1806, %v1891
    %v1916 = vmul.f32 %v1811, %v1887
    %v1917 = vmul.f32 %v1811, %v1891
    %v1918 = vmul.f32 %v1816, %v1887
    %v1919 = vmul.f32 %v1816, %v1891
    %v1920 = vmul.f32 %v1821, %v1887
    %v1921 = vmul.f32 %v1821, %v1891
    %v1922 = vmul.f32 %v1826, %v1887
    %v1923 = vmul.f32 %v1826, %v1891
    %v1924 = vmul.f32 %v1831, %v1887
    %v1925 = vmul.f32 %v1831, %v1891
    %v1926 = vmul.f32 %v1836, %v1887
    %v1927 = vmul.f32 %v1836, %v1891
    %v1928 = vmul.f32 %v1841, %v1887
    %v1929 = vmul.f32 %v1841, %v1891
    %v1930 = vmul.f32 %v1846, %v1887
    %v1931 = vmul.f32 %v1846, %v1891
    %v1932 = vmul.f32 %v1851, %v1887
    %v1933 = vmul.f32 %v1851, %v1891
    %v1934 = vmul.f32 %v1856, %v1887
    %v1935 = vmul.f32 %v1856, %v1891
    %v1936 = vmul.f32 %v1861, %v1887
    %v1937 = vmul.f32 %v1861, %v1891
    %v1938 = vmul.f32 %v1866, %v1887
    %v1939 = vmul.f32 %v1866, %v1891
    %v1940 = vmul.f32 %v1871, %v1887
    %v1941 = vmul.f32 %v1871, %v1891
    %1942 = vset.pattern.permute.xlu0 1
    %1943 = vperm.xlu0 %1942, %v1721
    %v1944 = vpop.permute.xlu0 %1943
    %1946 = vset.pattern.permute.xlu0 1
    %1947 = vperm.xlu0 %1946, %v1722
    %v1948 = vpop.permute.xlu0 %1947
    %1950 = vset.pattern.permute.xlu0 1
    %1951 = vperm.xlu0 %1950, %v1723
    %v1952 = vpop.permute.xlu0 %1951
    %1954 = vset.pattern.permute.xlu0 1
    %1955 = vperm.xlu0 %1954, %v1724
    %v1956 = vpop.permute.xlu0 %1955
    %1958 = vset.pattern.permute.xlu0 1
    %1959 = vperm.xlu0 %1958, %v1725
    %v1960 = vpop.permute.xlu0 %1959
    %1962 = vset.pattern.permute.xlu0 1
    %1963 = vperm.xlu0 %1962, %v1726
    %v1964 = vpop.permute.xlu0 %1963
    %1966 = vset.pattern.permute.xlu0 1
    %1967 = vperm.xlu0 %1966, %v1727
    %v1968 = vpop.permute.xlu0 %1967
    %1970 = vset.pattern.permute.xlu0 1
    %1971 = vperm.xlu0 %1970, %v1728
    %v1972 = vpop.permute.xlu0 %1971
    %1974 = vset.pattern.permute.xlu0 1
    %1975 = vperm.xlu0 %1974, %v1729
    %v1976 = vpop.permute.xlu0 %1975
    %1978 = vset.pattern.permute.xlu0 1
    %1979 = vperm.xlu0 %1978, %v1730
    %v1980 = vpop.permute.xlu0 %1979
    %1982 = vset.pattern.permute.xlu0 1
    %1983 = vperm.xlu0 %1982, %v1731
    %v1984 = vpop.permute.xlu0 %1983
    %1986 = vset.pattern.permute.xlu0 1
    %1987 = vperm.xlu0 %1986, %v1732
    %v1988 = vpop.permute.xlu0 %1987
    %1990 = vset.pattern.permute.xlu0 1
    %1991 = vperm.xlu0 %1990, %v1733
    %v1992 = vpop.permute.xlu0 %1991
    %1994 = vset.pattern.permute.xlu0 1
    %1995 = vperm.xlu0 %1994, %v1734
    %v1996 = vpop.permute.xlu0 %1995
    %1998 = vset.pattern.permute.xlu0 1
    %1999 = vperm.xlu0 %1998, %v1735
    %v2000 = vpop.permute.xlu0 %1999
    %2002 = vset.pattern.permute.xlu0 1
    %2003 = vperm.xlu0 %2002, %v1736
    %v2004 = vpop.permute.xlu0 %2003
    %2006 = vset.pattern.permute.xlu0 1
    %2007 = vperm.xlu0 %2006, %v1737
    %v2008 = vpop.permute.xlu0 %2007
    %2010 = vset.pattern.permute.xlu0 1
    %2011 = vperm.xlu0 %2010, %v1738
    %v2012 = vpop.permute.xlu0 %2011
    %2014 = vset.pattern.permute.xlu0 1
    %2015 = vperm.xlu0 %2014, %v1739
    %v2016 = vpop.permute.xlu0 %2015
    %2018 = vset.pattern.permute.xlu0 1
    %2019 = vperm.xlu0 %2018, %v1740
    %v2020 = vpop.permute.xlu0 %2019
    %2022 = vset.pattern.permute.xlu0 1
    %2023 = vperm.xlu0 %2022, %v1741
    %v2024 = vpop.permute.xlu0 %2023
    %2026 = vset.pattern.permute.xlu0 1
    %2027 = vperm.xlu0 %2026, %v1742
    %v2028 = vpop.permute.xlu0 %2027
    %2030 = vset.pattern.permute.xlu0 1
    %2031 = vperm.xlu0 %2030, %v1743
    %v2032 = vpop.permute.xlu0 %2031
    %2034 = vset.pattern.permute.xlu0 1
    %2035 = vperm.xlu0 %2034, %v1744
    %v2036 = vpop.permute.xlu0 %2035
    %2038 = vset.pattern.permute.xlu0 1
    %2039 = vperm.xlu0 %2038, %v1745
    %v2040 = vpop.permute.xlu0 %2039
    %v2042 = vlaneseq
    %v2043 = vshrl.u32 %v2042, 7
    %v2044 = vsub.s32 1, %v2043
    %v2045 = vrot.slane %v1747, %v2044
    %v2046 = vlaneseq
    %v2047 = vshrl.u32 %v2046, 7
    %v2048 = vsub.s32 5, %v2047
    %v2049 = vrot.slane %v1747, %v2048
    %v2052 = vlaneseq
    %v2053 = vshrl.u32 %v2052, 7
    %v2054 = vsub.s32 1, %v2053
    %v2055 = vrot.slane %v2045, %v2054
    %v2056 = vlaneseq
    %v2057 = vshrl.u32 %v2056, 7
    %v2058 = vsub.s32 1, %v2057
    %v2059 = vrot.slane %v2049, %v2058
    %v2060 = vmul.f32 %v1944, %v2055
    %v2061 = vmul.f32 %v1944, %v2059
    %v2062 = vmul.f32 %v1948, %v2055
    %v2063 = vmul.f32 %v1948, %v2059
    %v2064 = vmul.f32 %v1952, %v2055
    %v2065 = vmul.f32 %v1952, %v2059
    %v2066 = vmul.f32 %v1956, %v2055
    %v2067 = vmul.f32 %v1956, %v2059
    %v2068 = vmul.f32 %v1960, %v2055
    %v2069 = vmul.f32 %v1960, %v2059
    %v2070 = vmul.f32 %v1964, %v2055
    %v2071 = vmul.f32 %v1964, %v2059
    %v2072 = vmul.f32 %v1968, %v2055
    %v2073 = vmul.f32 %v1968, %v2059
    %v2074 = vmul.f32 %v1972, %v2055
    %v2075 = vmul.f32 %v1972, %v2059
    %v2076 = vmul.f32 %v1976, %v2055
    %v2077 = vmul.f32 %v1976, %v2059
    %v2078 = vmul.f32 %v1980, %v2055
    %v2079 = vmul.f32 %v1980, %v2059
    %v2080 = vmul.f32 %v1984, %v2055
    %v2081 = vmul.f32 %v1984, %v2059
    %v2082 = vmul.f32 %v1988, %v2055
    %v2083 = vmul.f32 %v1988, %v2059
    %v2084 = vmul.f32 %v1992, %v2055
    %v2085 = vmul.f32 %v1992, %v2059
    %v2086 = vmul.f32 %v1996, %v2055
    %v2087 = vmul.f32 %v1996, %v2059
    %v2088 = vmul.f32 %v2000, %v2055
    %v2089 = vmul.f32 %v2000, %v2059
    %v2090 = vmul.f32 %v2004, %v2055
    %v2091 = vmul.f32 %v2004, %v2059
    %v2092 = vmul.f32 %v2008, %v2055
    %v2093 = vmul.f32 %v2008, %v2059
    %v2094 = vmul.f32 %v2012, %v2055
    %v2095 = vmul.f32 %v2012, %v2059
    %v2096 = vmul.f32 %v2016, %v2055
    %v2097 = vmul.f32 %v2016, %v2059
    %v2098 = vmul.f32 %v2020, %v2055
    %v2099 = vmul.f32 %v2020, %v2059
    %v2100 = vmul.f32 %v2024, %v2055
    %v2101 = vmul.f32 %v2024, %v2059
    %v2102 = vmul.f32 %v2028, %v2055
    %v2103 = vmul.f32 %v2028, %v2059
    %v2104 = vmul.f32 %v2032, %v2055
    %v2105 = vmul.f32 %v2032, %v2059
    %v2106 = vmul.f32 %v2036, %v2055
    %v2107 = vmul.f32 %v2036, %v2059
    %v2108 = vmul.f32 %v2040, %v2055
    %v2109 = vmul.f32 %v2040, %v2059
    %v2110 = vadd.f32 %v1892, %v2060
    %v2111 = vadd.f32 %v1893, %v2061
    %v2112 = vadd.f32 %v1894, %v2062
    %v2113 = vadd.f32 %v1895, %v2063
    %v2114 = vadd.f32 %v1896, %v2064
    %v2115 = vadd.f32 %v1897, %v2065
    %v2116 = vadd.f32 %v1898, %v2066
    %v2117 = vadd.f32 %v1899, %v2067
    %v2118 = vadd.f32 %v1900, %v2068
    %v2119 = vadd.f32 %v1901, %v2069
    %v2120 = vadd.f32 %v1902, %v2070
    %v2121 = vadd.f32 %v1903, %v2071
    %v2122 = vadd.f32 %v1904, %v2072
    %v2123 = vadd.f32 %v1905, %v2073
    %v2124 = vadd.f32 %v1906, %v2074
    %v2125 = vadd.f32 %v1907, %v2075
    %v2126 = vadd.f32 %v1908, %v2076
    %v2127 = vadd.f32 %v1909, %v2077
    %v2128 = vadd.f32 %v1910, %v2078
    %v2129 = vadd.f32 %v1911, %v2079
    %v2130 = vadd.f32 %v1912, %v2080
    %v2131 = vadd.f32 %v1913, %v2081
    %v2132 = vadd.f32 %v1914, %v2082
    %v2133 = vadd.f32 %v1915, %v2083
    %v2134 = vadd.f32 %v1916, %v2084
    %v2135 = vadd.f32 %v1917, %v2085
    %v2136 = vadd.f32 %v1918, %v2086
    %v2137 = vadd.f32 %v1919, %v2087
    %v2138 = vadd.f32 %v1920, %v2088
    %v2139 = vadd.f32 %v1921, %v2089
    %v2140 = vadd.f32 %v1922, %v2090
    %v2141 = vadd.f32 %v1923, %v2091
    %v2142 = vadd.f32 %v1924, %v2092
    %v2143 = vadd.f32 %v1925, %v2093
    %v2144 = vadd.f32 %v1926, %v2094
    %v2145 = vadd.f32 %v1927, %v2095
    %v2146 = vadd.f32 %v1928, %v2096
    %v2147 = vadd.f32 %v1929, %v2097
    %v2148 = vadd.f32 %v1930, %v2098
    %v2149 = vadd.f32 %v1931, %v2099
    %v2150 = vadd.f32 %v1932, %v2100
    %v2151 = vadd.f32 %v1933, %v2101
    %v2152 = vadd.f32 %v1934, %v2102
    %v2153 = vadd.f32 %v1935, %v2103
    %v2154 = vadd.f32 %v1936, %v2104
    %v2155 = vadd.f32 %v1937, %v2105
    %v2156 = vadd.f32 %v1938, %v2106
    %v2157 = vadd.f32 %v1939, %v2107
    %v2158 = vadd.f32 %v1940, %v2108
    %v2159 = vadd.f32 %v1941, %v2109
    %2160 = vset.pattern.permute.xlu0 2
    %2161 = vperm.xlu0 %2160, %v1721
    %v2162 = vpop.permute.xlu0 %2161
    %2164 = vset.pattern.permute.xlu0 2
    %2165 = vperm.xlu0 %2164, %v1722
    %v2166 = vpop.permute.xlu0 %2165
    %2168 = vset.pattern.permute.xlu0 2
    %2169 = vperm.xlu0 %2168, %v1723
    %v2170 = vpop.permute.xlu0 %2169
    %2172 = vset.pattern.permute.xlu0 2
    %2173 = vperm.xlu0 %2172, %v1724
    %v2174 = vpop.permute.xlu0 %2173
    %2176 = vset.pattern.permute.xlu0 2
    %2177 = vperm.xlu0 %2176, %v1725
    %v2178 = vpop.permute.xlu0 %2177
    %2180 = vset.pattern.permute.xlu0 2
    %2181 = vperm.xlu0 %2180, %v1726
    %v2182 = vpop.permute.xlu0 %2181
    %2184 = vset.pattern.permute.xlu0 2
    %2185 = vperm.xlu0 %2184, %v1727
    %v2186 = vpop.permute.xlu0 %2185
    %2188 = vset.pattern.permute.xlu0 2
    %2189 = vperm.xlu0 %2188, %v1728
    %v2190 = vpop.permute.xlu0 %2189
    %2192 = vset.pattern.permute.xlu0 2
    %2193 = vperm.xlu0 %2192, %v1729
    %v2194 = vpop.permute.xlu0 %2193
    %2196 = vset.pattern.permute.xlu0 2
    %2197 = vperm.xlu0 %2196, %v1730
    %v2198 = vpop.permute.xlu0 %2197
    %2200 = vset.pattern.permute.xlu0 2
    %2201 = vperm.xlu0 %2200, %v1731
    %v2202 = vpop.permute.xlu0 %2201
    %2204 = vset.pattern.permute.xlu0 2
    %2205 = vperm.xlu0 %2204, %v1732
    %v2206 = vpop.permute.xlu0 %2205
    %2208 = vset.pattern.permute.xlu0 2
    %2209 = vperm.xlu0 %2208, %v1733
    %v2210 = vpop.permute.xlu0 %2209
    %2212 = vset.pattern.permute.xlu0 2
    %2213 = vperm.xlu0 %2212, %v1734
    %v2214 = vpop.permute.xlu0 %2213
    %2216 = vset.pattern.permute.xlu0 2
    %2217 = vperm.xlu0 %2216, %v1735
    %v2218 = vpop.permute.xlu0 %2217
    %2220 = vset.pattern.permute.xlu0 2
    %2221 = vperm.xlu0 %2220, %v1736
    %v2222 = vpop.permute.xlu0 %2221
    %2224 = vset.pattern.permute.xlu0 2
    %2225 = vperm.xlu0 %2224, %v1737
    %v2226 = vpop.permute.xlu0 %2225
    %2228 = vset.pattern.permute.xlu0 2
    %2229 = vperm.xlu0 %2228, %v1738
    %v2230 = vpop.permute.xlu0 %2229
    %2232 = vset.pattern.permute.xlu0 2
    %2233 = vperm.xlu0 %2232, %v1739
    %v2234 = vpop.permute.xlu0 %2233
    %2236 = vset.pattern.permute.xlu0 2
    %2237 = vperm.xlu0 %2236, %v1740
    %v2238 = vpop.permute.xlu0 %2237
    %2240 = vset.pattern.permute.xlu0 2
    %2241 = vperm.xlu0 %2240, %v1741
    %v2242 = vpop.permute.xlu0 %2241
    %2244 = vset.pattern.permute.xlu0 2
    %2245 = vperm.xlu0 %2244, %v1742
    %v2246 = vpop.permute.xlu0 %2245
    %2248 = vset.pattern.permute.xlu0 2
    %2249 = vperm.xlu0 %2248, %v1743
    %v2250 = vpop.permute.xlu0 %2249
    %2252 = vset.pattern.permute.xlu0 2
    %2253 = vperm.xlu0 %2252, %v1744
    %v2254 = vpop.permute.xlu0 %2253
    %2256 = vset.pattern.permute.xlu0 2
    %2257 = vperm.xlu0 %2256, %v1745
    %v2258 = vpop.permute.xlu0 %2257
    %v2260 = vlaneseq
    %v2261 = vshrl.u32 %v2260, 7
    %v2262 = vsub.s32 2, %v2261
    %v2263 = vrot.slane %v1747, %v2262
    %v2264 = vlaneseq
    %v2265 = vshrl.u32 %v2264, 7
    %v2266 = vsub.s32 6, %v2265
    %v2267 = vrot.slane %v1747, %v2266
    %v2270 = vlaneseq
    %v2271 = vshrl.u32 %v2270, 7
    %v2272 = vsub.s32 2, %v2271
    %v2273 = vrot.slane %v2263, %v2272
    %v2274 = vlaneseq
    %v2275 = vshrl.u32 %v2274, 7
    %v2276 = vsub.s32 2, %v2275
    %v2277 = vrot.slane %v2267, %v2276
    %v2278 = vmul.f32 %v2162, %v2273
    %v2279 = vmul.f32 %v2162, %v2277
    %v2280 = vmul.f32 %v2166, %v2273
    %v2281 = vmul.f32 %v2166, %v2277
    %v2282 = vmul.f32 %v2170, %v2273
    %v2283 = vmul.f32 %v2170, %v2277
    %v2284 = vmul.f32 %v2174, %v2273
    %v2285 = vmul.f32 %v2174, %v2277
    %v2286 = vmul.f32 %v2178, %v2273
    %v2287 = vmul.f32 %v2178, %v2277
    %v2288 = vmul.f32 %v2182, %v2273
    %v2289 = vmul.f32 %v2182, %v2277
    %v2290 = vmul.f32 %v2186, %v2273
    %v2291 = vmul.f32 %v2186, %v2277
    %v2292 = vmul.f32 %v2190, %v2273
    %v2293 = vmul.f32 %v2190, %v2277
    %v2294 = vmul.f32 %v2194, %v2273
    %v2295 = vmul.f32 %v2194, %v2277
    %v2296 = vmul.f32 %v2198, %v2273
    %v2297 = vmul.f32 %v2198, %v2277
    %v2298 = vmul.f32 %v2202, %v2273
    %v2299 = vmul.f32 %v2202, %v2277
    %v2300 = vmul.f32 %v2206, %v2273
    %v2301 = vmul.f32 %v2206, %v2277
    %v2302 = vmul.f32 %v2210, %v2273
    %v2303 = vmul.f32 %v2210, %v2277
    %v2304 = vmul.f32 %v2214, %v2273
    %v2305 = vmul.f32 %v2214, %v2277
    %v2306 = vmul.f32 %v2218, %v2273
    %v2307 = vmul.f32 %v2218, %v2277
    %v2308 = vmul.f32 %v2222, %v2273
    %v2309 = vmul.f32 %v2222, %v2277
    %v2310 = vmul.f32 %v2226, %v2273
    %v2311 = vmul.f32 %v2226, %v2277
    %v2312 = vmul.f32 %v2230, %v2273
    %v2313 = vmul.f32 %v2230, %v2277
    %v2314 = vmul.f32 %v2234, %v2273
    %v2315 = vmul.f32 %v2234, %v2277
    %v2316 = vmul.f32 %v2238, %v2273
    %v2317 = vmul.f32 %v2238, %v2277
    %v2318 = vmul.f32 %v2242, %v2273
    %v2319 = vmul.f32 %v2242, %v2277
    %v2320 = vmul.f32 %v2246, %v2273
    %v2321 = vmul.f32 %v2246, %v2277
    %v2322 = vmul.f32 %v2250, %v2273
    %v2323 = vmul.f32 %v2250, %v2277
    %v2324 = vmul.f32 %v2254, %v2273
    %v2325 = vmul.f32 %v2254, %v2277
    %v2326 = vmul.f32 %v2258, %v2273
    %v2327 = vmul.f32 %v2258, %v2277
    %v2328 = vadd.f32 %v2110, %v2278
    %v2329 = vadd.f32 %v2111, %v2279
    %v2330 = vadd.f32 %v2112, %v2280
    %v2331 = vadd.f32 %v2113, %v2281
    %v2332 = vadd.f32 %v2114, %v2282
    %v2333 = vadd.f32 %v2115, %v2283
    %v2334 = vadd.f32 %v2116, %v2284
    %v2335 = vadd.f32 %v2117, %v2285
    %v2336 = vadd.f32 %v2118, %v2286
    %v2337 = vadd.f32 %v2119, %v2287
    %v2338 = vadd.f32 %v2120, %v2288
    %v2339 = vadd.f32 %v2121, %v2289
    %v2340 = vadd.f32 %v2122, %v2290
    %v2341 = vadd.f32 %v2123, %v2291
    %v2342 = vadd.f32 %v2124, %v2292
    %v2343 = vadd.f32 %v2125, %v2293
    %v2344 = vadd.f32 %v2126, %v2294
    %v2345 = vadd.f32 %v2127, %v2295
    %v2346 = vadd.f32 %v2128, %v2296
    %v2347 = vadd.f32 %v2129, %v2297
    %v2348 = vadd.f32 %v2130, %v2298
    %v2349 = vadd.f32 %v2131, %v2299
    %v2350 = vadd.f32 %v2132, %v2300
    %v2351 = vadd.f32 %v2133, %v2301
    %v2352 = vadd.f32 %v2134, %v2302
    %v2353 = vadd.f32 %v2135, %v2303
    %v2354 = vadd.f32 %v2136, %v2304
    %v2355 = vadd.f32 %v2137, %v2305
    %v2356 = vadd.f32 %v2138, %v2306
    %v2357 = vadd.f32 %v2139, %v2307
    %v2358 = vadd.f32 %v2140, %v2308
    %v2359 = vadd.f32 %v2141, %v2309
    %v2360 = vadd.f32 %v2142, %v2310
    %v2361 = vadd.f32 %v2143, %v2311
    %v2362 = vadd.f32 %v2144, %v2312
    %v2363 = vadd.f32 %v2145, %v2313
    %v2364 = vadd.f32 %v2146, %v2314
    %v2365 = vadd.f32 %v2147, %v2315
    %v2366 = vadd.f32 %v2148, %v2316
    %v2367 = vadd.f32 %v2149, %v2317
    %v2368 = vadd.f32 %v2150, %v2318
    %v2369 = vadd.f32 %v2151, %v2319
    %v2370 = vadd.f32 %v2152, %v2320
    %v2371 = vadd.f32 %v2153, %v2321
    %v2372 = vadd.f32 %v2154, %v2322
    %v2373 = vadd.f32 %v2155, %v2323
    %v2374 = vadd.f32 %v2156, %v2324
    %v2375 = vadd.f32 %v2157, %v2325
    %v2376 = vadd.f32 %v2158, %v2326
    %v2377 = vadd.f32 %v2159, %v2327
    %2378 = vset.pattern.permute.xlu0 3
    %2379 = vperm.xlu0 %2378, %v1721
    %v2380 = vpop.permute.xlu0 %2379
    %2382 = vset.pattern.permute.xlu0 3
    %2383 = vperm.xlu0 %2382, %v1722
    %v2384 = vpop.permute.xlu0 %2383
    %2386 = vset.pattern.permute.xlu0 3
    %2387 = vperm.xlu0 %2386, %v1723
    %v2388 = vpop.permute.xlu0 %2387
    %2390 = vset.pattern.permute.xlu0 3
    %2391 = vperm.xlu0 %2390, %v1724
    %v2392 = vpop.permute.xlu0 %2391
    %2394 = vset.pattern.permute.xlu0 3
    %2395 = vperm.xlu0 %2394, %v1725
    %v2396 = vpop.permute.xlu0 %2395
    %2398 = vset.pattern.permute.xlu0 3
    %2399 = vperm.xlu0 %2398, %v1726
    %v2400 = vpop.permute.xlu0 %2399
    %2402 = vset.pattern.permute.xlu0 3
    %2403 = vperm.xlu0 %2402, %v1727
    %v2404 = vpop.permute.xlu0 %2403
    %2406 = vset.pattern.permute.xlu0 3
    %2407 = vperm.xlu0 %2406, %v1728
    %v2408 = vpop.permute.xlu0 %2407
    %2410 = vset.pattern.permute.xlu0 3
    %2411 = vperm.xlu0 %2410, %v1729
    %v2412 = vpop.permute.xlu0 %2411
    %2414 = vset.pattern.permute.xlu0 3
    %2415 = vperm.xlu0 %2414, %v1730
    %v2416 = vpop.permute.xlu0 %2415
    %2418 = vset.pattern.permute.xlu0 3
    %2419 = vperm.xlu0 %2418, %v1731
    %v2420 = vpop.permute.xlu0 %2419
    %2422 = vset.pattern.permute.xlu0 3
    %2423 = vperm.xlu0 %2422, %v1732
    %v2424 = vpop.permute.xlu0 %2423
    %2426 = vset.pattern.permute.xlu0 3
    %2427 = vperm.xlu0 %2426, %v1733
    %v2428 = vpop.permute.xlu0 %2427
    %2430 = vset.pattern.permute.xlu0 3
    %2431 = vperm.xlu0 %2430, %v1734
    %v2432 = vpop.permute.xlu0 %2431
    %2434 = vset.pattern.permute.xlu0 3
    %2435 = vperm.xlu0 %2434, %v1735
    %v2436 = vpop.permute.xlu0 %2435
    %2438 = vset.pattern.permute.xlu0 3
    %2439 = vperm.xlu0 %2438, %v1736
    %v2440 = vpop.permute.xlu0 %2439
    %2442 = vset.pattern.permute.xlu0 3
    %2443 = vperm.xlu0 %2442, %v1737
    %v2444 = vpop.permute.xlu0 %2443
    %2446 = vset.pattern.permute.xlu0 3
    %2447 = vperm.xlu0 %2446, %v1738
    %v2448 = vpop.permute.xlu0 %2447
    %2450 = vset.pattern.permute.xlu0 3
    %2451 = vperm.xlu0 %2450, %v1739
    %v2452 = vpop.permute.xlu0 %2451
    %2454 = vset.pattern.permute.xlu0 3
    %2455 = vperm.xlu0 %2454, %v1740
    %v2456 = vpop.permute.xlu0 %2455
    %2458 = vset.pattern.permute.xlu0 3
    %2459 = vperm.xlu0 %2458, %v1741
    %v2460 = vpop.permute.xlu0 %2459
    %2462 = vset.pattern.permute.xlu0 3
    %2463 = vperm.xlu0 %2462, %v1742
    %v2464 = vpop.permute.xlu0 %2463
    %2466 = vset.pattern.permute.xlu0 3
    %2467 = vperm.xlu0 %2466, %v1743
    %v2468 = vpop.permute.xlu0 %2467
    %2470 = vset.pattern.permute.xlu0 3
    %2471 = vperm.xlu0 %2470, %v1744
    %v2472 = vpop.permute.xlu0 %2471
    %2474 = vset.pattern.permute.xlu0 3
    %2475 = vperm.xlu0 %2474, %v1745
    %v2476 = vpop.permute.xlu0 %2475
    %v2478 = vlaneseq
    %v2479 = vshrl.u32 %v2478, 7
    %v2480 = vsub.s32 3, %v2479
    %v2481 = vrot.slane %v1747, %v2480
    %v2482 = vlaneseq
    %v2483 = vshrl.u32 %v2482, 7
    %v2484 = vsub.s32 7, %v2483
    %v2485 = vrot.slane %v1747, %v2484
    %v2488 = vlaneseq
    %v2489 = vshrl.u32 %v2488, 7
    %v2490 = vsub.s32 3, %v2489
    %v2491 = vrot.slane %v2481, %v2490
    %v2492 = vlaneseq
    %v2493 = vshrl.u32 %v2492, 7
    %v2494 = vsub.s32 3, %v2493
    %v2495 = vrot.slane %v2485, %v2494
    %v2496 = vmul.f32 %v2380, %v2491
    %v2497 = vmul.f32 %v2380, %v2495
    %v2498 = vmul.f32 %v2384, %v2491
    %v2499 = vmul.f32 %v2384, %v2495
    %v2500 = vmul.f32 %v2388, %v2491
    %v2501 = vmul.f32 %v2388, %v2495
    %v2502 = vmul.f32 %v2392, %v2491
    %v2503 = vmul.f32 %v2392, %v2495
    %v2504 = vmul.f32 %v2396, %v2491
    %v2505 = vmul.f32 %v2396, %v2495
    %v2506 = vmul.f32 %v2400, %v2491
    %v2507 = vmul.f32 %v2400, %v2495
    %v2508 = vmul.f32 %v2404, %v2491
    %v2509 = vmul.f32 %v2404, %v2495
    %v2510 = vmul.f32 %v2408, %v2491
    %v2511 = vmul.f32 %v2408, %v2495
    %v2512 = vmul.f32 %v2412, %v2491
    %v2513 = vmul.f32 %v2412, %v2495
    %v2514 = vmul.f32 %v2416, %v2491
    %v2515 = vmul.f32 %v2416, %v2495
    %v2516 = vmul.f32 %v2420, %v2491
    %v2517 = vmul.f32 %v2420, %v2495
    %v2518 = vmul.f32 %v2424, %v2491
    %v2519 = vmul.f32 %v2424, %v2495
    %v2520 = vmul.f32 %v2428, %v2491
    %v2521 = vmul.f32 %v2428, %v2495
    %v2522 = vmul.f32 %v2432, %v2491
    %v2523 = vmul.f32 %v2432, %v2495
    %v2524 = vmul.f32 %v2436, %v2491
    %v2525 = vmul.f32 %v2436, %v2495
    %v2526 = vmul.f32 %v2440, %v2491
    %v2527 = vmul.f32 %v2440, %v2495
    %v2528 = vmul.f32 %v2444, %v2491
    %v2529 = vmul.f32 %v2444, %v2495
    %v2530 = vmul.f32 %v2448, %v2491
    %v2531 = vmul.f32 %v2448, %v2495
    %v2532 = vmul.f32 %v2452, %v2491
    %v2533 = vmul.f32 %v2452, %v2495
    %v2534 = vmul.f32 %v2456, %v2491
    %v2535 = vmul.f32 %v2456, %v2495
    %v2536 = vmul.f32 %v2460, %v2491
    %v2537 = vmul.f32 %v2460, %v2495
    %v2538 = vmul.f32 %v2464, %v2491
    %v2539 = vmul.f32 %v2464, %v2495
    %v2540 = vmul.f32 %v2468, %v2491
    %v2541 = vmul.f32 %v2468, %v2495
    %v2542 = vmul.f32 %v2472, %v2491
    %v2543 = vmul.f32 %v2472, %v2495
    %v2544 = vmul.f32 %v2476, %v2491
    %v2545 = vmul.f32 %v2476, %v2495
    %v2546 = vadd.f32 %v2328, %v2496
    %v2547 = vadd.f32 %v2329, %v2497
    %v2548 = vadd.f32 %v2330, %v2498
    %v2549 = vadd.f32 %v2331, %v2499
    %v2550 = vadd.f32 %v2332, %v2500
    %v2551 = vadd.f32 %v2333, %v2501
    %v2552 = vadd.f32 %v2334, %v2502
    %v2553 = vadd.f32 %v2335, %v2503
    %v2554 = vadd.f32 %v2336, %v2504
    %v2555 = vadd.f32 %v2337, %v2505
    %v2556 = vadd.f32 %v2338, %v2506
    %v2557 = vadd.f32 %v2339, %v2507
    %v2558 = vadd.f32 %v2340, %v2508
    %v2559 = vadd.f32 %v2341, %v2509
    %v2560 = vadd.f32 %v2342, %v2510
    %v2561 = vadd.f32 %v2343, %v2511
    %v2562 = vadd.f32 %v2344, %v2512
    %v2563 = vadd.f32 %v2345, %v2513
    %v2564 = vadd.f32 %v2346, %v2514
    %v2565 = vadd.f32 %v2347, %v2515
    %v2566 = vadd.f32 %v2348, %v2516
    %v2567 = vadd.f32 %v2349, %v2517
    %v2568 = vadd.f32 %v2350, %v2518
    %v2569 = vadd.f32 %v2351, %v2519
    %v2570 = vadd.f32 %v2352, %v2520
    %v2571 = vadd.f32 %v2353, %v2521
    %v2572 = vadd.f32 %v2354, %v2522
    %v2573 = vadd.f32 %v2355, %v2523
    %v2574 = vadd.f32 %v2356, %v2524
    %v2575 = vadd.f32 %v2357, %v2525
    %v2576 = vadd.f32 %v2358, %v2526
    %v2577 = vadd.f32 %v2359, %v2527
    %v2578 = vadd.f32 %v2360, %v2528
    %v2579 = vadd.f32 %v2361, %v2529
    %v2580 = vadd.f32 %v2362, %v2530
    %v2581 = vadd.f32 %v2363, %v2531
    %v2582 = vadd.f32 %v2364, %v2532
    %v2583 = vadd.f32 %v2365, %v2533
    %v2584 = vadd.f32 %v2366, %v2534
    %v2585 = vadd.f32 %v2367, %v2535
    %v2586 = vadd.f32 %v2368, %v2536
    %v2587 = vadd.f32 %v2369, %v2537
    %v2588 = vadd.f32 %v2370, %v2538
    %v2589 = vadd.f32 %v2371, %v2539
    %v2590 = vadd.f32 %v2372, %v2540
    %v2591 = vadd.f32 %v2373, %v2541
    %v2592 = vadd.f32 %v2374, %v2542
    %v2593 = vadd.f32 %v2375, %v2543
    %v2594 = vadd.f32 %v2376, %v2544
    %v2595 = vadd.f32 %v2377, %v2545
    %v2596 = vld [vmem:[%s9] sm:$0x3]
    %v2598 = vlaneseq
    %v2599 = vshrl.u32 %v2598, 7
    %v2600 = vsub.s32 0, %v2599
    %v2601 = vrot.slane %v2596, %v2600
    %v2602 = vlaneseq
    %v2603 = vshrl.u32 %v2602, 7
    %v2604 = vsub.s32 1, %v2603
    %v2605 = vrot.slane %v2596, %v2604
    %v2608 = vadd.f32 %v2546, %v2601
    %v2609 = vadd.f32 %v2547, %v2605
    %v2610 = vadd.f32 %v2548, %v2601
    %v2611 = vadd.f32 %v2549, %v2605
    %v2612 = vadd.f32 %v2550, %v2601
    %v2613 = vadd.f32 %v2551, %v2605
    %v2614 = vadd.f32 %v2552, %v2601
    %v2615 = vadd.f32 %v2553, %v2605
    %v2616 = vadd.f32 %v2554, %v2601
    %v2617 = vadd.f32 %v2555, %v2605
    %v2618 = vadd.f32 %v2556, %v2601
    %v2619 = vadd.f32 %v2557, %v2605
    %v2620 = vadd.f32 %v2558, %v2601
    %v2621 = vadd.f32 %v2559, %v2605
    %v2622 = vadd.f32 %v2560, %v2601
    %v2623 = vadd.f32 %v2561, %v2605
    %v2624 = vadd.f32 %v2562, %v2601
    %v2625 = vadd.f32 %v2563, %v2605
    %v2626 = vadd.f32 %v2564, %v2601
    %v2627 = vadd.f32 %v2565, %v2605
    %v2628 = vadd.f32 %v2566, %v2601
    %v2629 = vadd.f32 %v2567, %v2605
    %v2630 = vadd.f32 %v2568, %v2601
    %v2631 = vadd.f32 %v2569, %v2605
    %v2632 = vadd.f32 %v2570, %v2601
    %v2633 = vadd.f32 %v2571, %v2605
    %v2634 = vadd.f32 %v2572, %v2601
    %v2635 = vadd.f32 %v2573, %v2605
    %v2636 = vadd.f32 %v2574, %v2601
    %v2637 = vadd.f32 %v2575, %v2605
    %v2638 = vadd.f32 %v2576, %v2601
    %v2639 = vadd.f32 %v2577, %v2605
    %v2640 = vadd.f32 %v2578, %v2601
    %v2641 = vadd.f32 %v2579, %v2605
    %v2642 = vadd.f32 %v2580, %v2601
    %v2643 = vadd.f32 %v2581, %v2605
    %v2644 = vadd.f32 %v2582, %v2601
    %v2645 = vadd.f32 %v2583, %v2605
    %v2646 = vadd.f32 %v2584, %v2601
    %v2647 = vadd.f32 %v2585, %v2605
    %v2648 = vadd.f32 %v2586, %v2601
    %v2649 = vadd.f32 %v2587, %v2605
    %v2650 = vadd.f32 %v2588, %v2601
    %v2651 = vadd.f32 %v2589, %v2605
    %v2652 = vadd.f32 %v2590, %v2601
    %v2653 = vadd.f32 %v2591, %v2605
    %v2654 = vadd.f32 %v2592, %v2601
    %v2655 = vadd.f32 %v2593, %v2605
    %v2656 = vadd.f32 %v2594, %v2601
    %v2657 = vadd.f32 %v2595, %v2605
    %v2658 = vmul.f32 %v2608, 0.01
    %v2659 = vmul.f32 %v2609, 0.01
    %v2660 = vmul.f32 %v2610, 0.01
    %v2661 = vmul.f32 %v2611, 0.01
    %v2662 = vmul.f32 %v2612, 0.01
    %v2663 = vmul.f32 %v2613, 0.01
    %v2664 = vmul.f32 %v2614, 0.01
    %v2665 = vmul.f32 %v2615, 0.01
    %v2666 = vmul.f32 %v2616, 0.01
    %v2667 = vmul.f32 %v2617, 0.01
    %v2668 = vmul.f32 %v2618, 0.01
    %v2669 = vmul.f32 %v2619, 0.01
    %v2670 = vmul.f32 %v2620, 0.01
    %v2671 = vmul.f32 %v2621, 0.01
    %v2672 = vmul.f32 %v2622, 0.01
    %v2673 = vmul.f32 %v2623, 0.01
    %v2674 = vmul.f32 %v2624, 0.01
    %v2675 = vmul.f32 %v2625, 0.01
    %v2676 = vmul.f32 %v2626, 0.01
    %v2677 = vmul.f32 %v2627, 0.01
    %v2678 = vmul.f32 %v2628, 0.01
    %v2679 = vmul.f32 %v2629, 0.01
    %v2680 = vmul.f32 %v2630, 0.01
    %v2681 = vmul.f32 %v2631, 0.01
    %v2682 = vmul.f32 %v2632, 0.01
    %v2683 = vmul.f32 %v2633, 0.01
    %v2684 = vmul.f32 %v2634, 0.01
    %v2685 = vmul.f32 %v2635, 0.01
    %v2686 = vmul.f32 %v2636, 0.01
    %v2687 = vmul.f32 %v2637, 0.01
    %v2688 = vmul.f32 %v2638, 0.01
    %v2689 = vmul.f32 %v2639, 0.01
    %v2690 = vmul.f32 %v2640, 0.01
    %v2691 = vmul.f32 %v2641, 0.01
    %v2692 = vmul.f32 %v2642, 0.01
    %v2693 = vmul.f32 %v2643, 0.01
    %v2694 = vmul.f32 %v2644, 0.01
    %v2695 = vmul.f32 %v2645, 0.01
    %v2696 = vmul.f32 %v2646, 0.01
    %v2697 = vmul.f32 %v2647, 0.01
    %v2698 = vmul.f32 %v2648, 0.01
    %v2699 = vmul.f32 %v2649, 0.01
    %v2700 = vmul.f32 %v2650, 0.01
    %v2701 = vmul.f32 %v2651, 0.01
    %v2702 = vmul.f32 %v2652, 0.01
    %v2703 = vmul.f32 %v2653, 0.01
    %v2704 = vmul.f32 %v2654, 0.01
    %v2705 = vmul.f32 %v2655, 0.01
    %v2706 = vmul.f32 %v2656, 0.01
    %v2707 = vmul.f32 %v2657, 0.01
    %v2708 = vmax.f32 %v2608, %v2658
    %v2709 = vmax.f32 %v2609, %v2659
    %v2710 = vmax.f32 %v2610, %v2660
    %v2711 = vmax.f32 %v2611, %v2661
    %v2712 = vmax.f32 %v2612, %v2662
    %v2713 = vmax.f32 %v2613, %v2663
    %v2714 = vmax.f32 %v2614, %v2664
    %v2715 = vmax.f32 %v2615, %v2665
    %v2716 = vmax.f32 %v2616, %v2666
    %v2717 = vmax.f32 %v2617, %v2667
    %v2718 = vmax.f32 %v2618, %v2668
    %v2719 = vmax.f32 %v2619, %v2669
    %v2720 = vmax.f32 %v2620, %v2670
    %v2721 = vmax.f32 %v2621, %v2671
    %v2722 = vmax.f32 %v2622, %v2672
    %v2723 = vmax.f32 %v2623, %v2673
    %v2724 = vmax.f32 %v2624, %v2674
    %v2725 = vmax.f32 %v2625, %v2675
    %v2726 = vmax.f32 %v2626, %v2676
    %v2727 = vmax.f32 %v2627, %v2677
    %v2728 = vmax.f32 %v2628, %v2678
    %v2729 = vmax.f32 %v2629, %v2679
    %v2730 = vmax.f32 %v2630, %v2680
    %v2731 = vmax.f32 %v2631, %v2681
    %v2732 = vmax.f32 %v2632, %v2682
    %v2733 = vmax.f32 %v2633, %v2683
    %v2734 = vmax.f32 %v2634, %v2684
    %v2735 = vmax.f32 %v2635, %v2685
    %v2736 = vmax.f32 %v2636, %v2686
    %v2737 = vmax.f32 %v2637, %v2687
    %v2738 = vmax.f32 %v2638, %v2688
    %v2739 = vmax.f32 %v2639, %v2689
    %v2740 = vmax.f32 %v2640, %v2690
    %v2741 = vmax.f32 %v2641, %v2691
    %v2742 = vmax.f32 %v2642, %v2692
    %v2743 = vmax.f32 %v2643, %v2693
    %v2744 = vmax.f32 %v2644, %v2694
    %v2745 = vmax.f32 %v2645, %v2695
    %v2746 = vmax.f32 %v2646, %v2696
    %v2747 = vmax.f32 %v2647, %v2697
    %v2748 = vmax.f32 %v2648, %v2698
    %v2749 = vmax.f32 %v2649, %v2699
    %v2750 = vmax.f32 %v2650, %v2700
    %v2751 = vmax.f32 %v2651, %v2701
    %v2752 = vmax.f32 %v2652, %v2702
    %v2753 = vmax.f32 %v2653, %v2703
    %v2754 = vmax.f32 %v2654, %v2704
    %v2755 = vmax.f32 %v2655, %v2705
    %v2756 = vmax.f32 %v2656, %v2706
    %v2757 = vmax.f32 %v2657, %v2707
    %v2758 = vadd.f32 %v1646, %v2708
    %v2759 = vadd.f32 %v1647, %v2709
    %v2760 = vadd.f32 %v1648, %v2710
    %v2761 = vadd.f32 %v1649, %v2711
    %v2762 = vadd.f32 %v1650, %v2712
    %v2763 = vadd.f32 %v1651, %v2713
    %v2764 = vadd.f32 %v1652, %v2714
    %v2765 = vadd.f32 %v1653, %v2715
    %v2766 = vadd.f32 %v1654, %v2716
    %v2767 = vadd.f32 %v1655, %v2717
    %v2768 = vadd.f32 %v1656, %v2718
    %v2769 = vadd.f32 %v1657, %v2719
    %v2770 = vadd.f32 %v1658, %v2720
    %v2771 = vadd.f32 %v1659, %v2721
    %v2772 = vadd.f32 %v1660, %v2722
    %v2773 = vadd.f32 %v1661, %v2723
    %v2774 = vadd.f32 %v1662, %v2724
    %v2775 = vadd.f32 %v1663, %v2725
    %v2776 = vadd.f32 %v1664, %v2726
    %v2777 = vadd.f32 %v1665, %v2727
    %v2778 = vadd.f32 %v1666, %v2728
    %v2779 = vadd.f32 %v1667, %v2729
    %v2780 = vadd.f32 %v1668, %v2730
    %v2781 = vadd.f32 %v1669, %v2731
    %v2782 = vadd.f32 %v1670, %v2732
    %v2783 = vadd.f32 %v1671, %v2733
    %v2784 = vadd.f32 %v1672, %v2734
    %v2785 = vadd.f32 %v1673, %v2735
    %v2786 = vadd.f32 %v1674, %v2736
    %v2787 = vadd.f32 %v1675, %v2737
    %v2788 = vadd.f32 %v1676, %v2738
    %v2789 = vadd.f32 %v1677, %v2739
    %v2790 = vadd.f32 %v1678, %v2740
    %v2791 = vadd.f32 %v1679, %v2741
    %v2792 = vadd.f32 %v1680, %v2742
    %v2793 = vadd.f32 %v1681, %v2743
    %v2794 = vadd.f32 %v1682, %v2744
    %v2795 = vadd.f32 %v1683, %v2745
    %v2796 = vadd.f32 %v1684, %v2746
    %v2797 = vadd.f32 %v1685, %v2747
    %v2798 = vadd.f32 %v1686, %v2748
    %v2799 = vadd.f32 %v1687, %v2749
    %v2800 = vadd.f32 %v1688, %v2750
    %v2801 = vadd.f32 %v1689, %v2751
    %v2802 = vadd.f32 %v1690, %v2752
    %v2803 = vadd.f32 %v1691, %v2753
    %v2804 = vadd.f32 %v1692, %v2754
    %v2805 = vadd.f32 %v1693, %v2755
    %v2806 = vadd.f32 %v1694, %v2756
    %v2807 = vadd.f32 %v1695, %v2757
    %v2808 = vld [vmem:[%s10] sm:$0x3]
    %v2810 = vlaneseq
    %v2811 = vshrl.u32 %v2810, 7
    %v2812 = vsub.s32 0, %v2811
    %v2813 = vrot.slane %v2808, %v2812
    %v2814 = vlaneseq
    %v2815 = vshrl.u32 %v2814, 7
    %v2816 = vsub.s32 1, %v2815
    %v2817 = vrot.slane %v2808, %v2816
    %v2820 = vmul.f32 %v2758, %v2813
    %v2821 = vmul.f32 %v2759, %v2817
    %v2822 = vmul.f32 %v2760, %v2813
    %v2823 = vmul.f32 %v2761, %v2817
    %v2824 = vmul.f32 %v2762, %v2813
    %v2825 = vmul.f32 %v2763, %v2817
    %v2826 = vmul.f32 %v2764, %v2813
    %v2827 = vmul.f32 %v2765, %v2817
    %v2828 = vmul.f32 %v2766, %v2813
    %v2829 = vmul.f32 %v2767, %v2817
    %v2830 = vmul.f32 %v2768, %v2813
    %v2831 = vmul.f32 %v2769, %v2817
    %v2832 = vmul.f32 %v2770, %v2813
    %v2833 = vmul.f32 %v2771, %v2817
    %v2834 = vmul.f32 %v2772, %v2813
    %v2835 = vmul.f32 %v2773, %v2817
    %v2836 = vmul.f32 %v2774, %v2813
    %v2837 = vmul.f32 %v2775, %v2817
    %v2838 = vmul.f32 %v2776, %v2813
    %v2839 = vmul.f32 %v2777, %v2817
    %v2840 = vmul.f32 %v2778, %v2813
    %v2841 = vmul.f32 %v2779, %v2817
    %v2842 = vmul.f32 %v2780, %v2813
    %v2843 = vmul.f32 %v2781, %v2817
    %v2844 = vmul.f32 %v2782, %v2813
    %v2845 = vmul.f32 %v2783, %v2817
    %v2846 = vmul.f32 %v2784, %v2813
    %v2847 = vmul.f32 %v2785, %v2817
    %v2848 = vmul.f32 %v2786, %v2813
    %v2849 = vmul.f32 %v2787, %v2817
    %v2850 = vmul.f32 %v2788, %v2813
    %v2851 = vmul.f32 %v2789, %v2817
    %v2852 = vmul.f32 %v2790, %v2813
    %v2853 = vmul.f32 %v2791, %v2817
    %v2854 = vmul.f32 %v2792, %v2813
    %v2855 = vmul.f32 %v2793, %v2817
    %v2856 = vmul.f32 %v2794, %v2813
    %v2857 = vmul.f32 %v2795, %v2817
    %v2858 = vmul.f32 %v2796, %v2813
    %v2859 = vmul.f32 %v2797, %v2817
    %v2860 = vmul.f32 %v2798, %v2813
    %v2861 = vmul.f32 %v2799, %v2817
    %v2862 = vmul.f32 %v2800, %v2813
    %v2863 = vmul.f32 %v2801, %v2817
    %v2864 = vmul.f32 %v2802, %v2813
    %v2865 = vmul.f32 %v2803, %v2817
    %v2866 = vmul.f32 %v2804, %v2813
    %v2867 = vmul.f32 %v2805, %v2817
    %v2868 = vmul.f32 %v2806, %v2813
    %v2869 = vmul.f32 %v2807, %v2817
    %v2870 = vadd.f32 %v2820, %v2821
    %2871 = vadd.xlane.f32.xlu0 %v2870
    %v2872 = vpop.xlane.xlu0 %2871
    %v2873 = vadd.f32 %v2822, %v2823
    %2874 = vadd.xlane.f32.xlu0 %v2873
    %v2875 = vpop.xlane.xlu0 %2874
    %v2876 = vadd.f32 %v2824, %v2825
    %2877 = vadd.xlane.f32.xlu0 %v2876
    %v2878 = vpop.xlane.xlu0 %2877
    %v2879 = vadd.f32 %v2826, %v2827
    %2880 = vadd.xlane.f32.xlu0 %v2879
    %v2881 = vpop.xlane.xlu0 %2880
    %v2882 = vadd.f32 %v2828, %v2829
    %2883 = vadd.xlane.f32.xlu0 %v2882
    %v2884 = vpop.xlane.xlu0 %2883
    %v2885 = vadd.f32 %v2830, %v2831
    %2886 = vadd.xlane.f32.xlu0 %v2885
    %v2887 = vpop.xlane.xlu0 %2886
    %v2888 = vadd.f32 %v2832, %v2833
    %2889 = vadd.xlane.f32.xlu0 %v2888
    %v2890 = vpop.xlane.xlu0 %2889
    %v2891 = vadd.f32 %v2834, %v2835
    %2892 = vadd.xlane.f32.xlu0 %v2891
    %v2893 = vpop.xlane.xlu0 %2892
    %v2894 = vadd.f32 %v2836, %v2837
    %2895 = vadd.xlane.f32.xlu0 %v2894
    %v2896 = vpop.xlane.xlu0 %2895
    %v2897 = vadd.f32 %v2838, %v2839
    %2898 = vadd.xlane.f32.xlu0 %v2897
    %v2899 = vpop.xlane.xlu0 %2898
    %v2900 = vadd.f32 %v2840, %v2841
    %2901 = vadd.xlane.f32.xlu0 %v2900
    %v2902 = vpop.xlane.xlu0 %2901
    %v2903 = vadd.f32 %v2842, %v2843
    %2904 = vadd.xlane.f32.xlu0 %v2903
    %v2905 = vpop.xlane.xlu0 %2904
    %v2906 = vadd.f32 %v2844, %v2845
    %2907 = vadd.xlane.f32.xlu0 %v2906
    %v2908 = vpop.xlane.xlu0 %2907
    %v2909 = vadd.f32 %v2846, %v2847
    %2910 = vadd.xlane.f32.xlu0 %v2909
    %v2911 = vpop.xlane.xlu0 %2910
    %v2912 = vadd.f32 %v2848, %v2849
    %2913 = vadd.xlane.f32.xlu0 %v2912
    %v2914 = vpop.xlane.xlu0 %2913
    %v2915 = vadd.f32 %v2850, %v2851
    %2916 = vadd.xlane.f32.xlu0 %v2915
    %v2917 = vpop.xlane.xlu0 %2916
    %v2918 = vadd.f32 %v2852, %v2853
    %2919 = vadd.xlane.f32.xlu0 %v2918
    %v2920 = vpop.xlane.xlu0 %2919
    %v2921 = vadd.f32 %v2854, %v2855
    %2922 = vadd.xlane.f32.xlu0 %v2921
    %v2923 = vpop.xlane.xlu0 %2922
    %v2924 = vadd.f32 %v2856, %v2857
    %2925 = vadd.xlane.f32.xlu0 %v2924
    %v2926 = vpop.xlane.xlu0 %2925
    %v2927 = vadd.f32 %v2858, %v2859
    %2928 = vadd.xlane.f32.xlu0 %v2927
    %v2929 = vpop.xlane.xlu0 %2928
    %v2930 = vadd.f32 %v2860, %v2861
    %2931 = vadd.xlane.f32.xlu0 %v2930
    %v2932 = vpop.xlane.xlu0 %2931
    %v2933 = vadd.f32 %v2862, %v2863
    %2934 = vadd.xlane.f32.xlu0 %v2933
    %v2935 = vpop.xlane.xlu0 %2934
    %v2936 = vadd.f32 %v2864, %v2865
    %2937 = vadd.xlane.f32.xlu0 %v2936
    %v2938 = vpop.xlane.xlu0 %2937
    %v2939 = vadd.f32 %v2866, %v2867
    %2940 = vadd.xlane.f32.xlu0 %v2939
    %v2941 = vpop.xlane.xlu0 %2940
    %v2942 = vadd.f32 %v2868, %v2869
    %2943 = vadd.xlane.f32.xlu0 %v2942
    %v2944 = vpop.xlane.xlu0 %2943
    %s2945 = sld [smem:[#allocation2]]
    %v2946 = vstv %s2945
    %v2947 = vadd.f32 %v2872, %v2946
    %v2948 = vadd.f32 %v2875, %v2946
    %v2949 = vadd.f32 %v2878, %v2946
    %v2950 = vadd.f32 %v2881, %v2946
    %v2951 = vadd.f32 %v2884, %v2946
    %v2952 = vadd.f32 %v2887, %v2946
    %v2953 = vadd.f32 %v2890, %v2946
    %v2954 = vadd.f32 %v2893, %v2946
    %v2955 = vadd.f32 %v2896, %v2946
    %v2956 = vadd.f32 %v2899, %v2946
    %v2957 = vadd.f32 %v2902, %v2946
    %v2958 = vadd.f32 %v2905, %v2946
    %v2959 = vadd.f32 %v2908, %v2946
    %v2960 = vadd.f32 %v2911, %v2946
    %v2961 = vadd.f32 %v2914, %v2946
    %v2962 = vadd.f32 %v2917, %v2946
    %v2963 = vadd.f32 %v2920, %v2946
    %v2964 = vadd.f32 %v2923, %v2946
    %v2965 = vadd.f32 %v2926, %v2946
    %v2966 = vadd.f32 %v2929, %v2946
    %v2967 = vadd.f32 %v2932, %v2946
    %v2968 = vadd.f32 %v2935, %v2946
    %v2969 = vadd.f32 %v2938, %v2946
    %v2970 = vadd.f32 %v2941, %v2946
    %v2971 = vadd.f32 %v2944, %v2946
    %vm2972 = vcmask 7168
    %2973 = vst.msk [vmem:[%s12] sm:$0xff] %vm2972, %v2947
    %2974 = vst.msk [vmem:[%s12 + $0x8] sm:$0xff] %vm2972, %v2948
    %2975 = vst.msk [vmem:[%s12 + $0x10] sm:$0xff] %vm2972, %v2949
    %2976 = vst.msk [vmem:[%s12 + $0x18] sm:$0xff] %vm2972, %v2950
    %2977 = vst.msk [vmem:[%s12 + $0x20] sm:$0xff] %vm2972, %v2951
    %2978 = vst.msk [vmem:[%s12 + $0x28] sm:$0xff] %vm2972, %v2952
    %2979 = vst.msk [vmem:[%s12 + $0x30] sm:$0xff] %vm2972, %v2953
    %2980 = vst.msk [vmem:[%s12 + $0x38] sm:$0xff] %vm2972, %v2954
    %2981 = vst.msk [vmem:[%s12 + $0x40] sm:$0xff] %vm2972, %v2955
    %2982 = vst.msk [vmem:[%s12 + $0x48] sm:$0xff] %vm2972, %v2956
    %2983 = vst.msk [vmem:[%s12 + $0x50] sm:$0xff] %vm2972, %v2957
    %2984 = vst.msk [vmem:[%s12 + $0x58] sm:$0xff] %vm2972, %v2958
    %2985 = vst.msk [vmem:[%s12 + $0x60] sm:$0xff] %vm2972, %v2959
    %2986 = vst.msk [vmem:[%s12 + $0x68] sm:$0xff] %vm2972, %v2960
    %2987 = vst.msk [vmem:[%s12 + $0x70] sm:$0xff] %vm2972, %v2961
    %2988 = vst.msk [vmem:[%s12 + $0x78] sm:$0xff] %vm2972, %v2962
    %2989 = vst.msk [vmem:[%s12 + $0x80] sm:$0xff] %vm2972, %v2963
    %2990 = vst.msk [vmem:[%s12 + $0x88] sm:$0xff] %vm2972, %v2964
    %2991 = vst.msk [vmem:[%s12 + $0x90] sm:$0xff] %vm2972, %v2965
    %2992 = vst.msk [vmem:[%s12 + $0x98] sm:$0xff] %vm2972, %v2966
    %2993 = vst.msk [vmem:[%s12 + $0xa0] sm:$0xff] %vm2972, %v2967
    %2994 = vst.msk [vmem:[%s12 + $0xa8] sm:$0xff] %vm2972, %v2968
    %2995 = vst.msk [vmem:[%s12 + $0xb0] sm:$0xff] %vm2972, %v2969
    %2996 = vst.msk [vmem:[%s12 + $0xb8] sm:$0xff] %vm2972, %v2970
    %2997 = vst.msk [vmem:[%s12 + $0xc0] sm:$0xff] %vm2972, %v2971
    // Predicated region
    $region66: #{critic_head.1} parent=1 // pred_check
      _
    $region67: #{critic_head.1} parent=1 // pred_check_branch
      %2999 = sbr.rel (0) target = $region69
    $region68: #{critic_head.1} parent=1 // pred_region
      _
    $region69: #{critic_head.1} parent=1 // pred_fallthru
      _
    // Predicated region
    $region70: #{critic_head.1} parent=1 // pred_check
      _
    $region71: #{critic_head.1} parent=1 // pred_check_branch
      %3001 = sbr.rel (0) target = $region73
    $region72: #{critic_head.1} parent=1 // pred_region
      _
    $region73: #{critic_head.1} parent=1 // pred_fallthru
      _
    %3002 = vsyncpa [#allocation4], 1
    %3003 = vsyncpa [#allocation6], 1
    %3004 = vsyncpa [#allocation9], 1

</llo_original>
